<compile_context>
chip_gen: v5e
topology: v5e:2x2
jax: 0.10.0
libtpu: 0.0.40
codegen_flags: <defaults>
</compile_context>

<pallas_src>
import functools
import numpy as np
import jax
import jax.numpy as jnp
from jax.experimental import pallas as pl
from jax.experimental.pallas import tpu as pltpu


# ----------------------------------------------------------------------------
# Helpers
# ----------------------------------------------------------------------------
def _round_up(n: int, m: int) -> int:
    return ((n + m - 1) // m) * m


def _largest_divisor_leq(n: int, cap: int) -> int:
    cap = max(1, min(cap, n))
    for d in range(cap, 0, -1):
        if n % d == 0:
            return d
    return 1


def _normalize(e, den, approx):
    if approx:
        return e * pl.reciprocal(den, approx=True)     # EUP slot, ~free
    return e / den


def get_relative_position_index(win_h: int, win_w: int) -> np.ndarray:
    coords = np.stack(np.meshgrid(np.arange(win_h), np.arange(win_w), indexing="ij"))
    coords_flatten = coords.reshape(2, -1)
    rel = coords_flatten[:, :, None] - coords_flatten[:, None, :]
    rel = rel.transpose(1, 2, 0).copy()
    rel[:, :, 0] += win_h - 1
    rel[:, :, 1] += win_w - 1
    rel[:, :, 0] *= 2 * win_w - 1
    return rel.sum(-1)  # (win_h*win_w, win_h*win_w)


# ----------------------------------------------------------------------------
# Kernel 1: row-tiled linear projection (qkv / qkv_cls)
# ----------------------------------------------------------------------------
def _linear_kernel(x_ref, w_ref, b_ref, o_ref):
    acc = jnp.dot(x_ref[...], w_ref[...], preferred_element_type=jnp.float32)
    o_ref[...] = (acc + b_ref[...]).astype(o_ref.dtype)


def linear_pallas(x2d, w, b, *, compute_dtype, out_dtype, tile_m=512):
    M, K = x2d.shape
    Nout = w.shape[1]
    tm = min(tile_m, _round_up(M, 8))
    Mp = _round_up(M, tm)
    xp = x2d.astype(compute_dtype)
    if Mp != M:
        xp = jnp.pad(xp, ((0, Mp - M), (0, 0)))
    out = pl.pallas_call(
        _linear_kernel,
        out_shape=jax.ShapeDtypeStruct((Mp, Nout), out_dtype),
        grid=(Mp // tm,),
        in_specs=[
            pl.BlockSpec((tm, K), lambda i: (i, 0)),
            pl.BlockSpec((K, Nout), lambda i: (0, 0)),   # resident weight (bf16)
            pl.BlockSpec((1, Nout), lambda i: (0, 0)),   # resident bias
        ],
        out_specs=pl.BlockSpec((tm, Nout), lambda i: (i, 0)),
        compiler_params=pltpu.CompilerParams(dimension_semantics=("parallel",)),
    )(xp, w.astype(compute_dtype), b.reshape(1, Nout).astype(jnp.float32))
    return out[:M]


# ----------------------------------------------------------------------------
# Kernel 2: global aggregation (flash over image keys) fused with kv_global
#           projection and the class-token output projection.
# ----------------------------------------------------------------------------
def _agg_kernel(scale, num_heads, head_dim, n_keys, approx,
                qcls_ref, kvimg_ref, kvgw_ref, kvgb_ref, pw_ref, pb_ref,
                kv_out_ref, xcls_out_ref,
                m_ref, l_ref, acc_ref):
    C = num_heads * head_dim
    t = pl.program_id(1)
    tk = kvimg_ref.shape[1]

    @pl.when(t == 0)
    def _init():
        m_ref[...] = jnp.full(m_ref.shape, -jnp.inf, dtype=jnp.float32)
        l_ref[...] = jnp.zeros(l_ref.shape, jnp.float32)
        acc_ref[...] = jnp.zeros(acc_ref.shape, jnp.float32)

    q_all = qcls_ref[0]          # (NC, 3C) -- only the q columns are used
    kv = kvimg_ref[0]            # (TK, 3C) -- only the k/v columns are used
    nc = q_all.shape[0]
    key_idx = t * tk + jax.lax.broadcasted_iota(jnp.int32, (nc, tk), 1)
    valid = key_idx < n_keys     # masks the padded tail of the key axis

    for h in range(num_heads):
        q_h = q_all[:, h * head_dim:(h + 1) * head_dim]                    # (NC, hd)
        k_h = kv[:, C + h * head_dim: C + (h + 1) * head_dim]              # (TK, hd)
        v_h = kv[:, 2 * C + h * head_dim: 2 * C + (h + 1) * head_dim]      # (TK, hd)
        s = jnp.einsum("nd,kd->nk", q_h, k_h,
                       preferred_element_type=jnp.float32) * scale         # (NC, TK)
        s = jnp.where(valid, s, -jnp.inf)
        m_prev = m_ref[h]
        m_new = jnp.maximum(m_prev, jnp.max(s, axis=-1, keepdims=True))
        alpha = jnp.exp(m_prev - m_new)
        p = jnp.exp(s - m_new)
        l_ref[h] = alpha * l_ref[h] + jnp.sum(p, axis=-1, keepdims=True)
        acc_ref[h] = alpha * acc_ref[h] + jnp.einsum(
            "nk,kd->nd", p.astype(v_h.dtype), v_h,
            preferred_element_type=jnp.float32)
        m_ref[h] = m_new

    @pl.when(t == pl.num_programs(1) - 1)
    def _finalize():
        kv_acc = jnp.zeros(kv_out_ref.shape[1:], jnp.float32)     # (NC, 2C)
        xp_acc = jnp.zeros(xcls_out_ref.shape[1:], jnp.float32)   # (NC, C)
        for h in range(num_heads):
            if approx:
                x_h = acc_ref[h] * pl.reciprocal(l_ref[h], approx=True)
            else:
                x_h = acc_ref[h] / l_ref[h]
            x_h = x_h.astype(kvgw_ref.dtype)
            # per-head slice of the fused kv_global / proj matmuls:
            #   x @ W == sum_h x_h @ W[h*hd:(h+1)*hd, :]
            kv_acc = kv_acc + jnp.dot(
                x_h, kvgw_ref[h * head_dim:(h + 1) * head_dim, :],
                preferred_element_type=jnp.float32)
            xp_acc = xp_acc + jnp.dot(
                x_h, pw_ref[h * head_dim:(h + 1) * head_dim, :],
                preferred_element_type=jnp.float32)
        kv_out_ref[0] = (kv_acc + kvgb_ref[...]).astype(kv_out_ref.dtype)
        xcls_out_ref[0] = (xp_acc + pb_ref[...]).astype(xcls_out_ref.dtype)


def global_agg_pallas(qkv_cls, qkv_img, kvg_w, kvg_b, proj_w, proj_b, scale, *,
                      num_heads, compute_dtype, out_dtype, block_k=512):
    B, NC, threeC = qkv_cls.shape
    C = threeC // 3
    hd = C // num_heads
    HW = qkv_img.shape[1]
    tk = min(block_k, _round_up(HW, 8))
    NKp = _round_up(HW, tk)
    kvp = qkv_img.astype(compute_dtype)
    if NKp != HW:
        kvp = jnp.pad(kvp, ((0, 0), (0, NKp - HW), (0, 0)))
    approx = compute_dtype == jnp.bfloat16

    kv_cls, x_cls = pl.pallas_call(
        functools.partial(_agg_kernel, scale, num_heads, hd, HW, approx),
        out_shape=(jax.ShapeDtypeStruct((B, NC, 2 * C), compute_dtype),
                   jax.ShapeDtypeStruct((B, NC, C), out_dtype)),
        grid=(B, NKp // tk),
        in_specs=[
            pl.BlockSpec((1, NC, 3 * C), lambda b, t: (b, 0, 0)),   # resident per b
            pl.BlockSpec((1, tk, 3 * C), lambda b, t: (b, t, 0)),   # key/value tiles
            pl.BlockSpec((C, 2 * C), lambda b, t: (0, 0)),          # resident kvg_w
            pl.BlockSpec((1, 2 * C), lambda b, t: (0, 0)),
            pl.BlockSpec((C, C), lambda b, t: (0, 0)),              # resident proj_w
            pl.BlockSpec((1, C), lambda b, t: (0, 0)),
        ],
        out_specs=(pl.BlockSpec((1, NC, 2 * C), lambda b, t: (b, 0, 0)),
                   pl.BlockSpec((1, NC, C), lambda b, t: (b, 0, 0))),
        scratch_shapes=[pltpu.VMEM((num_heads, NC, 1), jnp.float32),   # m
                        pltpu.VMEM((num_heads, NC, 1), jnp.float32),   # l
                        pltpu.VMEM((num_heads, NC, hd), jnp.float32)], # acc
        compiler_params=pltpu.CompilerParams(
            dimension_semantics=("parallel", "arbitrary")),
    )(qkv_cls.astype(compute_dtype), kvp,
      kvg_w.astype(compute_dtype), kvg_b.reshape(1, -1).astype(jnp.float32),
      proj_w.astype(compute_dtype), proj_b.reshape(1, -1).astype(jnp.float32))
    return kv_cls, x_cls


# ----------------------------------------------------------------------------
# Kernel 3: fused local window attention + global broadcast + residual + proj
# ----------------------------------------------------------------------------
def _local_bcast_proj_kernel(scale, num_heads, head_dim, approx,
                             qkv_ref, bias_ref, kvcls_ref, pw_ref, pb_ref, o_ref):
    C = num_heads * head_dim
    qkv = qkv_ref[...]               # (WB, ws2, 3C), lane-dense
    kvc = kvcls_ref[0]               # (NC, 2C)
    wb, ws2 = qkv.shape[0], qkv.shape[1]
    rows = wb * ws2
    y = jnp.zeros((rows, C), jnp.float32)

    for h in range(num_heads):
        q = qkv[..., h * head_dim:(h + 1) * head_dim]                        # (WB, ws2, hd)
        k = qkv[..., C + h * head_dim: C + (h + 1) * head_dim]
        v = qkv[..., 2 * C + h * head_dim: 2 * C + (h + 1) * head_dim]

        # --- local windowed attention (per ws*ws window) with rel-pos bias ---
        s = jnp.einsum("bqd,bkd->bqk", q, k,
                       preferred_element_type=jnp.float32) * scale          # (WB, ws2, ws2)
        s = s + bias_ref[h][None]
        s = s - jnp.max(s, axis=-1, keepdims=True)
        e = jnp.exp(s)
        p = _normalize(e, jnp.sum(e, axis=-1, keepdims=True), approx)
        o_loc = jnp.einsum("bqk,bkd->bqd", p.astype(v.dtype), v,
                           preferred_element_type=jnp.float32)               # (WB, ws2, hd)

        # --- global broadcast: every image token attends over the NC class kv ---
        q2 = q.reshape(rows, head_dim)
        kc = kvc[:, h * head_dim:(h + 1) * head_dim]                         # (NC, hd)
        vc = kvc[:, C + h * head_dim: C + (h + 1) * head_dim]                # (NC, hd)
        sg = jnp.einsum("rd,nd->rn", q2, kc,
                        preferred_element_type=jnp.float32) * scale          # (rows, NC)
        sg = sg - jnp.max(sg, axis=-1, keepdims=True)
        eg = jnp.exp(sg)
        pg = _normalize(eg, jnp.sum(eg, axis=-1, keepdims=True), approx)
        o_glb = jnp.einsum("rn,nd->rd", pg.astype(vc.dtype), vc,
                           preferred_element_type=jnp.float32)               # (rows, hd)

        # --- residual add + per-head slice of the fused output projection ---
        x_h = (o_loc.reshape(rows, head_dim) + o_glb).astype(pw_ref.dtype)
        y = y + jnp.dot(x_h, pw_ref[h * head_dim:(h + 1) * head_dim, :],
                        preferred_element_type=jnp.float32)

    o_ref[...] = (y + pb_ref[...]).astype(o_ref.dtype)


def local_broadcast_proj_pallas(qkv_win, kv_cls, rel_bias, proj_w, proj_b, scale, *,
                                batch, num_heads, compute_dtype, out_dtype,
                                window_block=64):
    BnW, ws2, threeC = qkv_win.shape
    C = threeC // 3
    hd = C // num_heads
    nW = BnW // batch                       # windows per batch element
    NC = kv_cls.shape[1]
    wb = _largest_divisor_leq(nW, window_block)
    n_wb = nW // wb
    approx = compute_dtype == jnp.bfloat16

    return pl.pallas_call(
        functools.partial(_local_bcast_proj_kernel, scale, num_heads, hd, approx),
        out_shape=jax.ShapeDtypeStruct((BnW * ws2, C), out_dtype),
        grid=(batch, n_wb),
        in_specs=[
            pl.BlockSpec((wb, ws2, threeC), lambda b, i: (b * n_wb + i, 0, 0)),
            pl.BlockSpec((num_heads, ws2, ws2), lambda b, i: (0, 0, 0)),  # resident bias
            pl.BlockSpec((1, NC, 2 * C), lambda b, i: (b, 0, 0)),         # resident per b
            pl.BlockSpec((C, C), lambda b, i: (0, 0)),                    # resident proj_w
            pl.BlockSpec((1, C), lambda b, i: (0, 0)),
        ],
        out_specs=pl.BlockSpec((wb * ws2, C), lambda b, i: (b * n_wb + i, 0)),
        compiler_params=pltpu.CompilerParams(
            dimension_semantics=("parallel", "parallel")),
    )(qkv_win.astype(compute_dtype), rel_bias.astype(jnp.float32),
      kv_cls.astype(compute_dtype),
      proj_w.astype(compute_dtype), proj_b.reshape(1, -1).astype(jnp.float32))


# ----------------------------------------------------------------------------
# Forward pass (thin XLA glue; compute in the kernels above)
# ----------------------------------------------------------------------------
def attention_forward(x, H, W, params, *, num_heads, num_tokens, window_size,
                      compute_dtype=jnp.bfloat16,
                      tile_m=512, window_block=64, agg_block_k=512):
    B, N, C = x.shape
    NC = num_tokens
    ws = window_size
    hd = C // num_heads
    scale = float(hd) ** (-0.5)
    out_dtype = x.dtype
    cd = compute_dtype

    x_cls = x[:, :NC]
    x_img = x[:, NC:].reshape(B, H, W, C)
    pad_r = (ws - W % ws) % ws
    pad_b = (ws - H % ws) % ws
    if pad_r or pad_b:
        x_img = jnp.pad(x_img, ((0, 0), (0, pad_b), (0, pad_r), (0, 0)))
    Hp, Wp = H + pad_b, W + pad_r
    hg, wg = Hp // ws, Wp // ws
    nW = hg * wg

    # qkv projections (lane-dense, bf16 out).  Class and image tokens projected
    # separately -> no concat/slice glue.
    qkv_img = linear_pallas(x_img.reshape(-1, C), params["qkv_w"], params["qkv_b"],
                            compute_dtype=cd, out_dtype=cd, tile_m=tile_m)
    qkv_img = qkv_img.reshape(B, Hp, Wp, 3 * C)
    qkv_cls = linear_pallas(x_cls.reshape(-1, C), params["qkv_w"], params["qkv_b"],
                            compute_dtype=cd, out_dtype=cd, tile_m=tile_m)
    qkv_cls = qkv_cls.reshape(B, NC, 3 * C)

    # One packed window-partition transpose on the (…, 3C) slab.
    qkv_win = qkv_img.reshape(B, hg, ws, wg, ws, 3 * C)
    qkv_win = qkv_win.transpose(0, 1, 3, 2, 4, 5).reshape(B * nW, ws * ws, 3 * C)

    # Crop away window padding for the global (class-token) paths.  No-op slice
    # when H, W are already window-aligned (as in the toy shapes below).
    qkv_img_crop = qkv_img[:, :H, :W].reshape(B, H * W, 3 * C)

    # Global aggregation (flash over image keys) + fused kv_global / proj(x_cls).
    kv_cls, x_cls_out = global_agg_pallas(
        qkv_cls, qkv_img_crop, params["kvg_w"], params["kvg_b"],
        params["proj_w"], params["proj_b"], scale,
        num_heads=num_heads, compute_dtype=cd, out_dtype=out_dtype,
        block_k=agg_block_k)

    # Fused local window attention + global broadcast + residual + output proj.
    out_win = local_broadcast_proj_pallas(
        qkv_win, kv_cls, params["rel_pos_bias"], params["proj_w"], params["proj_b"],
        scale, batch=B, num_heads=num_heads, compute_dtype=cd, out_dtype=out_dtype,
        window_block=window_block)

    # One packed window-reverse + crop of the already-projected image tokens.
    out_img = out_win.reshape(B, hg, wg, ws, ws, C).transpose(0, 1, 3, 2, 4, 5)
    out_img = out_img.reshape(B, Hp, Wp, C)[:, :H, :W].reshape(B, H * W, C)

    return jnp.concatenate([x_cls_out, out_img], axis=1)


# ----------------------------------------------------------------------------
# Pure-JAX reference (mirrors the PyTorch forward; correctness check only)
# ----------------------------------------------------------------------------
def attention_reference(x, H, W, params, *, num_heads, num_tokens, window_size):
    B, N, C = x.shape
    NC, ws, hd = num_tokens, window_size, C // num_heads
    scale = float(hd) ** (-0.5)
    x_cls, x_img = x[:, :NC], x[:, NC:].reshape(B, H, W, C)
    pad_r = (ws - W % ws) % ws
    pad_b = (ws - H % ws) % ws
    x_img = jnp.pad(x_img, ((0, 0), (0, pad_b), (0, pad_r), (0, 0)))
    Hp, Wp = H + pad_b, W + pad_r
    hg, wg = Hp // ws, Wp // ws
    xf = jnp.concatenate([x_cls, x_img.reshape(B, Hp * Wp, C)], axis=1)

    qkv = xf @ params["qkv_w"] + params["qkv_b"]
    qkv = qkv.reshape(B, -1, 3, num_heads, hd).transpose(2, 0, 3, 1, 4)
    q, k, v = qkv[0], qkv[1], qkv[2]
    q_img, k_img, v_img = q[:, :, NC:], k[:, :, NC:], v[:, :, NC:]
    q_cls = q[:, :, :NC]

    def win_part(t):
        t = t.reshape(B, num_heads, hg, ws, wg, ws, hd)
        return t.transpose(0, 2, 4, 1, 3, 5, 6).reshape(-1, num_heads, ws * ws, hd)

    qw, kw, vw = win_part(q_img), win_part(k_img), win_part(v_img)
    attn = jnp.einsum("whqd,whkd->whqk", qw, kw) * scale + params["rel_pos_bias"][None]
    attn = jax.nn.softmax(attn, axis=-1)
    ow = jnp.einsum("whqk,whkd->whqd", attn, vw)
    ow = ow.transpose(0, 2, 1, 3).reshape(-1, ws * ws, C)
    x_local = ow.reshape(B, hg, wg, ws, ws, C).transpose(0, 1, 3, 2, 4, 5)
    x_local = x_local.reshape(B, Hp, Wp, C)[:, :H, :W].reshape(B, H * W, C)

    def crop(t):
        return t.reshape(B, num_heads, Hp, Wp, hd)[:, :, :H, :W].reshape(
            B, num_heads, H * W, hd)

    q_img, k_img, v_img = crop(q_img), crop(k_img), crop(v_img)
    attn = jax.nn.softmax(jnp.einsum("bhqd,bhkd->bhqk", q_cls, k_img) * scale, -1)
    x_cls_o = jnp.einsum("bhqk,bhkd->bhqd", attn, v_img)
    x_cls_o = x_cls_o.transpose(0, 2, 1, 3).reshape(B, NC, C)

    kvg = x_cls_o @ params["kvg_w"] + params["kvg_b"]
    kvg = kvg.reshape(B, NC, 2, num_heads, hd).transpose(2, 0, 3, 1, 4)
    k_cls, v_cls = kvg[0], kvg[1]

    attn = jax.nn.softmax(jnp.einsum("bhqd,bhkd->bhqk", q_img, k_cls) * scale, -1)
    x_b = jnp.einsum("bhqk,bhkd->bhqd", attn, v_cls)
    x_b = x_b.transpose(0, 2, 1, 3).reshape(B, H * W, C)
    x_img_o = x_local + x_b

    out = jnp.concatenate([x_cls_o, x_img_o], axis=1)
    return out @ params["proj_w"] + params["proj_b"]


# ----------------------------------------------------------------------------
# Main
# ----------------------------------------------------------------------------
if __name__ == "__main__":
    B, H, W = 2, 8, 8
    C, num_heads, num_tokens, window_size = 32, 4, 1, 4
    ws2 = window_size * window_size
    N = num_tokens + H * W

    key = jax.random.PRNGKey(0)
    k_qkv, k_kvg, k_pw, k_pb, k_rpb, k_x = jax.random.split(key, 6)

    # qkv / kv_global have no bias (torch default qkv_bias=False); proj does.
    # TODO(synk): torch uses trunc_normal_ for the bias table; plain normal*0.02 here.
    params = {
        "qkv_w": jax.random.normal(k_qkv, (C, 3 * C), jnp.float32) * 0.02,
        "qkv_b": jnp.zeros((3 * C,), jnp.float32),
        "kvg_w": jax.random.normal(k_kvg, (C, 2 * C), jnp.float32) * 0.02,
        "kvg_b": jnp.zeros((2 * C,), jnp.float32),
        "proj_w": jax.random.normal(k_pw, (C, C), jnp.float32) * 0.02,
        "proj_b": jax.random.normal(k_pb, (C,), jnp.float32) * 0.02,
    }
    rpb_table = jax.random.normal(
        k_rpb, ((2 * window_size - 1) ** 2, num_heads), jnp.float32) * 0.02
    rel_idx = jnp.asarray(
        get_relative_position_index(window_size, window_size).reshape(-1))
    rel_bias = rpb_table[rel_idx].reshape(ws2, ws2, num_heads)
    params["rel_pos_bias"] = jnp.transpose(rel_bias, (2, 0, 1))   # (heads, ws2, ws2)

    x = jax.random.normal(k_x, (B, N, C), jnp.float32)

    common = dict(num_heads=num_heads, num_tokens=num_tokens, window_size=window_size)
    # f32 path: small blocks so the multi-tile flash / multi-window-block paths run.
    pallas_f32 = jax.jit(lambda xx, pp: attention_forward(
        xx, H, W, pp, compute_dtype=jnp.float32, window_block=2, agg_block_k=32,
        **common))
    # bf16 path: production defaults (single key tile / large window block here).
    pallas_bf16 = jax.jit(lambda xx, pp: attention_forward(
        xx, H, W, pp, compute_dtype=jnp.bfloat16, **common))
    ref_fn = jax.jit(lambda xx, pp: attention_reference(xx, H, W, pp, **common))

    out_f32 = jax.block_until_ready(pallas_f32(x, params))
    out_bf16 = jax.block_until_ready(pallas_bf16(x, params))
    ref = jax.block_until_ready(ref_fn(x, params))

    assert out_f32.shape == (B, num_tokens + H * W, C)
    assert out_bf16.shape == (B, num_tokens + H * W, C)
    np.testing.assert_allclose(np.asarray(out_f32), np.asarray(ref),
                               rtol=5e-4, atol=5e-5)
    np.testing.assert_allclose(np.asarray(out_bf16), np.asarray(ref),
                               rtol=8e-2, atol=8e-3)
    print("KERNEL_OK")
</pallas_src>

<mosaic_0001>
module attributes {stable_mosaic.version = 11 : i64} {
  func.func @_linear_kernel(%arg0: i32, %arg1: memref<128x32xf32, #tpu.memory_space<vmem>>, %arg2: memref<32x96xf32, #tpu.memory_space<vmem>>, %arg3: memref<1x96xf32, #tpu.memory_space<vmem>>, %arg4: memref<128x96xf32, #tpu.memory_space<vmem>>) attributes {dimension_semantics = [#tpu.dimension_semantics<parallel>], iteration_bounds = array<i64: 1>, scalar_prefetch = 0 : i64, scratch_operands = 0 : i64, tpu.core_type = #tpu.core_type<tc>, window_params = [{transform_indices = @transform_0, window_bounds = array<i64: 128, 32>}, {pipeline_mode = #tpu.pipeline_mode<synchronous>, transform_indices = @transform_1, window_bounds = array<i64: 32, 96>}, {pipeline_mode = #tpu.pipeline_mode<synchronous>, transform_indices = @transform_2, window_bounds = array<i64: 1, 96>}, {transform_indices = @transform_3, window_bounds = array<i64: 128, 96>}]} {
    %c0 = arith.constant 0 : index
    %c0_0 = arith.constant 0 : index
    %0 = vector.load %arg1[%c0, %c0_0] : memref<128x32xf32, #tpu.memory_space<vmem>>, vector<128x32xf32>
    %c0_1 = arith.constant 0 : index
    %c0_2 = arith.constant 0 : index
    %1 = vector.load %arg2[%c0_1, %c0_2] : memref<32x96xf32, #tpu.memory_space<vmem>>, vector<32x96xf32>
    %cst = arith.constant dense<0.000000e+00> : vector<128x96xf32>
    %2 = tpu.matmul %0, %1, %cst {dimension_numbers = #tpu.dot_dimension_numbers<[1], [0], [0], [1], [0, 0, 1, 1], [], []>} : vector<128x32xf32>, vector<32x96xf32>, vector<128x96xf32> -> vector<128x96xf32>
    %c0_3 = arith.constant 0 : index
    %c0_4 = arith.constant 0 : index
    %3 = vector.load %arg3[%c0_3, %c0_4] : memref<1x96xf32, #tpu.memory_space<vmem>>, vector<1x96xf32>
    %4 = vector.broadcast %3 : vector<1x96xf32> to vector<128x96xf32>
    %5 = arith.addf %2, %4 : vector<128x96xf32>
    %c0_5 = arith.constant 0 : index
    %c0_6 = arith.constant 0 : index
    %6 = vector.load %arg4[%c0_5, %c0_6] : memref<128x96xf32, #tpu.memory_space<vmem>>, vector<128x96xf32>
    tpu.vector_store %arg4[%c0_5, %c0_6], %5 {strides = array<i32>} : memref<128x96xf32, #tpu.memory_space<vmem>>, vector<128x96xf32>,
    return
  }
  func.func @transform_0(%arg0: i32) -> (i32, i32) {
    %c0_i32 = arith.constant 0 : i32
    %c0_i32_0 = arith.constant 0 : i32
    return %arg0, %c0_i32 : i32, i32
  }
  func.func @transform_1(%arg0: i32) -> (i32, i32) {
    %c0_i32 = arith.constant 0 : i32
    %c0_i32_0 = arith.constant 0 : i32
    %c0_i32_1 = arith.constant 0 : i32
    return %c0_i32, %c0_i32_0 : i32, i32
  }
  func.func @transform_2(%arg0: i32) -> (i32, i32) {
    %c0_i32 = arith.constant 0 : i32
    %c0_i32_0 = arith.constant 0 : i32
    %c0_i32_1 = arith.constant 0 : i32
    return %c0_i32, %c0_i32_0 : i32, i32
  }
  func.func @transform_3(%arg0: i32) -> (i32, i32) {
    %c0_i32 = arith.constant 0 : i32
    %c0_i32_0 = arith.constant 0 : i32
    return %arg0, %c0_i32 : i32, i32
  }
}

module attributes {stable_mosaic.version = 11 : i64} {
  func.func @_agg_kernel(%arg0: i32, %arg1: i32, %arg2: memref<1x1x96xf32, #tpu.memory_space<vmem>>, %arg3: memref<1x32x96xf32, #tpu.memory_space<vmem>>, %arg4: memref<32x64xf32, #tpu.memory_space<vmem>>, %arg5: memref<1x64xf32, #tpu.memory_space<vmem>>, %arg6: memref<32x32xf32, #tpu.memory_space<vmem>>, %arg7: memref<1x32xf32, #tpu.memory_space<vmem>>, %arg8: memref<1x1x64xf32, #tpu.memory_space<vmem>>, %arg9: memref<1x1x32xf32, #tpu.memory_space<vmem>>, %arg10: memref<4x1x1xf32, #tpu.memory_space<vmem>>, %arg11: memref<4x1x1xf32, #tpu.memory_space<vmem>>, %arg12: memref<4x1x8xf32, #tpu.memory_space<vmem>>) attributes {dimension_semantics = [#tpu.dimension_semantics<parallel>, #tpu.dimension_semantics<arbitrary>], iteration_bounds = array<i64: 2, 2>, scalar_prefetch = 0 : i64, scratch_operands = 3 : i64, tpu.core_type = #tpu.core_type<tc>, window_params = [{transform_indices = @transform_0, window_bounds = array<i64: 1, 1, 96>}, {transform_indices = @transform_1, window_bounds = array<i64: 1, 32, 96>}, {pipeline_mode = #tpu.pipeline_mode<synchronous>, transform_indices = @transform_2, window_bounds = array<i64: 32, 64>}, {pipeline_mode = #tpu.pipeline_mode<synchronous>, transform_indices = @transform_3, window_bounds = array<i64: 1, 64>}, {pipeline_mode = #tpu.pipeline_mode<synchronous>, transform_indices = @transform_4, window_bounds = array<i64: 32, 32>}, {pipeline_mode = #tpu.pipeline_mode<synchronous>, transform_indices = @transform_5, window_bounds = array<i64: 1, 32>}, {transform_indices = @transform_6, window_bounds = array<i64: 1, 1, 64>}, {transform_indices = @transform_7, window_bounds = array<i64: 1, 1, 32>}]} {
    %c0_i32 = arith.constant 0 : i32
    %0 = arith.cmpi eq, %arg1, %c0_i32 : i32
    %1 = arith.extui %0 : i1 to i32
    %c0_i32_0 = arith.constant 0 : i32
    %2 = arith.cmpi ne, %1, %c0_i32_0 : i32
    scf.if %2 {
      %cst_99 = arith.constant 0xFF800000 : f32
      %172 = vector.broadcast %cst_99 : f32 to vector<4x1x1xf32>
      %c0_100 = arith.constant 0 : index
      %c0_101 = arith.constant 0 : index
      %c0_102 = arith.constant 0 : index
      %173 = vector.load %arg10[%c0_100, %c0_101, %c0_102] : memref<4x1x1xf32, #tpu.memory_space<vmem>>, vector<4x1x1xf32>
      tpu.vector_store %arg10[%c0_100, %c0_101, %c0_102], %172 {strides = array<i32>} : memref<4x1x1xf32, #tpu.memory_space<vmem>>, vector<4x1x1xf32>,
      %cst_103 = arith.constant 0.000000e+00 : f32
      %174 = vector.broadcast %cst_103 : f32 to vector<4x1x1xf32>
      %c0_104 = arith.constant 0 : index
      %c0_105 = arith.constant 0 : index
      %c0_106 = arith.constant 0 : index
      %175 = vector.load %arg11[%c0_104, %c0_105, %c0_106] : memref<4x1x1xf32, #tpu.memory_space<vmem>>, vector<4x1x1xf32>
      tpu.vector_store %arg11[%c0_104, %c0_105, %c0_106], %174 {strides = array<i32>} : memref<4x1x1xf32, #tpu.memory_space<vmem>>, vector<4x1x1xf32>,
      %cst_107 = arith.constant 0.000000e+00 : f32
      %176 = vector.broadcast %cst_107 : f32 to vector<4x1x8xf32>
      %c0_108 = arith.constant 0 : index
      %c0_109 = arith.constant 0 : index
      %c0_110 = arith.constant 0 : index
      %177 = vector.load %arg12[%c0_108, %c0_109, %c0_110] : memref<4x1x8xf32, #tpu.memory_space<vmem>>, vector<4x1x8xf32>
      tpu.vector_store %arg12[%c0_108, %c0_109, %c0_110], %176 {strides = array<i32>} : memref<4x1x8xf32, #tpu.memory_space<vmem>>, vector<4x1x8xf32>,
    } else {
    }
    %c0 = arith.constant 0 : index
    %c0_1 = arith.constant 0 : index
    %c0_2 = arith.constant 0 : index
    %3 = vector.load %arg2[%c0, %c0_1, %c0_2] : memref<1x1x96xf32, #tpu.memory_space<vmem>>, vector<1x1x96xf32>
    %4 = vector.shape_cast %3 : vector<1x1x96xf32> to vector<1x96xf32>
    %c0_3 = arith.constant 0 : index
    %c0_4 = arith.constant 0 : index
    %c0_5 = arith.constant 0 : index
    %5 = vector.load %arg3[%c0_3, %c0_4, %c0_5] : memref<1x32x96xf32, #tpu.memory_space<vmem>>, vector<1x32x96xf32>
    %6 = vector.shape_cast %5 : vector<1x32x96xf32> to vector<32x96xf32>
    %c32_i32 = arith.constant 32 : i32
    %7 = arith.muli %arg1, %c32_i32 : i32
    %8 = tpu.iota {dimensions = array<i32: 1>} : vector<1x32xi32>
    %9 = vector.broadcast %7 : i32 to vector<1x32xi32>
    %10 = arith.addi %9, %8 : vector<1x32xi32>
    %c64_i32 = arith.constant 64 : i32
    %11 = vector.broadcast %c64_i32 : i32 to vector<1x32xi32>
    %12 = arith.cmpi slt, %10, %11 : vector<1x32xi32>
    %13 = vector.extract_strided_slice %4 {offsets = [0, 0], sizes = [1, 8], strides = [1, 1]} : vector<1x96xf32> to vector<1x8xf32>
    %14 = vector.extract_strided_slice %6 {offsets = [0, 32], sizes = [32, 8], strides = [1, 1]} : vector<32x96xf32> to vector<32x8xf32>
    %15 = vector.extract_strided_slice %6 {offsets = [0, 64], sizes = [32, 8], strides = [1, 1]} : vector<32x96xf32> to vector<32x8xf32>
    "tpu.trace_start"() <{level = 10 : i32, message = "nd,kd->nk"}> : () -> ()
    %cst = arith.constant dense<0.000000e+00> : vector<1x32xf32>
    %16 = tpu.matmul %13, %14, %cst {dimension_numbers = #tpu.dot_dimension_numbers<[1], [1], [0], [0], [0, 0, 1, 0], [], []>} : vector<1x8xf32>, vector<32x8xf32>, vector<1x32xf32> -> vector<1x32xf32>
    "tpu.trace_stop"() : () -> ()
    %cst_6 = arith.constant 0.353553385 : f32
    %17 = vector.broadcast %cst_6 : f32 to vector<1x32xf32>
    %18 = arith.mulf %16, %17 : vector<1x32xf32>
    %cst_7 = arith.constant 0xFF800000 : f32
    %19 = vector.broadcast %cst_7 : f32 to vector<1x32xf32>
    %20 = arith.select %12, %18, %19 : vector<1x32xi1>, vector<1x32xf32>
    %c0_8 = arith.constant 0 : index
    %c0_9 = arith.constant 0 : index
    %c0_10 = arith.constant 0 : index
    %21 = vector.load %arg10[%c0_8, %c0_9, %c0_10] : memref<4x1x1xf32, #tpu.memory_space<vmem>>, vector<1x1x1xf32>
    %22 = vector.shape_cast %21 : vector<1x1x1xf32> to vector<1x1xf32>
    %cst_11 = arith.constant dense<0xFF800000> : vector<1xf32>
    %23 = vector.multi_reduction <maximumf>, %20, %cst_11 [1] : vector<1x32xf32> to vector<1xf32>
    %24 = vector.shape_cast %23 : vector<1xf32> to vector<1x1xf32>
    %25 = arith.maximumf %22, %24 : vector<1x1xf32>
    %26 = arith.subf %22, %25 : vector<1x1xf32>
    %27 = math.exp %26 : vector<1x1xf32>
    %28 = vector.broadcast %25 : vector<1x1xf32> to vector<1x32xf32>
    %29 = arith.subf %20, %28 : vector<1x32xf32>
    %30 = math.exp %29 : vector<1x32xf32>
    %c0_12 = arith.constant 0 : index
    %c0_13 = arith.constant 0 : index
    %c0_14 = arith.constant 0 : index
    %31 = vector.load %arg11[%c0_12, %c0_13, %c0_14] : memref<4x1x1xf32, #tpu.memory_space<vmem>>, vector<1x1x1xf32>
    %32 = vector.shape_cast %31 : vector<1x1x1xf32> to vector<1x1xf32>
    %33 = arith.mulf %27, %32 : vector<1x1xf32>
    %cst_15 = arith.constant dense<0.000000e+00> : vector<1xf32>
    %34 = vector.multi_reduction <add>, %30, %cst_15 [1] : vector<1x32xf32> to vector<1xf32>
    %35 = vector.shape_cast %34 : vector<1xf32> to vector<1x1xf32>
    %36 = arith.addf %33, %35 : vector<1x1xf32>
    %c0_16 = arith.constant 0 : index
    %c0_17 = arith.constant 0 : index
    %c0_18 = arith.constant 0 : index
    %37 = vector.load %arg11[%c0_16, %c0_17, %c0_18] : memref<4x1x1xf32, #tpu.memory_space<vmem>>, vector<1x1x1xf32>
    %38 = vector.shape_cast %37 : vector<1x1x1xf32> to vector<1x1xf32>
    %39 = vector.shape_cast %36 : vector<1x1xf32> to vector<1x1x1xf32>
    tpu.vector_store %arg11[%c0_16, %c0_17, %c0_18], %39 {strides = array<i32>} : memref<4x1x1xf32, #tpu.memory_space<vmem>>, vector<1x1x1xf32>,
    %c0_19 = arith.constant 0 : index
    %c0_20 = arith.constant 0 : index
    %c0_21 = arith.constant 0 : index
    %40 = vector.load %arg12[%c0_19, %c0_20, %c0_21] : memref<4x1x8xf32, #tpu.memory_space<vmem>>, vector<1x1x8xf32>
    %41 = vector.shape_cast %40 : vector<1x1x8xf32> to vector<1x8xf32>
    %42 = vector.broadcast %27 : vector<1x1xf32> to vector<1x8xf32>
    %43 = arith.mulf %42, %41 : vector<1x8xf32>
    "tpu.trace_start"() <{level = 10 : i32, message = "nk,kd->nd"}> : () -> ()
    %cst_22 = arith.constant dense<0.000000e+00> : vector<1x8xf32>
    %44 = tpu.matmul %30, %15, %cst_22 {dimension_numbers = #tpu.dot_dimension_numbers<[1], [0], [0], [1], [0, 0, 1, 1], [], []>} : vector<1x32xf32>, vector<32x8xf32>, vector<1x8xf32> -> vector<1x8xf32>
    "tpu.trace_stop"() : () -> ()
    %45 = arith.addf %43, %44 : vector<1x8xf32>
    %c0_23 = arith.constant 0 : index
    %c0_24 = arith.constant 0 : index
    %c0_25 = arith.constant 0 : index
    %46 = vector.load %arg12[%c0_23, %c0_24, %c0_25] : memref<4x1x8xf32, #tpu.memory_space<vmem>>, vector<1x1x8xf32>
    %47 = vector.shape_cast %46 : vector<1x1x8xf32> to vector<1x8xf32>
    %48 = vector.shape_cast %45 : vector<1x8xf32> to vector<1x1x8xf32>
    tpu.vector_store %arg12[%c0_23, %c0_24, %c0_25], %48 {strides = array<i32>} : memref<4x1x8xf32, #tpu.memory_space<vmem>>, vector<1x1x8xf32>,
    %c0_26 = arith.constant 0 : index
    %c0_27 = arith.constant 0 : index
    %c0_28 = arith.constant 0 : index
    %49 = vector.load %arg10[%c0_26, %c0_27, %c0_28] : memref<4x1x1xf32, #tpu.memory_space<vmem>>, vector<1x1x1xf32>
    %50 = vector.shape_cast %49 : vector<1x1x1xf32> to vector<1x1xf32>
    %51 = vector.shape_cast %25 : vector<1x1xf32> to vector<1x1x1xf32>
    tpu.vector_store %arg10[%c0_26, %c0_27, %c0_28], %51 {strides = array<i32>} : memref<4x1x1xf32, #tpu.memory_space<vmem>>, vector<1x1x1xf32>,
    %52 = vector.extract_strided_slice %4 {offsets = [0, 8], sizes = [1, 8], strides = [1, 1]} : vector<1x96xf32> to vector<1x8xf32>
    %53 = vector.extract_strided_slice %6 {offsets = [0, 40], sizes = [32, 8], strides = [1, 1]} : vector<32x96xf32> to vector<32x8xf32>
    %54 = vector.extract_strided_slice %6 {offsets = [0, 72], sizes = [32, 8], strides = [1, 1]} : vector<32x96xf32> to vector<32x8xf32>
    "tpu.trace_start"() <{level = 10 : i32, message = "nd,kd->nk"}> : () -> ()
    %cst_29 = arith.constant dense<0.000000e+00> : vector<1x32xf32>
    %55 = tpu.matmul %52, %53, %cst_29 {dimension_numbers = #tpu.dot_dimension_numbers<[1], [1], [0], [0], [0, 0, 1, 0], [], []>} : vector<1x8xf32>, vector<32x8xf32>, vector<1x32xf32> -> vector<1x32xf32>
    "tpu.trace_stop"() : () -> ()
    %cst_30 = arith.constant 0.353553385 : f32
    %56 = vector.broadcast %cst_30 : f32 to vector<1x32xf32>
    %57 = arith.mulf %55, %56 : vector<1x32xf32>
    %cst_31 = arith.constant 0xFF800000 : f32
    %58 = vector.broadcast %cst_31 : f32 to vector<1x32xf32>
    %59 = arith.select %12, %57, %58 : vector<1x32xi1>, vector<1x32xf32>
    %c1 = arith.constant 1 : index
    %c0_32 = arith.constant 0 : index
    %c0_33 = arith.constant 0 : index
    %60 = vector.load %arg10[%c1, %c0_32, %c0_33] : memref<4x1x1xf32, #tpu.memory_space<vmem>>, vector<1x1x1xf32>
    %61 = vector.shape_cast %60 : vector<1x1x1xf32> to vector<1x1xf32>
    %cst_34 = arith.constant dense<0xFF800000> : vector<1xf32>
    %62 = vector.multi_reduction <maximumf>, %59, %cst_34 [1] : vector<1x32xf32> to vector<1xf32>
    %63 = vector.shape_cast %62 : vector<1xf32> to vector<1x1xf32>
    %64 = arith.maximumf %61, %63 : vector<1x1xf32>
    %65 = arith.subf %61, %64 : vector<1x1xf32>
    %66 = math.exp %65 : vector<1x1xf32>
    %67 = vector.broadcast %64 : vector<1x1xf32> to vector<1x32xf32>
    %68 = arith.subf %59, %67 : vector<1x32xf32>
    %69 = math.exp %68 : vector<1x32xf32>
    %c1_35 = arith.constant 1 : index
    %c0_36 = arith.constant 0 : index
    %c0_37 = arith.constant 0 : index
    %70 = vector.load %arg11[%c1_35, %c0_36, %c0_37] : memref<4x1x1xf32, #tpu.memory_space<vmem>>, vector<1x1x1xf32>
    %71 = vector.shape_cast %70 : vector<1x1x1xf32> to vector<1x1xf32>
    %72 = arith.mulf %66, %71 : vector<1x1xf32>
    %cst_38 = arith.constant dense<0.000000e+00> : vector<1xf32>
    %73 = vector.multi_reduction <add>, %69, %cst_38 [1] : vector<1x32xf32> to vector<1xf32>
    %74 = vector.shape_cast %73 : vector<1xf32> to vector<1x1xf32>
    %75 = arith.addf %72, %74 : vector<1x1xf32>
    %c1_39 = arith.constant 1 : index
    %c0_40 = arith.constant 0 : index
    %c0_41 = arith.constant 0 : index
    %76 = vector.load %arg11[%c1_39, %c0_40, %c0_41] : memref<4x1x1xf32, #tpu.memory_space<vmem>>, vector<1x1x1xf32>
    %77 = vector.shape_cast %76 : vector<1x1x1xf32> to vector<1x1xf32>
    %78 = vector.shape_cast %75 : vector<1x1xf32> to vector<1x1x1xf32>
    tpu.vector_store %arg11[%c1_39, %c0_40, %c0_41], %78 {strides = array<i32>} : memref<4x1x1xf32, #tpu.memory_space<vmem>>, vector<1x1x1xf32>,
    %c1_42 = arith.constant 1 : index
    %c0_43 = arith.constant 0 : index
    %c0_44 = arith.constant 0 : index
    %79 = vector.load %arg12[%c1_42, %c0_43, %c0_44] : memref<4x1x8xf32, #tpu.memory_space<vmem>>, vector<1x1x8xf32>
    %80 = vector.shape_cast %79 : vector<1x1x8xf32> to vector<1x8xf32>
    %81 = vector.broadcast %66 : vector<1x1xf32> to vector<1x8xf32>
    %82 = arith.mulf %81, %80 : vector<1x8xf32>
    "tpu.trace_start"() <{level = 10 : i32, message = "nk,kd->nd"}> : () -> ()
    %cst_45 = arith.constant dense<0.000000e+00> : vector<1x8xf32>
    %83 = tpu.matmul %69, %54, %cst_45 {dimension_numbers = #tpu.dot_dimension_numbers<[1], [0], [0], [1], [0, 0, 1, 1], [], []>} : vector<1x32xf32>, vector<32x8xf32>, vector<1x8xf32> -> vector<1x8xf32>
    "tpu.trace_stop"() : () -> ()
    %84 = arith.addf %82, %83 : vector<1x8xf32>
    %c1_46 = arith.constant 1 : index
    %c0_47 = arith.constant 0 : index
    %c0_48 = arith.constant 0 : index
    %85 = vector.load %arg12[%c1_46, %c0_47, %c0_48] : memref<4x1x8xf32, #tpu.memory_space<vmem>>, vector<1x1x8xf32>
    %86 = vector.shape_cast %85 : vector<1x1x8xf32> to vector<1x8xf32>
    %87 = vector.shape_cast %84 : vector<1x8xf32> to vector<1x1x8xf32>
    tpu.vector_store %arg12[%c1_46, %c0_47, %c0_48], %87 {strides = array<i32>} : memref<4x1x8xf32, #tpu.memory_space<vmem>>, vector<1x1x8xf32>,
    %c1_49 = arith.constant 1 : index
    %c0_50 = arith.constant 0 : index
    %c0_51 = arith.constant 0 : index
    %88 = vector.load %arg10[%c1_49, %c0_50, %c0_51] : memref<4x1x1xf32, #tpu.memory_space<vmem>>, vector<1x1x1xf32>
    %89 = vector.shape_cast %88 : vector<1x1x1xf32> to vector<1x1xf32>
    %90 = vector.shape_cast %64 : vector<1x1xf32> to vector<1x1x1xf32>
    tpu.vector_store %arg10[%c1_49, %c0_50, %c0_51], %90 {strides = array<i32>} : memref<4x1x1xf32, #tpu.memory_space<vmem>>, vector<1x1x1xf32>,
    %91 = vector.extract_strided_slice %4 {offsets = [0, 16], sizes = [1, 8], strides = [1, 1]} : vector<1x96xf32> to vector<1x8xf32>
    %92 = vector.extract_strided_slice %6 {offsets = [0, 48], sizes = [32, 8], strides = [1, 1]} : vector<32x96xf32> to vector<32x8xf32>
    %93 = vector.extract_strided_slice %6 {offsets = [0, 80], sizes = [32, 8], strides = [1, 1]} : vector<32x96xf32> to vector<32x8xf32>
    "tpu.trace_start"() <{level = 10 : i32, message = "nd,kd->nk"}> : () -> ()
    %cst_52 = arith.constant dense<0.000000e+00> : vector<1x32xf32>
    %94 = tpu.matmul %91, %92, %cst_52 {dimension_numbers = #tpu.dot_dimension_numbers<[1], [1], [0], [0], [0, 0, 1, 0], [], []>} : vector<1x8xf32>, vector<32x8xf32>, vector<1x32xf32> -> vector<1x32xf32>
    "tpu.trace_stop"() : () -> ()
    %cst_53 = arith.constant 0.353553385 : f32
    %95 = vector.broadcast %cst_53 : f32 to vector<1x32xf32>
    %96 = arith.mulf %94, %95 : vector<1x32xf32>
    %cst_54 = arith.constant 0xFF800000 : f32
    %97 = vector.broadcast %cst_54 : f32 to vector<1x32xf32>
    %98 = arith.select %12, %96, %97 : vector<1x32xi1>, vector<1x32xf32>
    %c2 = arith.constant 2 : index
    %c0_55 = arith.constant 0 : index
    %c0_56 = arith.constant 0 : index
    %99 = vector.load %arg10[%c2, %c0_55, %c0_56] : memref<4x1x1xf32, #tpu.memory_space<vmem>>, vector<1x1x1xf32>
    %100 = vector.shape_cast %99 : vector<1x1x1xf32> to vector<1x1xf32>
    %cst_57 = arith.constant dense<0xFF800000> : vector<1xf32>
    %101 = vector.multi_reduction <maximumf>, %98, %cst_57 [1] : vector<1x32xf32> to vector<1xf32>
    %102 = vector.shape_cast %101 : vector<1xf32> to vector<1x1xf32>
    %103 = arith.maximumf %100, %102 : vector<1x1xf32>
    %104 = arith.subf %100, %103 : vector<1x1xf32>
    %105 = math.exp %104 : vector<1x1xf32>
    %106 = vector.broadcast %103 : vector<1x1xf32> to vector<1x32xf32>
    %107 = arith.subf %98, %106 : vector<1x32xf32>
    %108 = math.exp %107 : vector<1x32xf32>
    %c2_58 = arith.constant 2 : index
    %c0_59 = arith.constant 0 : index
    %c0_60 = arith.constant 0 : index
    %109 = vector.load %arg11[%c2_58, %c0_59, %c0_60] : memref<4x1x1xf32, #tpu.memory_space<vmem>>, vector<1x1x1xf32>
    %110 = vector.shape_cast %109 : vector<1x1x1xf32> to vector<1x1xf32>
    %111 = arith.mulf %105, %110 : vector<1x1xf32>
    %cst_61 = arith.constant dense<0.000000e+00> : vector<1xf32>
    %112 = vector.multi_reduction <add>, %108, %cst_61 [1] : vector<1x32xf32> to vector<1xf32>
    %113 = vector.shape_cast %112 : vector<1xf32> to vector<1x1xf32>
    %114 = arith.addf %111, %113 : vector<1x1xf32>
    %c2_62 = arith.constant 2 : index
    %c0_63 = arith.constant 0 : index
    %c0_64 = arith.constant 0 : index
    %115 = vector.load %arg11[%c2_62, %c0_63, %c0_64] : memref<4x1x1xf32, #tpu.memory_space<vmem>>, vector<1x1x1xf32>
    %116 = vector.shape_cast %115 : vector<1x1x1xf32> to vector<1x1xf32>
    %117 = vector.shape_cast %114 : vector<1x1xf32> to vector<1x1x1xf32>
    tpu.vector_store %arg11[%c2_62, %c0_63, %c0_64], %117 {strides = array<i32>} : memref<4x1x1xf32, #tpu.memory_space<vmem>>, vector<1x1x1xf32>,
    %c2_65 = arith.constant 2 : index
    %c0_66 = arith.constant 0 : index
    %c0_67 = arith.constant 0 : index
    %118 = vector.load %arg12[%c2_65, %c0_66, %c0_67] : memref<4x1x8xf32, #tpu.memory_space<vmem>>, vector<1x1x8xf32>
    %119 = vector.shape_cast %118 : vector<1x1x8xf32> to vector<1x8xf32>
    %120 = vector.broadcast %105 : vector<1x1xf32> to vector<1x8xf32>
    %121 = arith.mulf %120, %119 : vector<1x8xf32>
    "tpu.trace_start"() <{level = 10 : i32, message = "nk,kd->nd"}> : () -> ()
    %cst_68 = arith.constant dense<0.000000e+00> : vector<1x8xf32>
    %122 = tpu.matmul %108, %93, %cst_68 {dimension_numbers = #tpu.dot_dimension_numbers<[1], [0], [0], [1], [0, 0, 1, 1], [], []>} : vector<1x32xf32>, vector<32x8xf32>, vector<1x8xf32> -> vector<1x8xf32>
    "tpu.trace_stop"() : () -> ()
    %123 = arith.addf %121, %122 : vector<1x8xf32>
    %c2_69 = arith.constant 2 : index
    %c0_70 = arith.constant 0 : index
    %c0_71 = arith.constant 0 : index
    %124 = vector.load %arg12[%c2_69, %c0_70, %c0_71] : memref<4x1x8xf32, #tpu.memory_space<vmem>>, vector<1x1x8xf32>
    %125 = vector.shape_cast %124 : vector<1x1x8xf32> to vector<1x8xf32>
    %126 = vector.shape_cast %123 : vector<1x8xf32> to vector<1x1x8xf32>
    tpu.vector_store %arg12[%c2_69, %c0_70, %c0_71], %126 {strides = array<i32>} : memref<4x1x8xf32, #tpu.memory_space<vmem>>, vector<1x1x8xf32>,
    %c2_72 = arith.constant 2 : index
    %c0_73 = arith.constant 0 : index
    %c0_74 = arith.constant 0 : index
    %127 = vector.load %arg10[%c2_72, %c0_73, %c0_74] : memref<4x1x1xf32, #tpu.memory_space<vmem>>, vector<1x1x1xf32>
    %128 = vector.shape_cast %127 : vector<1x1x1xf32> to vector<1x1xf32>
    %129 = vector.shape_cast %103 : vector<1x1xf32> to vector<1x1x1xf32>
    tpu.vector_store %arg10[%c2_72, %c0_73, %c0_74], %129 {strides = array<i32>} : memref<4x1x1xf32, #tpu.memory_space<vmem>>, vector<1x1x1xf32>,
    %130 = vector.extract_strided_slice %4 {offsets = [0, 24], sizes = [1, 8], strides = [1, 1]} : vector<1x96xf32> to vector<1x8xf32>
    %131 = vector.extract_strided_slice %6 {offsets = [0, 56], sizes = [32, 8], strides = [1, 1]} : vector<32x96xf32> to vector<32x8xf32>
    %132 = vector.extract_strided_slice %6 {offsets = [0, 88], sizes = [32, 8], strides = [1, 1]} : vector<32x96xf32> to vector<32x8xf32>
    "tpu.trace_start"() <{level = 10 : i32, message = "nd,kd->nk"}> : () -> ()
    %cst_75 = arith.constant dense<0.000000e+00> : vector<1x32xf32>
    %133 = tpu.matmul %130, %131, %cst_75 {dimension_numbers = #tpu.dot_dimension_numbers<[1], [1], [0], [0], [0, 0, 1, 0], [], []>} : vector<1x8xf32>, vector<32x8xf32>, vector<1x32xf32> -> vector<1x32xf32>
    "tpu.trace_stop"() : () -> ()
    %cst_76 = arith.constant 0.353553385 : f32
    %134 = vector.broadcast %cst_76 : f32 to vector<1x32xf32>
    %135 = arith.mulf %133, %134 : vector<1x32xf32>
    %cst_77 = arith.constant 0xFF800000 : f32
    %136 = vector.broadcast %cst_77 : f32 to vector<1x32xf32>
    %137 = arith.select %12, %135, %136 : vector<1x32xi1>, vector<1x32xf32>
    %c3 = arith.constant 3 : index
    %c0_78 = arith.constant 0 : index
    %c0_79 = arith.constant 0 : index
    %138 = vector.load %arg10[%c3, %c0_78, %c0_79] : memref<4x1x1xf32, #tpu.memory_space<vmem>>, vector<1x1x1xf32>
    %139 = vector.shape_cast %138 : vector<1x1x1xf32> to vector<1x1xf32>
    %cst_80 = arith.constant dense<0xFF800000> : vector<1xf32>
    %140 = vector.multi_reduction <maximumf>, %137, %cst_80 [1] : vector<1x32xf32> to vector<1xf32>
    %141 = vector.shape_cast %140 : vector<1xf32> to vector<1x1xf32>
    %142 = arith.maximumf %139, %141 : vector<1x1xf32>
    %143 = arith.subf %139, %142 : vector<1x1xf32>
    %144 = math.exp %143 : vector<1x1xf32>
    %145 = vector.broadcast %142 : vector<1x1xf32> to vector<1x32xf32>
    %146 = arith.subf %137, %145 : vector<1x32xf32>
    %147 = math.exp %146 : vector<1x32xf32>
    %c3_81 = arith.constant 3 : index
    %c0_82 = arith.constant 0 : index
    %c0_83 = arith.constant 0 : index
    %148 = vector.load %arg11[%c3_81, %c0_82, %c0_83] : memref<4x1x1xf32, #tpu.memory_space<vmem>>, vector<1x1x1xf32>
    %149 = vector.shape_cast %148 : vector<1x1x1xf32> to vector<1x1xf32>
    %150 = arith.mulf %144, %149 : vector<1x1xf32>
    %cst_84 = arith.constant dense<0.000000e+00> : vector<1xf32>
    %151 = vector.multi_reduction <add>, %147, %cst_84 [1] : vector<1x32xf32> to vector<1xf32>
    %152 = vector.shape_cast %151 : vector<1xf32> to vector<1x1xf32>
    %153 = arith.addf %150, %152 : vector<1x1xf32>
    %c3_85 = arith.constant 3 : index
    %c0_86 = arith.constant 0 : index
    %c0_87 = arith.constant 0 : index
    %154 = vector.load %arg11[%c3_85, %c0_86, %c0_87] : memref<4x1x1xf32, #tpu.memory_space<vmem>>, vector<1x1x1xf32>
    %155 = vector.shape_cast %154 : vector<1x1x1xf32> to vector<1x1xf32>
    %156 = vector.shape_cast %153 : vector<1x1xf32> to vector<1x1x1xf32>
    tpu.vector_store %arg11[%c3_85, %c0_86, %c0_87], %156 {strides = array<i32>} : memref<4x1x1xf32, #tpu.memory_space<vmem>>, vector<1x1x1xf32>,
    %c3_88 = arith.constant 3 : index
    %c0_89 = arith.constant 0 : index
    %c0_90 = arith.constant 0 : index
    %157 = vector.load %arg12[%c3_88, %c0_89, %c0_90] : memref<4x1x8xf32, #tpu.memory_space<vmem>>, vector<1x1x8xf32>
    %158 = vector.shape_cast %157 : vector<1x1x8xf32> to vector<1x8xf32>
    %159 = vector.broadcast %144 : vector<1x1xf32> to vector<1x8xf32>
    %160 = arith.mulf %159, %158 : vector<1x8xf32>
    "tpu.trace_start"() <{level = 10 : i32, message = "nk,kd->nd"}> : () -> ()
    %cst_91 = arith.constant dense<0.000000e+00> : vector<1x8xf32>
    %161 = tpu.matmul %147, %132, %cst_91 {dimension_numbers = #tpu.dot_dimension_numbers<[1], [0], [0], [1], [0, 0, 1, 1], [], []>} : vector<1x32xf32>, vector<32x8xf32>, vector<1x8xf32> -> vector<1x8xf32>
    "tpu.trace_stop"() : () -> ()
    %162 = arith.addf %160, %161 : vector<1x8xf32>
    %c3_92 = arith.constant 3 : index
    %c0_93 = arith.constant 0 : index
    %c0_94 = arith.constant 0 : index
    %163 = vector.load %arg12[%c3_92, %c0_93, %c0_94] : memref<4x1x8xf32, #tpu.memory_space<vmem>>, vector<1x1x8xf32>
    %164 = vector.shape_cast %163 : vector<1x1x8xf32> to vector<1x8xf32>
    %165 = vector.shape_cast %162 : vector<1x8xf32> to vector<1x1x8xf32>
    tpu.vector_store %arg12[%c3_92, %c0_93, %c0_94], %165 {strides = array<i32>} : memref<4x1x8xf32, #tpu.memory_space<vmem>>, vector<1x1x8xf32>,
    %c3_95 = arith.constant 3 : index
    %c0_96 = arith.constant 0 : index
    %c0_97 = arith.constant 0 : index
    %166 = vector.load %arg10[%c3_95, %c0_96, %c0_97] : memref<4x1x1xf32, #tpu.memory_space<vmem>>, vector<1x1x1xf32>
    %167 = vector.shape_cast %166 : vector<1x1x1xf32> to vector<1x1xf32>
    %168 = vector.shape_cast %142 : vector<1x1xf32> to vector<1x1x1xf32>
    tpu.vector_store %arg10[%c3_95, %c0_96, %c0_97], %168 {strides = array<i32>} : memref<4x1x1xf32, #tpu.memory_space<vmem>>, vector<1x1x1xf32>,
    %c1_i32 = arith.constant 1 : i32
    %169 = arith.cmpi eq, %arg1, %c1_i32 : i32
    %170 = arith.extui %169 : i1 to i32
    %c0_i32_98 = arith.constant 0 : i32
    %171 = arith.cmpi ne, %170, %c0_i32_98 : i32
    scf.if %171 {
      %cst_99 = arith.constant 0.000000e+00 : f32
      %172 = vector.broadcast %cst_99 : f32 to vector<1x64xf32>
      %cst_100 = arith.constant 0.000000e+00 : f32
      %173 = vector.broadcast %cst_100 : f32 to vector<1x32xf32>
      %c0_101 = arith.constant 0 : index
      %c0_102 = arith.constant 0 : index
      %c0_103 = arith.constant 0 : index
      %174 = vector.load %arg12[%c0_101, %c0_102, %c0_103] : memref<4x1x8xf32, #tpu.memory_space<vmem>>, vector<1x1x8xf32>
      %175 = vector.shape_cast %174 : vector<1x1x8xf32> to vector<1x8xf32>
      %c0_104 = arith.constant 0 : index
      %c0_105 = arith.constant 0 : index
      %c0_106 = arith.constant 0 : index
      %176 = vector.load %arg11[%c0_104, %c0_105, %c0_106] : memref<4x1x1xf32, #tpu.memory_space<vmem>>, vector<1x1x1xf32>
      %177 = vector.shape_cast %176 : vector<1x1x1xf32> to vector<1x1xf32>
      %178 = vector.broadcast %177 : vector<1x1xf32> to vector<1x8xf32>
      %179 = arith.divf %175, %178 : vector<1x8xf32>
      %c0_107 = arith.constant 0 : index
      %c0_108 = arith.constant 0 : index
      %180 = vector.load %arg4[%c0_107, %c0_108] : memref<32x64xf32, #tpu.memory_space<vmem>>, vector<8x64xf32>
      %cst_109 = arith.constant dense<0.000000e+00> : vector<1x64xf32>
      %181 = tpu.matmul %179, %180, %cst_109 {dimension_numbers = #tpu.dot_dimension_numbers<[1], [0], [0], [1], [0, 0, 1, 1], [], []>} : vector<1x8xf32>, vector<8x64xf32>, vector<1x64xf32> -> vector<1x64xf32>
      %182 = arith.addf %172, %181 : vector<1x64xf32>
      %c0_110 = arith.constant 0 : index
      %c0_111 = arith.constant 0 : index
      %183 = vector.load %arg6[%c0_110, %c0_111] : memref<32x32xf32, #tpu.memory_space<vmem>>, vector<8x32xf32>
      %cst_112 = arith.constant dense<0.000000e+00> : vector<1x32xf32>
      %184 = tpu.matmul %179, %183, %cst_112 {dimension_numbers = #tpu.dot_dimension_numbers<[1], [0], [0], [1], [0, 0, 1, 1], [], []>} : vector<1x8xf32>, vector<8x32xf32>, vector<1x32xf32> -> vector<1x32xf32>
      %185 = arith.addf %173, %184 : vector<1x32xf32>
      %c1_113 = arith.constant 1 : index
      %c0_114 = arith.constant 0 : index
      %c0_115 = arith.constant 0 : index
      %186 = vector.load %arg12[%c1_113, %c0_114, %c0_115] : memref<4x1x8xf32, #tpu.memory_space<vmem>>, vector<1x1x8xf32>
      %187 = vector.shape_cast %186 : vector<1x1x8xf32> to vector<1x8xf32>
      %c1_116 = arith.constant 1 : index
      %c0_117 = arith.constant 0 : index
      %c0_118 = arith.constant 0 : index
      %188 = vector.load %arg11[%c1_116, %c0_117, %c0_118] : memref<4x1x1xf32, #tpu.memory_space<vmem>>, vector<1x1x1xf32>
      %189 = vector.shape_cast %188 : vector<1x1x1xf32> to vector<1x1xf32>
      %190 = vector.broadcast %189 : vector<1x1xf32> to vector<1x8xf32>
      %191 = arith.divf %187, %190 : vector<1x8xf32>
      %c8 = arith.constant 8 : index
      %c0_119 = arith.constant 0 : index
      %192 = vector.load %arg4[%c8, %c0_119] : memref<32x64xf32, #tpu.memory_space<vmem>>, vector<8x64xf32>
      %cst_120 = arith.constant dense<0.000000e+00> : vector<1x64xf32>
      %193 = tpu.matmul %191, %192, %cst_120 {dimension_numbers = #tpu.dot_dimension_numbers<[1], [0], [0], [1], [0, 0, 1, 1], [], []>} : vector<1x8xf32>, vector<8x64xf32>, vector<1x64xf32> -> vector<1x64xf32>
      %194 = arith.addf %182, %193 : vector<1x64xf32>
      %c8_121 = arith.constant 8 : index
      %c0_122 = arith.constant 0 : index
      %195 = vector.load %arg6[%c8_121, %c0_122] : memref<32x32xf32, #tpu.memory_space<vmem>>, vector<8x32xf32>
      %cst_123 = arith.constant dense<0.000000e+00> : vector<1x32xf32>
      %196 = tpu.matmul %191, %195, %cst_123 {dimension_numbers = #tpu.dot_dimension_numbers<[1], [0], [0], [1], [0, 0, 1, 1], [], []>} : vector<1x8xf32>, vector<8x32xf32>, vector<1x32xf32> -> vector<1x32xf32>
      %197 = arith.addf %185, %196 : vector<1x32xf32>
      %c2_124 = arith.constant 2 : index
      %c0_125 = arith.constant 0 : index
      %c0_126 = arith.constant 0 : index
      %198 = vector.load %arg12[%c2_124, %c0_125, %c0_126] : memref<4x1x8xf32, #tpu.memory_space<vmem>>, vector<1x1x8xf32>
      %199 = vector.shape_cast %198 : vector<1x1x8xf32> to vector<1x8xf32>
      %c2_127 = arith.constant 2 : index
      %c0_128 = arith.constant 0 : index
      %c0_129 = arith.constant 0 : index
      %200 = vector.load %arg11[%c2_127, %c0_128, %c0_129] : memref<4x1x1xf32, #tpu.memory_space<vmem>>, vector<1x1x1xf32>
      %201 = vector.shape_cast %200 : vector<1x1x1xf32> to vector<1x1xf32>
      %202 = vector.broadcast %201 : vector<1x1xf32> to vector<1x8xf32>
      %203 = arith.divf %199, %202 : vector<1x8xf32>
      %c16 = arith.constant 16 : index
      %c0_130 = arith.constant 0 : index
      %204 = vector.load %arg4[%c16, %c0_130] : memref<32x64xf32, #tpu.memory_space<vmem>>, vector<8x64xf32>
      %cst_131 = arith.constant dense<0.000000e+00> : vector<1x64xf32>
      %205 = tpu.matmul %203, %204, %cst_131 {dimension_numbers = #tpu.dot_dimension_numbers<[1], [0], [0], [1], [0, 0, 1, 1], [], []>} : vector<1x8xf32>, vector<8x64xf32>, vector<1x64xf32> -> vector<1x64xf32>
      %206 = arith.addf %194, %205 : vector<1x64xf32>
      %c16_132 = arith.constant 16 : index
      %c0_133 = arith.constant 0 : index
      %207 = vector.load %arg6[%c16_132, %c0_133] : memref<32x32xf32, #tpu.memory_space<vmem>>, vector<8x32xf32>
      %cst_134 = arith.constant dense<0.000000e+00> : vector<1x32xf32>
      %208 = tpu.matmul %203, %207, %cst_134 {dimension_numbers = #tpu.dot_dimension_numbers<[1], [0], [0], [1], [0, 0, 1, 1], [], []>} : vector<1x8xf32>, vector<8x32xf32>, vector<1x32xf32> -> vector<1x32xf32>
      %209 = arith.addf %197, %208 : vector<1x32xf32>
      %c3_135 = arith.constant 3 : index
      %c0_136 = arith.constant 0 : index
      %c0_137 = arith.constant 0 : index
      %210 = vector.load %arg12[%c3_135, %c0_136, %c0_137] : memref<4x1x8xf32, #tpu.memory_space<vmem>>, vector<1x1x8xf32>
      %211 = vector.shape_cast %210 : vector<1x1x8xf32> to vector<1x8xf32>
      %c3_138 = arith.constant 3 : index
      %c0_139 = arith.constant 0 : index
      %c0_140 = arith.constant 0 : index
      %212 = vector.load %arg11[%c3_138, %c0_139, %c0_140] : memref<4x1x1xf32, #tpu.memory_space<vmem>>, vector<1x1x1xf32>
      %213 = vector.shape_cast %212 : vector<1x1x1xf32> to vector<1x1xf32>
      %214 = vector.broadcast %213 : vector<1x1xf32> to vector<1x8xf32>
      %215 = arith.divf %211, %214 : vector<1x8xf32>
      %c24 = arith.constant 24 : index
      %c0_141 = arith.constant 0 : index
      %216 = vector.load %arg4[%c24, %c0_141] : memref<32x64xf32, #tpu.memory_space<vmem>>, vector<8x64xf32>
      %cst_142 = arith.constant dense<0.000000e+00> : vector<1x64xf32>
      %217 = tpu.matmul %215, %216, %cst_142 {dimension_numbers = #tpu.dot_dimension_numbers<[1], [0], [0], [1], [0, 0, 1, 1], [], []>} : vector<1x8xf32>, vector<8x64xf32>, vector<1x64xf32> -> vector<1x64xf32>
      %218 = arith.addf %206, %217 : vector<1x64xf32>
      %c24_143 = arith.constant 24 : index
      %c0_144 = arith.constant 0 : index
      %219 = vector.load %arg6[%c24_143, %c0_144] : memref<32x32xf32, #tpu.memory_space<vmem>>, vector<8x32xf32>
      %cst_145 = arith.constant dense<0.000000e+00> : vector<1x32xf32>
      %220 = tpu.matmul %215, %219, %cst_145 {dimension_numbers = #tpu.dot_dimension_numbers<[1], [0], [0], [1], [0, 0, 1, 1], [], []>} : vector<1x8xf32>, vector<8x32xf32>, vector<1x32xf32> -> vector<1x32xf32>
      %221 = arith.addf %209, %220 : vector<1x32xf32>
      %c0_146 = arith.constant 0 : index
      %c0_147 = arith.constant 0 : index
      %222 = vector.load %arg5[%c0_146, %c0_147] : memref<1x64xf32, #tpu.memory_space<vmem>>, vector<1x64xf32>
      %223 = arith.addf %218, %222 : vector<1x64xf32>
      %c0_148 = arith.constant 0 : index
      %c0_149 = arith.constant 0 : index
      %c0_150 = arith.constant 0 : index
      %224 = vector.load %arg8[%c0_148, %c0_149, %c0_150] : memref<1x1x64xf32, #tpu.memory_space<vmem>>, vector<1x1x64xf32>
      %225 = vector.shape_cast %224 : vector<1x1x64xf32> to vector<1x64xf32>
      %226 = vector.shape_cast %223 : vector<1x64xf32> to vector<1x1x64xf32>
      tpu.vector_store %arg8[%c0_148, %c0_149, %c0_150], %226 {strides = array<i32>} : memref<1x1x64xf32, #tpu.memory_space<vmem>>, vector<1x1x64xf32>,
      %c0_151 = arith.constant 0 : index
      %c0_152 = arith.constant 0 : index
      %227 = vector.load %arg7[%c0_151, %c0_152] : memref<1x32xf32, #tpu.memory_space<vmem>>, vector<1x32xf32>
      %228 = arith.addf %221, %227 : vector<1x32xf32>
      %c0_153 = arith.constant 0 : index
      %c0_154 = arith.constant 0 : index
      %c0_155 = arith.constant 0 : index
      %229 = vector.load %arg9[%c0_153, %c0_154, %c0_155] : memref<1x1x32xf32, #tpu.memory_space<vmem>>, vector<1x1x32xf32>
      %230 = vector.shape_cast %229 : vector<1x1x32xf32> to vector<1x32xf32>
      %231 = vector.shape_cast %228 : vector<1x32xf32> to vector<1x1x32xf32>
      tpu.vector_store %arg9[%c0_153, %c0_154, %c0_155], %231 {strides = array<i32>} : memref<1x1x32xf32, #tpu.memory_space<vmem>>, vector<1x1x32xf32>,
    } else {
    }
    return
  }
  func.func @transform_0(%arg0: i32, %arg1: i32) -> (i32, i32, i32) {
    %c0_i32 = arith.constant 0 : i32
    %c0_i32_0 = arith.constant 0 : i32
    %c0_i32_1 = arith.constant 0 : i32
    return %arg0, %c0_i32, %c0_i32_0 : i32, i32, i32
  }
  func.func @transform_1(%arg0: i32, %arg1: i32) -> (i32, i32, i32) {
    %c0_i32 = arith.constant 0 : i32
    %c0_i32_0 = arith.constant 0 : i32
    return %arg0, %arg1, %c0_i32 : i32, i32, i32
  }
  func.func @transform_2(%arg0: i32, %arg1: i32) -> (i32, i32) {
    %c0_i32 = arith.constant 0 : i32
    %c0_i32_0 = arith.constant 0 : i32
    %c0_i32_1 = arith.constant 0 : i32
    return %c0_i32, %c0_i32_0 : i32, i32
  }
  func.func @transform_3(%arg0: i32, %arg1: i32) -> (i32, i32) {
    %c0_i32 = arith.constant 0 : i32
    %c0_i32_0 = arith.constant 0 : i32
    %c0_i32_1 = arith.constant 0 : i32
    return %c0_i32, %c0_i32_0 : i32, i32
  }
  func.func @transform_4(%arg0: i32, %arg1: i32) -> (i32, i32) {
    %c0_i32 = arith.constant 0 : i32
    %c0_i32_0 = arith.constant 0 : i32
    %c0_i32_1 = arith.constant 0 : i32
    return %c0_i32, %c0_i32_0 : i32, i32
  }
  func.func @transform_5(%arg0: i32, %arg1: i32) -> (i32, i32) {
    %c0_i32 = arith.constant 0 : i32
    %c0_i32_0 = arith.constant 0 : i32
    %c0_i32_1 = arith.constant 0 : i32
    return %c0_i32, %c0_i32_0 : i32, i32
  }
  func.func @transform_6(%arg0: i32, %arg1: i32) -> (i32, i32, i32) {
    %c0_i32 = arith.constant 0 : i32
    %c0_i32_0 = arith.constant 0 : i32
    %c0_i32_1 = arith.constant 0 : i32
    return %arg0, %c0_i32, %c0_i32_0 : i32, i32, i32
  }
  func.func @transform_7(%arg0: i32, %arg1: i32) -> (i32, i32, i32) {
    %c0_i32 = arith.constant 0 : i32
    %c0_i32_0 = arith.constant 0 : i32
    %c0_i32_1 = arith.constant 0 : i32
    return %arg0, %c0_i32, %c0_i32_0 : i32, i32, i32
  }
}

module attributes {stable_mosaic.version = 11 : i64} {
  func.func @_linear_kernel(%arg0: i32, %arg1: memref<8x32xf32, #tpu.memory_space<vmem>>, %arg2: memref<32x96xf32, #tpu.memory_space<vmem>>, %arg3: memref<1x96xf32, #tpu.memory_space<vmem>>, %arg4: memref<8x96xf32, #tpu.memory_space<vmem>>) attributes {dimension_semantics = [#tpu.dimension_semantics<parallel>], iteration_bounds = array<i64: 1>, scalar_prefetch = 0 : i64, scratch_operands = 0 : i64, tpu.core_type = #tpu.core_type<tc>, window_params = [{transform_indices = @transform_0, window_bounds = array<i64: 8, 32>}, {pipeline_mode = #tpu.pipeline_mode<synchronous>, transform_indices = @transform_1, window_bounds = array<i64: 32, 96>}, {pipeline_mode = #tpu.pipeline_mode<synchronous>, transform_indices = @transform_2, window_bounds = array<i64: 1, 96>}, {transform_indices = @transform_3, window_bounds = array<i64: 8, 96>}]} {
    %c0 = arith.constant 0 : index
    %c0_0 = arith.constant 0 : index
    %0 = vector.load %arg1[%c0, %c0_0] : memref<8x32xf32, #tpu.memory_space<vmem>>, vector<8x32xf32>
    %c0_1 = arith.constant 0 : index
    %c0_2 = arith.constant 0 : index
    %1 = vector.load %arg2[%c0_1, %c0_2] : memref<32x96xf32, #tpu.memory_space<vmem>>, vector<32x96xf32>
    %cst = arith.constant dense<0.000000e+00> : vector<8x96xf32>
    %2 = tpu.matmul %0, %1, %cst {dimension_numbers = #tpu.dot_dimension_numbers<[1], [0], [0], [1], [0, 0, 1, 1], [], []>} : vector<8x32xf32>, vector<32x96xf32>, vector<8x96xf32> -> vector<8x96xf32>
    %c0_3 = arith.constant 0 : index
    %c0_4 = arith.constant 0 : index
    %3 = vector.load %arg3[%c0_3, %c0_4] : memref<1x96xf32, #tpu.memory_space<vmem>>, vector<1x96xf32>
    %4 = vector.broadcast %3 : vector<1x96xf32> to vector<8x96xf32>
    %5 = arith.addf %2, %4 : vector<8x96xf32>
    %c0_5 = arith.constant 0 : index
    %c0_6 = arith.constant 0 : index
    %6 = vector.load %arg4[%c0_5, %c0_6] : memref<8x96xf32, #tpu.memory_space<vmem>>, vector<8x96xf32>
    tpu.vector_store %arg4[%c0_5, %c0_6], %5 {strides = array<i32>} : memref<8x96xf32, #tpu.memory_space<vmem>>, vector<8x96xf32>,
    return
  }
  func.func @transform_0(%arg0: i32) -> (i32, i32) {
    %c0_i32 = arith.constant 0 : i32
    %c0_i32_0 = arith.constant 0 : i32
    return %arg0, %c0_i32 : i32, i32
  }
  func.func @transform_1(%arg0: i32) -> (i32, i32) {
    %c0_i32 = arith.constant 0 : i32
    %c0_i32_0 = arith.constant 0 : i32
    %c0_i32_1 = arith.constant 0 : i32
    return %c0_i32, %c0_i32_0 : i32, i32
  }
  func.func @transform_2(%arg0: i32) -> (i32, i32) {
    %c0_i32 = arith.constant 0 : i32
    %c0_i32_0 = arith.constant 0 : i32
    %c0_i32_1 = arith.constant 0 : i32
    return %c0_i32, %c0_i32_0 : i32, i32
  }
  func.func @transform_3(%arg0: i32) -> (i32, i32) {
    %c0_i32 = arith.constant 0 : i32
    %c0_i32_0 = arith.constant 0 : i32
    return %arg0, %c0_i32 : i32, i32
  }
}

module attributes {stable_mosaic.version = 11 : i64} {
  func.func @_local_bcast_proj_kernel(%arg0: i32, %arg1: i32, %arg2: memref<2x16x96xf32, #tpu.memory_space<vmem>>, %arg3: memref<4x16x16xf32, #tpu.memory_space<vmem>>, %arg4: memref<1x1x64xf32, #tpu.memory_space<vmem>>, %arg5: memref<32x32xf32, #tpu.memory_space<vmem>>, %arg6: memref<1x32xf32, #tpu.memory_space<vmem>>, %arg7: memref<32x32xf32, #tpu.memory_space<vmem>>) attributes {dimension_semantics = [#tpu.dimension_semantics<parallel>, #tpu.dimension_semantics<parallel>], iteration_bounds = array<i64: 2, 2>, scalar_prefetch = 0 : i64, scratch_operands = 0 : i64, tpu.core_type = #tpu.core_type<tc>, window_params = [{transform_indices = @transform_0, window_bounds = array<i64: 2, 16, 96>}, {pipeline_mode = #tpu.pipeline_mode<synchronous>, transform_indices = @transform_1, window_bounds = array<i64: 4, 16, 16>}, {transform_indices = @transform_2, window_bounds = array<i64: 1, 1, 64>}, {pipeline_mode = #tpu.pipeline_mode<synchronous>, transform_indices = @transform_3, window_bounds = array<i64: 32, 32>}, {pipeline_mode = #tpu.pipeline_mode<synchronous>, transform_indices = @transform_4, window_bounds = array<i64: 1, 32>}, {transform_indices = @transform_5, window_bounds = array<i64: 32, 32>}]} {
    %c0 = arith.constant 0 : index
    %c0_0 = arith.constant 0 : index
    %c0_1 = arith.constant 0 : index
    %0 = vector.load %arg2[%c0, %c0_0, %c0_1] : memref<2x16x96xf32, #tpu.memory_space<vmem>>, vector<2x16x96xf32>
    %c0_2 = arith.constant 0 : index
    %c0_3 = arith.constant 0 : index
    %c0_4 = arith.constant 0 : index
    %1 = vector.load %arg4[%c0_2, %c0_3, %c0_4] : memref<1x1x64xf32, #tpu.memory_space<vmem>>, vector<1x1x64xf32>
    %2 = vector.shape_cast %1 : vector<1x1x64xf32> to vector<1x64xf32>
    %cst = arith.constant 0.000000e+00 : f32
    %3 = vector.broadcast %cst : f32 to vector<32x32xf32>
    %4 = vector.extract_strided_slice %0 {offsets = [0, 0, 0], sizes = [2, 16, 8], strides = [1, 1, 1]} : vector<2x16x96xf32> to vector<2x16x8xf32>
    %5 = vector.extract_strided_slice %0 {offsets = [0, 0, 32], sizes = [2, 16, 8], strides = [1, 1, 1]} : vector<2x16x96xf32> to vector<2x16x8xf32>
    %6 = vector.extract_strided_slice %0 {offsets = [0, 0, 64], sizes = [2, 16, 8], strides = [1, 1, 1]} : vector<2x16x96xf32> to vector<2x16x8xf32>
    "tpu.trace_start"() <{level = 10 : i32, message = "bqd,bkd->bqk"}> : () -> ()
    %cst_5 = arith.constant dense<0.000000e+00> : vector<2x16x16xf32>
    %7 = tpu.matmul %4, %5, %cst_5 {dimension_numbers = #tpu.dot_dimension_numbers<[2], [2], [1], [1], [0, 0, 0, 1, 1, 1], [0], [0]>} : vector<2x16x8xf32>, vector<2x16x8xf32>, vector<2x16x16xf32> -> vector<2x16x16xf32>
    "tpu.trace_stop"() : () -> ()
    %cst_6 = arith.constant 0.353553385 : f32
    %8 = vector.broadcast %cst_6 : f32 to vector<2x16x16xf32>
    %9 = arith.mulf %7, %8 : vector<2x16x16xf32>
    %c0_7 = arith.constant 0 : index
    %c0_8 = arith.constant 0 : index
    %c0_9 = arith.constant 0 : index
    %10 = vector.load %arg3[%c0_7, %c0_8, %c0_9] : memref<4x16x16xf32, #tpu.memory_space<vmem>>, vector<1x16x16xf32>
    %11 = vector.shape_cast %10 : vector<1x16x16xf32> to vector<16x16xf32>
    %12 = vector.shape_cast %11 : vector<16x16xf32> to vector<1x16x16xf32>
    %13 = vector.broadcast %12 : vector<1x16x16xf32> to vector<2x16x16xf32>
    %14 = arith.addf %9, %13 : vector<2x16x16xf32>
    %cst_10 = arith.constant dense<0xFF800000> : vector<2x16xf32>
    %15 = vector.multi_reduction <maximumf>, %14, %cst_10 [2] : vector<2x16x16xf32> to vector<2x16xf32>
    %16 = vector.shape_cast %15 : vector<2x16xf32> to vector<2x16x1xf32>
    %17 = vector.broadcast %16 : vector<2x16x1xf32> to vector<2x16x16xf32>
    %18 = arith.subf %14, %17 : vector<2x16x16xf32>
    %19 = math.exp %18 : vector<2x16x16xf32>
    %cst_11 = arith.constant dense<0.000000e+00> : vector<2x16xf32>
    %20 = vector.multi_reduction <add>, %19, %cst_11 [2] : vector<2x16x16xf32> to vector<2x16xf32>
    %21 = vector.shape_cast %20 : vector<2x16xf32> to vector<2x16x1xf32>
    %22 = vector.broadcast %21 : vector<2x16x1xf32> to vector<2x16x16xf32>
    %23 = arith.divf %19, %22 : vector<2x16x16xf32>
    "tpu.trace_start"() <{level = 10 : i32, message = "bqk,bkd->bqd"}> : () -> ()
    %cst_12 = arith.constant dense<0.000000e+00> : vector<2x16x8xf32>
    %24 = tpu.matmul %23, %6, %cst_12 {dimension_numbers = #tpu.dot_dimension_numbers<[2], [1], [1], [2], [0, 0, 0, 1, 1, 2], [0], [0]>} : vector<2x16x16xf32>, vector<2x16x8xf32>, vector<2x16x8xf32> -> vector<2x16x8xf32>
    "tpu.trace_stop"() : () -> ()
    %25 = vector.shape_cast %4 : vector<2x16x8xf32> to vector<32x8xf32>
    %26 = vector.extract_strided_slice %2 {offsets = [0, 0], sizes = [1, 8], strides = [1, 1]} : vector<1x64xf32> to vector<1x8xf32>
    %27 = vector.extract_strided_slice %2 {offsets = [0, 32], sizes = [1, 8], strides = [1, 1]} : vector<1x64xf32> to vector<1x8xf32>
    "tpu.trace_start"() <{level = 10 : i32, message = "rd,nd->rn"}> : () -> ()
    %cst_13 = arith.constant dense<0.000000e+00> : vector<32x1xf32>
    %28 = tpu.matmul %25, %26, %cst_13 {dimension_numbers = #tpu.dot_dimension_numbers<[1], [1], [0], [0], [0, 0, 1, 0], [], []>} : vector<32x8xf32>, vector<1x8xf32>, vector<32x1xf32> -> vector<32x1xf32>
    "tpu.trace_stop"() : () -> ()
    %cst_14 = arith.constant 0.353553385 : f32
    %29 = vector.broadcast %cst_14 : f32 to vector<32x1xf32>
    %30 = arith.mulf %28, %29 : vector<32x1xf32>
    %cst_15 = arith.constant dense<0xFF800000> : vector<32xf32>
    %31 = vector.multi_reduction <maximumf>, %30, %cst_15 [1] : vector<32x1xf32> to vector<32xf32>
    %32 = vector.shape_cast %31 : vector<32xf32> to vector<32x1xf32>
    %33 = arith.subf %30, %32 : vector<32x1xf32>
    %34 = math.exp %33 : vector<32x1xf32>
    %cst_16 = arith.constant dense<0.000000e+00> : vector<32xf32>
    %35 = vector.multi_reduction <add>, %34, %cst_16 [1] : vector<32x1xf32> to vector<32xf32>
    %36 = vector.shape_cast %35 : vector<32xf32> to vector<32x1xf32>
    %37 = arith.divf %34, %36 : vector<32x1xf32>
    "tpu.trace_start"() <{level = 10 : i32, message = "rn,nd->rd"}> : () -> ()
    %cst_17 = arith.constant dense<0.000000e+00> : vector<32x8xf32>
    %38 = tpu.matmul %37, %27, %cst_17 {dimension_numbers = #tpu.dot_dimension_numbers<[1], [0], [0], [1], [0, 0, 1, 1], [], []>} : vector<32x1xf32>, vector<1x8xf32>, vector<32x8xf32> -> vector<32x8xf32>
    "tpu.trace_stop"() : () -> ()
    %39 = vector.shape_cast %24 : vector<2x16x8xf32> to vector<32x8xf32>
    %40 = arith.addf %39, %38 : vector<32x8xf32>
    %c0_18 = arith.constant 0 : index
    %c0_19 = arith.constant 0 : index
    %41 = vector.load %arg5[%c0_18, %c0_19] : memref<32x32xf32, #tpu.memory_space<vmem>>, vector<8x32xf32>
    %cst_20 = arith.constant dense<0.000000e+00> : vector<32x32xf32>
    %42 = tpu.matmul %40, %41, %cst_20 {dimension_numbers = #tpu.dot_dimension_numbers<[1], [0], [0], [1], [0, 0, 1, 1], [], []>} : vector<32x8xf32>, vector<8x32xf32>, vector<32x32xf32> -> vector<32x32xf32>
    %43 = arith.addf %3, %42 : vector<32x32xf32>
    %44 = vector.extract_strided_slice %0 {offsets = [0, 0, 8], sizes = [2, 16, 8], strides = [1, 1, 1]} : vector<2x16x96xf32> to vector<2x16x8xf32>
    %45 = vector.extract_strided_slice %0 {offsets = [0, 0, 40], sizes = [2, 16, 8], strides = [1, 1, 1]} : vector<2x16x96xf32> to vector<2x16x8xf32>
    %46 = vector.extract_strided_slice %0 {offsets = [0, 0, 72], sizes = [2, 16, 8], strides = [1, 1, 1]} : vector<2x16x96xf32> to vector<2x16x8xf32>
    "tpu.trace_start"() <{level = 10 : i32, message = "bqd,bkd->bqk"}> : () -> ()
    %cst_21 = arith.constant dense<0.000000e+00> : vector<2x16x16xf32>
    %47 = tpu.matmul %44, %45, %cst_21 {dimension_numbers = #tpu.dot_dimension_numbers<[2], [2], [1], [1], [0, 0, 0, 1, 1, 1], [0], [0]>} : vector<2x16x8xf32>, vector<2x16x8xf32>, vector<2x16x16xf32> -> vector<2x16x16xf32>
    "tpu.trace_stop"() : () -> ()
    %cst_22 = arith.constant 0.353553385 : f32
    %48 = vector.broadcast %cst_22 : f32 to vector<2x16x16xf32>
    %49 = arith.mulf %47, %48 : vector<2x16x16xf32>
    %c1 = arith.constant 1 : index
    %c0_23 = arith.constant 0 : index
    %c0_24 = arith.constant 0 : index
    %50 = vector.load %arg3[%c1, %c0_23, %c0_24] : memref<4x16x16xf32, #tpu.memory_space<vmem>>, vector<1x16x16xf32>
    %51 = vector.shape_cast %50 : vector<1x16x16xf32> to vector<16x16xf32>
    %52 = vector.shape_cast %51 : vector<16x16xf32> to vector<1x16x16xf32>
    %53 = vector.broadcast %52 : vector<1x16x16xf32> to vector<2x16x16xf32>
    %54 = arith.addf %49, %53 : vector<2x16x16xf32>
    %cst_25 = arith.constant dense<0xFF800000> : vector<2x16xf32>
    %55 = vector.multi_reduction <maximumf>, %54, %cst_25 [2] : vector<2x16x16xf32> to vector<2x16xf32>
    %56 = vector.shape_cast %55 : vector<2x16xf32> to vector<2x16x1xf32>
    %57 = vector.broadcast %56 : vector<2x16x1xf32> to vector<2x16x16xf32>
    %58 = arith.subf %54, %57 : vector<2x16x16xf32>
    %59 = math.exp %58 : vector<2x16x16xf32>
    %cst_26 = arith.constant dense<0.000000e+00> : vector<2x16xf32>
    %60 = vector.multi_reduction <add>, %59, %cst_26 [2] : vector<2x16x16xf32> to vector<2x16xf32>
    %61 = vector.shape_cast %60 : vector<2x16xf32> to vector<2x16x1xf32>
    %62 = vector.broadcast %61 : vector<2x16x1xf32> to vector<2x16x16xf32>
    %63 = arith.divf %59, %62 : vector<2x16x16xf32>
    "tpu.trace_start"() <{level = 10 : i32, message = "bqk,bkd->bqd"}> : () -> ()
    %cst_27 = arith.constant dense<0.000000e+00> : vector<2x16x8xf32>
    %64 = tpu.matmul %63, %46, %cst_27 {dimension_numbers = #tpu.dot_dimension_numbers<[2], [1], [1], [2], [0, 0, 0, 1, 1, 2], [0], [0]>} : vector<2x16x16xf32>, vector<2x16x8xf32>, vector<2x16x8xf32> -> vector<2x16x8xf32>
    "tpu.trace_stop"() : () -> ()
    %65 = vector.shape_cast %44 : vector<2x16x8xf32> to vector<32x8xf32>
    %66 = vector.extract_strided_slice %2 {offsets = [0, 8], sizes = [1, 8], strides = [1, 1]} : vector<1x64xf32> to vector<1x8xf32>
    %67 = vector.extract_strided_slice %2 {offsets = [0, 40], sizes = [1, 8], strides = [1, 1]} : vector<1x64xf32> to vector<1x8xf32>
    "tpu.trace_start"() <{level = 10 : i32, message = "rd,nd->rn"}> : () -> ()
    %cst_28 = arith.constant dense<0.000000e+00> : vector<32x1xf32>
    %68 = tpu.matmul %65, %66, %cst_28 {dimension_numbers = #tpu.dot_dimension_numbers<[1], [1], [0], [0], [0, 0, 1, 0], [], []>} : vector<32x8xf32>, vector<1x8xf32>, vector<32x1xf32> -> vector<32x1xf32>
    "tpu.trace_stop"() : () -> ()
    %cst_29 = arith.constant 0.353553385 : f32
    %69 = vector.broadcast %cst_29 : f32 to vector<32x1xf32>
    %70 = arith.mulf %68, %69 : vector<32x1xf32>
    %cst_30 = arith.constant dense<0xFF800000> : vector<32xf32>
    %71 = vector.multi_reduction <maximumf>, %70, %cst_30 [1] : vector<32x1xf32> to vector<32xf32>
    %72 = vector.shape_cast %71 : vector<32xf32> to vector<32x1xf32>
    %73 = arith.subf %70, %72 : vector<32x1xf32>
    %74 = math.exp %73 : vector<32x1xf32>
    %cst_31 = arith.constant dense<0.000000e+00> : vector<32xf32>
    %75 = vector.multi_reduction <add>, %74, %cst_31 [1] : vector<32x1xf32> to vector<32xf32>
    %76 = vector.shape_cast %75 : vector<32xf32> to vector<32x1xf32>
    %77 = arith.divf %74, %76 : vector<32x1xf32>
    "tpu.trace_start"() <{level = 10 : i32, message = "rn,nd->rd"}> : () -> ()
    %cst_32 = arith.constant dense<0.000000e+00> : vector<32x8xf32>
    %78 = tpu.matmul %77, %67, %cst_32 {dimension_numbers = #tpu.dot_dimension_numbers<[1], [0], [0], [1], [0, 0, 1, 1], [], []>} : vector<32x1xf32>, vector<1x8xf32>, vector<32x8xf32> -> vector<32x8xf32>
    "tpu.trace_stop"() : () -> ()
    %79 = vector.shape_cast %64 : vector<2x16x8xf32> to vector<32x8xf32>
    %80 = arith.addf %79, %78 : vector<32x8xf32>
    %c8 = arith.constant 8 : index
    %c0_33 = arith.constant 0 : index
    %81 = vector.load %arg5[%c8, %c0_33] : memref<32x32xf32, #tpu.memory_space<vmem>>, vector<8x32xf32>
    %cst_34 = arith.constant dense<0.000000e+00> : vector<32x32xf32>
    %82 = tpu.matmul %80, %81, %cst_34 {dimension_numbers = #tpu.dot_dimension_numbers<[1], [0], [0], [1], [0, 0, 1, 1], [], []>} : vector<32x8xf32>, vector<8x32xf32>, vector<32x32xf32> -> vector<32x32xf32>
    %83 = arith.addf %43, %82 : vector<32x32xf32>
    %84 = vector.extract_strided_slice %0 {offsets = [0, 0, 16], sizes = [2, 16, 8], strides = [1, 1, 1]} : vector<2x16x96xf32> to vector<2x16x8xf32>
    %85 = vector.extract_strided_slice %0 {offsets = [0, 0, 48], sizes = [2, 16, 8], strides = [1, 1, 1]} : vector<2x16x96xf32> to vector<2x16x8xf32>
    %86 = vector.extract_strided_slice %0 {offsets = [0, 0, 80], sizes = [2, 16, 8], strides = [1, 1, 1]} : vector<2x16x96xf32> to vector<2x16x8xf32>
    "tpu.trace_start"() <{level = 10 : i32, message = "bqd,bkd->bqk"}> : () -> ()
    %cst_35 = arith.constant dense<0.000000e+00> : vector<2x16x16xf32>
    %87 = tpu.matmul %84, %85, %cst_35 {dimension_numbers = #tpu.dot_dimension_numbers<[2], [2], [1], [1], [0, 0, 0, 1, 1, 1], [0], [0]>} : vector<2x16x8xf32>, vector<2x16x8xf32>, vector<2x16x16xf32> -> vector<2x16x16xf32>
    "tpu.trace_stop"() : () -> ()
    %cst_36 = arith.constant 0.353553385 : f32
    %88 = vector.broadcast %cst_36 : f32 to vector<2x16x16xf32>
    %89 = arith.mulf %87, %88 : vector<2x16x16xf32>
    %c2 = arith.constant 2 : index
    %c0_37 = arith.constant 0 : index
    %c0_38 = arith.constant 0 : index
    %90 = vector.load %arg3[%c2, %c0_37, %c0_38] : memref<4x16x16xf32, #tpu.memory_space<vmem>>, vector<1x16x16xf32>
    %91 = vector.shape_cast %90 : vector<1x16x16xf32> to vector<16x16xf32>
    %92 = vector.shape_cast %91 : vector<16x16xf32> to vector<1x16x16xf32>
    %93 = vector.broadcast %92 : vector<1x16x16xf32> to vector<2x16x16xf32>
    %94 = arith.addf %89, %93 : vector<2x16x16xf32>
    %cst_39 = arith.constant dense<0xFF800000> : vector<2x16xf32>
    %95 = vector.multi_reduction <maximumf>, %94, %cst_39 [2] : vector<2x16x16xf32> to vector<2x16xf32>
    %96 = vector.shape_cast %95 : vector<2x16xf32> to vector<2x16x1xf32>
    %97 = vector.broadcast %96 : vector<2x16x1xf32> to vector<2x16x16xf32>
    %98 = arith.subf %94, %97 : vector<2x16x16xf32>
    %99 = math.exp %98 : vector<2x16x16xf32>
    %cst_40 = arith.constant dense<0.000000e+00> : vector<2x16xf32>
    %100 = vector.multi_reduction <add>, %99, %cst_40 [2] : vector<2x16x16xf32> to vector<2x16xf32>
    %101 = vector.shape_cast %100 : vector<2x16xf32> to vector<2x16x1xf32>
    %102 = vector.broadcast %101 : vector<2x16x1xf32> to vector<2x16x16xf32>
    %103 = arith.divf %99, %102 : vector<2x16x16xf32>
    "tpu.trace_start"() <{level = 10 : i32, message = "bqk,bkd->bqd"}> : () -> ()
    %cst_41 = arith.constant dense<0.000000e+00> : vector<2x16x8xf32>
    %104 = tpu.matmul %103, %86, %cst_41 {dimension_numbers = #tpu.dot_dimension_numbers<[2], [1], [1], [2], [0, 0, 0, 1, 1, 2], [0], [0]>} : vector<2x16x16xf32>, vector<2x16x8xf32>, vector<2x16x8xf32> -> vector<2x16x8xf32>
    "tpu.trace_stop"() : () -> ()
    %105 = vector.shape_cast %84 : vector<2x16x8xf32> to vector<32x8xf32>
    %106 = vector.extract_strided_slice %2 {offsets = [0, 16], sizes = [1, 8], strides = [1, 1]} : vector<1x64xf32> to vector<1x8xf32>
    %107 = vector.extract_strided_slice %2 {offsets = [0, 48], sizes = [1, 8], strides = [1, 1]} : vector<1x64xf32> to vector<1x8xf32>
    "tpu.trace_start"() <{level = 10 : i32, message = "rd,nd->rn"}> : () -> ()
    %cst_42 = arith.constant dense<0.000000e+00> : vector<32x1xf32>
    %108 = tpu.matmul %105, %106, %cst_42 {dimension_numbers = #tpu.dot_dimension_numbers<[1], [1], [0], [0], [0, 0, 1, 0], [], []>} : vector<32x8xf32>, vector<1x8xf32>, vector<32x1xf32> -> vector<32x1xf32>
    "tpu.trace_stop"() : () -> ()
    %cst_43 = arith.constant 0.353553385 : f32
    %109 = vector.broadcast %cst_43 : f32 to vector<32x1xf32>
    %110 = arith.mulf %108, %109 : vector<32x1xf32>
    %cst_44 = arith.constant dense<0xFF800000> : vector<32xf32>
    %111 = vector.multi_reduction <maximumf>, %110, %cst_44 [1] : vector<32x1xf32> to vector<32xf32>
    %112 = vector.shape_cast %111 : vector<32xf32> to vector<32x1xf32>
    %113 = arith.subf %110, %112 : vector<32x1xf32>
    %114 = math.exp %113 : vector<32x1xf32>
    %cst_45 = arith.constant dense<0.000000e+00> : vector<32xf32>
    %115 = vector.multi_reduction <add>, %114, %cst_45 [1] : vector<32x1xf32> to vector<32xf32>
    %116 = vector.shape_cast %115 : vector<32xf32> to vector<32x1xf32>
    %117 = arith.divf %114, %116 : vector<32x1xf32>
    "tpu.trace_start"() <{level = 10 : i32, message = "rn,nd->rd"}> : () -> ()
    %cst_46 = arith.constant dense<0.000000e+00> : vector<32x8xf32>
    %118 = tpu.matmul %117, %107, %cst_46 {dimension_numbers = #tpu.dot_dimension_numbers<[1], [0], [0], [1], [0, 0, 1, 1], [], []>} : vector<32x1xf32>, vector<1x8xf32>, vector<32x8xf32> -> vector<32x8xf32>
    "tpu.trace_stop"() : () -> ()
    %119 = vector.shape_cast %104 : vector<2x16x8xf32> to vector<32x8xf32>
    %120 = arith.addf %119, %118 : vector<32x8xf32>
    %c16 = arith.constant 16 : index
    %c0_47 = arith.constant 0 : index
    %121 = vector.load %arg5[%c16, %c0_47] : memref<32x32xf32, #tpu.memory_space<vmem>>, vector<8x32xf32>
    %cst_48 = arith.constant dense<0.000000e+00> : vector<32x32xf32>
    %122 = tpu.matmul %120, %121, %cst_48 {dimension_numbers = #tpu.dot_dimension_numbers<[1], [0], [0], [1], [0, 0, 1, 1], [], []>} : vector<32x8xf32>, vector<8x32xf32>, vector<32x32xf32> -> vector<32x32xf32>
    %123 = arith.addf %83, %122 : vector<32x32xf32>
    %124 = vector.extract_strided_slice %0 {offsets = [0, 0, 24], sizes = [2, 16, 8], strides = [1, 1, 1]} : vector<2x16x96xf32> to vector<2x16x8xf32>
    %125 = vector.extract_strided_slice %0 {offsets = [0, 0, 56], sizes = [2, 16, 8], strides = [1, 1, 1]} : vector<2x16x96xf32> to vector<2x16x8xf32>
    %126 = vector.extract_strided_slice %0 {offsets = [0, 0, 88], sizes = [2, 16, 8], strides = [1, 1, 1]} : vector<2x16x96xf32> to vector<2x16x8xf32>
    "tpu.trace_start"() <{level = 10 : i32, message = "bqd,bkd->bqk"}> : () -> ()
    %cst_49 = arith.constant dense<0.000000e+00> : vector<2x16x16xf32>
    %127 = tpu.matmul %124, %125, %cst_49 {dimension_numbers = #tpu.dot_dimension_numbers<[2], [2], [1], [1], [0, 0, 0, 1, 1, 1], [0], [0]>} : vector<2x16x8xf32>, vector<2x16x8xf32>, vector<2x16x16xf32> -> vector<2x16x16xf32>
    "tpu.trace_stop"() : () -> ()
    %cst_50 = arith.constant 0.353553385 : f32
    %128 = vector.broadcast %cst_50 : f32 to vector<2x16x16xf32>
    %129 = arith.mulf %127, %128 : vector<2x16x16xf32>
    %c3 = arith.constant 3 : index
    %c0_51 = arith.constant 0 : index
    %c0_52 = arith.constant 0 : index
    %130 = vector.load %arg3[%c3, %c0_51, %c0_52] : memref<4x16x16xf32, #tpu.memory_space<vmem>>, vector<1x16x16xf32>
    %131 = vector.shape_cast %130 : vector<1x16x16xf32> to vector<16x16xf32>
    %132 = vector.shape_cast %131 : vector<16x16xf32> to vector<1x16x16xf32>
    %133 = vector.broadcast %132 : vector<1x16x16xf32> to vector<2x16x16xf32>
    %134 = arith.addf %129, %133 : vector<2x16x16xf32>
    %cst_53 = arith.constant dense<0xFF800000> : vector<2x16xf32>
    %135 = vector.multi_reduction <maximumf>, %134, %cst_53 [2] : vector<2x16x16xf32> to vector<2x16xf32>
    %136 = vector.shape_cast %135 : vector<2x16xf32> to vector<2x16x1xf32>
    %137 = vector.broadcast %136 : vector<2x16x1xf32> to vector<2x16x16xf32>
    %138 = arith.subf %134, %137 : vector<2x16x16xf32>
    %139 = math.exp %138 : vector<2x16x16xf32>
    %cst_54 = arith.constant dense<0.000000e+00> : vector<2x16xf32>
    %140 = vector.multi_reduction <add>, %139, %cst_54 [2] : vector<2x16x16xf32> to vector<2x16xf32>
    %141 = vector.shape_cast %140 : vector<2x16xf32> to vector<2x16x1xf32>
    %142 = vector.broadcast %141 : vector<2x16x1xf32> to vector<2x16x16xf32>
    %143 = arith.divf %139, %142 : vector<2x16x16xf32>
    "tpu.trace_start"() <{level = 10 : i32, message = "bqk,bkd->bqd"}> : () -> ()
    %cst_55 = arith.constant dense<0.000000e+00> : vector<2x16x8xf32>
    %144 = tpu.matmul %143, %126, %cst_55 {dimension_numbers = #tpu.dot_dimension_numbers<[2], [1], [1], [2], [0, 0, 0, 1, 1, 2], [0], [0]>} : vector<2x16x16xf32>, vector<2x16x8xf32>, vector<2x16x8xf32> -> vector<2x16x8xf32>
    "tpu.trace_stop"() : () -> ()
    %145 = vector.shape_cast %124 : vector<2x16x8xf32> to vector<32x8xf32>
    %146 = vector.extract_strided_slice %2 {offsets = [0, 24], sizes = [1, 8], strides = [1, 1]} : vector<1x64xf32> to vector<1x8xf32>
    %147 = vector.extract_strided_slice %2 {offsets = [0, 56], sizes = [1, 8], strides = [1, 1]} : vector<1x64xf32> to vector<1x8xf32>
    "tpu.trace_start"() <{level = 10 : i32, message = "rd,nd->rn"}> : () -> ()
    %cst_56 = arith.constant dense<0.000000e+00> : vector<32x1xf32>
    %148 = tpu.matmul %145, %146, %cst_56 {dimension_numbers = #tpu.dot_dimension_numbers<[1], [1], [0], [0], [0, 0, 1, 0], [], []>} : vector<32x8xf32>, vector<1x8xf32>, vector<32x1xf32> -> vector<32x1xf32>
    "tpu.trace_stop"() : () -> ()
    %cst_57 = arith.constant 0.353553385 : f32
    %149 = vector.broadcast %cst_57 : f32 to vector<32x1xf32>
    %150 = arith.mulf %148, %149 : vector<32x1xf32>
    %cst_58 = arith.constant dense<0xFF800000> : vector<32xf32>
    %151 = vector.multi_reduction <maximumf>, %150, %cst_58 [1] : vector<32x1xf32> to vector<32xf32>
    %152 = vector.shape_cast %151 : vector<32xf32> to vector<32x1xf32>
    %153 = arith.subf %150, %152 : vector<32x1xf32>
    %154 = math.exp %153 : vector<32x1xf32>
    %cst_59 = arith.constant dense<0.000000e+00> : vector<32xf32>
    %155 = vector.multi_reduction <add>, %154, %cst_59 [1] : vector<32x1xf32> to vector<32xf32>
    %156 = vector.shape_cast %155 : vector<32xf32> to vector<32x1xf32>
    %157 = arith.divf %154, %156 : vector<32x1xf32>
    "tpu.trace_start"() <{level = 10 : i32, message = "rn,nd->rd"}> : () -> ()
    %cst_60 = arith.constant dense<0.000000e+00> : vector<32x8xf32>
    %158 = tpu.matmul %157, %147, %cst_60 {dimension_numbers = #tpu.dot_dimension_numbers<[1], [0], [0], [1], [0, 0, 1, 1], [], []>} : vector<32x1xf32>, vector<1x8xf32>, vector<32x8xf32> -> vector<32x8xf32>
    "tpu.trace_stop"() : () -> ()
    %159 = vector.shape_cast %144 : vector<2x16x8xf32> to vector<32x8xf32>
    %160 = arith.addf %159, %158 : vector<32x8xf32>
    %c24 = arith.constant 24 : index
    %c0_61 = arith.constant 0 : index
    %161 = vector.load %arg5[%c24, %c0_61] : memref<32x32xf32, #tpu.memory_space<vmem>>, vector<8x32xf32>
    %cst_62 = arith.constant dense<0.000000e+00> : vector<32x32xf32>
    %162 = tpu.matmul %160, %161, %cst_62 {dimension_numbers = #tpu.dot_dimension_numbers<[1], [0], [0], [1], [0, 0, 1, 1], [], []>} : vector<32x8xf32>, vector<8x32xf32>, vector<32x32xf32> -> vector<32x32xf32>
    %163 = arith.addf %123, %162 : vector<32x32xf32>
    %c0_63 = arith.constant 0 : index
    %c0_64 = arith.constant 0 : index
    %164 = vector.load %arg6[%c0_63, %c0_64] : memref<1x32xf32, #tpu.memory_space<vmem>>, vector<1x32xf32>
    %165 = vector.broadcast %164 : vector<1x32xf32> to vector<32x32xf32>
    %166 = arith.addf %163, %165 : vector<32x32xf32>
    %c0_65 = arith.constant 0 : index
    %c0_66 = arith.constant 0 : index
    %167 = vector.load %arg7[%c0_65, %c0_66] : memref<32x32xf32, #tpu.memory_space<vmem>>, vector<32x32xf32>
    tpu.vector_store %arg7[%c0_65, %c0_66], %166 {strides = array<i32>} : memref<32x32xf32, #tpu.memory_space<vmem>>, vector<32x32xf32>,
    return
  }
  func.func @transform_0(%arg0: i32, %arg1: i32) -> (i32, i32, i32) {
    %c2_i32 = arith.constant 2 : i32
    %0 = arith.muli %arg0, %c2_i32 : i32
    %1 = arith.addi %0, %arg1 : i32
    %c0_i32 = arith.constant 0 : i32
    %c0_i32_0 = arith.constant 0 : i32
    %c0_i32_1 = arith.constant 0 : i32
    return %1, %c0_i32, %c0_i32_0 : i32, i32, i32
  }
  func.func @transform_1(%arg0: i32, %arg1: i32) -> (i32, i32, i32) {
    %c0_i32 = arith.constant 0 : i32
    %c0_i32_0 = arith.constant 0 : i32
    %c0_i32_1 = arith.constant 0 : i32
    %c0_i32_2 = arith.constant 0 : i32
    return %c0_i32, %c0_i32_0, %c0_i32_1 : i32, i32, i32
  }
  func.func @transform_2(%arg0: i32, %arg1: i32) -> (i32, i32, i32) {
    %c0_i32 = arith.constant 0 : i32
    %c0_i32_0 = arith.constant 0 : i32
    %c0_i32_1 = arith.constant 0 : i32
    return %arg0, %c0_i32, %c0_i32_0 : i32, i32, i32
  }
  func.func @transform_3(%arg0: i32, %arg1: i32) -> (i32, i32) {
    %c0_i32 = arith.constant 0 : i32
    %c0_i32_0 = arith.constant 0 : i32
    %c0_i32_1 = arith.constant 0 : i32
    return %c0_i32, %c0_i32_0 : i32, i32
  }
  func.func @transform_4(%arg0: i32, %arg1: i32) -> (i32, i32) {
    %c0_i32 = arith.constant 0 : i32
    %c0_i32_0 = arith.constant 0 : i32
    %c0_i32_1 = arith.constant 0 : i32
    return %c0_i32, %c0_i32_0 : i32, i32
  }
  func.func @transform_5(%arg0: i32, %arg1: i32) -> (i32, i32) {
    %c2_i32 = arith.constant 2 : i32
    %0 = arith.muli %arg0, %c2_i32 : i32
    %1 = arith.addi %0, %arg1 : i32
    %c0_i32 = arith.constant 0 : i32
    %c0_i32_0 = arith.constant 0 : i32
    return %1, %c0_i32 : i32, i32
  }
}

</mosaic_0001>

<llo_original>
// kernel: _lambda_.4
$region0: #{_lambda_.4}
  #allocation0 [shape = 'u32[]', space=smem, size = 0x4, offset = 0x4, fixed_abs, tag = 'smem constant byte address 0x4 - core index']
  #allocation1 [shape = 'u32[72,128]{1,0:T(1,128)}', space=vmem, size = 0x9000, scoped, tag = 'internal scratch']
  %s0 = inlined_call_operand.vmem [shape: f32[128,32], index: 0, kind: input, shape index: {}]
  %s1 = inlined_call_operand.vmem [shape: f32[32,96], index: 1, kind: input, shape index: {}]
  %s2 = inlined_call_operand.vmem [shape: f32[1,96], index: 2, kind: input, shape index: {}]
  %s3 = inlined_call_operand.vmem [shape: f32[128,96], index: 3, kind: output, shape index: {}]
  %s4 = sld [smem:[#allocation0]]
  $region22: #{_lambda_.4} parent=0
    _
  %s6 = ssub.s32 1, %s4
  %s7 = scalar_select 0, %s6, %s4
  // Predicated region
  $region2: #{_lambda_.4} parent=0 // pred_check
    _
  $region3: #{_lambda_.4} parent=0 // pred_check_branch
    %9 = sbr.rel (0) target = $region5
  $region4: #{_lambda_.4} parent=0 // pred_region
    _
  $region5: #{_lambda_.4} parent=0 // pred_fallthru
    _
  // Predicated region
  $region6: #{_lambda_.4} parent=0 // pred_check
    _
  $region7: #{_lambda_.4} parent=0 // pred_check_branch
    %11 = sbr.rel (0) target = $region9
  $region8: #{_lambda_.4} parent=0 // pred_region
    _
  $region9: #{_lambda_.4} parent=0 // pred_fallthru
    _
  // Predicated region
  $region10: #{_lambda_.4} parent=0 // pred_check
    _
  $region11: #{_lambda_.4} parent=0 // pred_check_branch
    %13 = sbr.rel (0) target = $region13
  $region12: #{_lambda_.4} parent=0 // pred_region
    _
  $region13: #{_lambda_.4} parent=0 // pred_fallthru
    _
  %v14 = vld [vmem:[%s0] sm:$0xff]
  %v15 = vld [vmem:[%s0 + $0x8] sm:$0xff]
  %v16 = vld [vmem:[%s0 + $0x10] sm:$0xff]
  %v17 = vld [vmem:[%s0 + $0x18] sm:$0xff]
  %v18 = vld [vmem:[%s0 + $0x20] sm:$0xff]
  %v19 = vld [vmem:[%s0 + $0x28] sm:$0xff]
  %v20 = vld [vmem:[%s0 + $0x30] sm:$0xff]
  %v21 = vld [vmem:[%s0 + $0x38] sm:$0xff]
  %v22 = vld [vmem:[%s0 + $0x40] sm:$0xff]
  %v23 = vld [vmem:[%s0 + $0x48] sm:$0xff]
  %v24 = vld [vmem:[%s0 + $0x50] sm:$0xff]
  %v25 = vld [vmem:[%s0 + $0x58] sm:$0xff]
  %v26 = vld [vmem:[%s0 + $0x60] sm:$0xff]
  %v27 = vld [vmem:[%s0 + $0x68] sm:$0xff]
  %v28 = vld [vmem:[%s0 + $0x70] sm:$0xff]
  %v29 = vld [vmem:[%s0 + $0x78] sm:$0xff]
  %v30 = vld [vmem:[%s1] sm:$0xff]
  %v31 = vld [vmem:[%s1 + $0x8] sm:$0xff]
  %v32 = vld [vmem:[%s1 + $0x10] sm:$0xff]
  %v33 = vld [vmem:[%s1 + $0x18] sm:$0xff]
  %v34 = vld [vmem:[%s2] sm:$0x1]
  %v36 = vperm.slane %v34, 0
  %vm38 = vcmask 261120
  %v40 = vsel %vm38, %v14, 0
  %v43 = vsel %vm38, %v15, 0
  %v46 = vsel %vm38, %v16, 0
  %v49 = vsel %vm38, %v17, 0
  %v52 = vsel %vm38, %v18, 0
  %v55 = vsel %vm38, %v19, 0
  %v58 = vsel %vm38, %v20, 0
  %v61 = vsel %vm38, %v21, 0
  %v64 = vsel %vm38, %v22, 0
  %v67 = vsel %vm38, %v23, 0
  %v70 = vsel %vm38, %v24, 0
  %v73 = vsel %vm38, %v25, 0
  %v76 = vsel %vm38, %v26, 0
  %v79 = vsel %vm38, %v27, 0
  %v82 = vsel %vm38, %v28, 0
  %v85 = vsel %vm38, %v29, 0
  %87 = vmatpush.msra.mxu0 0.0
  %88 = vmatpush.msra.mxu0 0.0
  %89 = vmatpush.msra.mxu0 0.0
  %90 = vmatpush.msra.mxu0 0.0
  %91 = vmatpush.msra.mxu0 0.0
  %92 = vmatpush.msra.mxu0 0.0
  %93 = vmatpush.msra.mxu0 0.0
  %94 = vmatpush.msra.mxu0 0.0
  %95 = vmatpush.msra.mxu0 0.0
  %96 = vmatpush.msra.mxu0 0.0
  %97 = vmatpush.msra.mxu0 0.0
  %98 = vmatpush.msra.mxu0 0.0
  %99 = vmatpush.msra.mxu0 %v33
  %100 = vmatpush.msra.mxu0 %v32
  %101 = vmatpush.msra.mxu0 %v31
  %102 = vmatpush.msra.mxu0 %v30
  %103 = vmatmul.f32.gmra.mxu0 %v40
  %v104 = vpop.f32.mrf.mxu0
  %v105 = vadd.f32 %v36, %v104
  %106 = vmatmul.f32.gmra.mxu0 %v43
  %v107 = vpop.f32.mrf.mxu0
  %v108 = vadd.f32 %v36, %v107
  %109 = vmatmul.f32.gmra.mxu0 %v46
  %v110 = vpop.f32.mrf.mxu0
  %v111 = vadd.f32 %v36, %v110
  %112 = vmatmul.f32.gmra.mxu0 %v49
  %v113 = vpop.f32.mrf.mxu0
  %v114 = vadd.f32 %v36, %v113
  %115 = vmatmul.f32.gmra.mxu0 %v52
  %v116 = vpop.f32.mrf.mxu0
  %v117 = vadd.f32 %v36, %v116
  %118 = vmatmul.f32.gmra.mxu0 %v55
  %v119 = vpop.f32.mrf.mxu0
  %v120 = vadd.f32 %v36, %v119
  %121 = vmatmul.f32.gmra.mxu0 %v58
  %v122 = vpop.f32.mrf.mxu0
  %v123 = vadd.f32 %v36, %v122
  %124 = vmatmul.f32.gmra.mxu0 %v61
  %v125 = vpop.f32.mrf.mxu0
  %v126 = vadd.f32 %v36, %v125
  %127 = vmatmul.f32.gmra.mxu0 %v64
  %v128 = vpop.f32.mrf.mxu0
  %v129 = vadd.f32 %v36, %v128
  %130 = vmatmul.f32.gmra.mxu0 %v67
  %v131 = vpop.f32.mrf.mxu0
  %v132 = vadd.f32 %v36, %v131
  %133 = vmatmul.f32.gmra.mxu0 %v70
  %v134 = vpop.f32.mrf.mxu0
  %v135 = vadd.f32 %v36, %v134
  %136 = vmatmul.f32.gmra.mxu0 %v73
  %v137 = vpop.f32.mrf.mxu0
  %v138 = vadd.f32 %v36, %v137
  %139 = vmatmul.f32.gmra.mxu0 %v76
  %v140 = vpop.f32.mrf.mxu0
  %v141 = vadd.f32 %v36, %v140
  %142 = vmatmul.f32.gmra.mxu0 %v79
  %v143 = vpop.f32.mrf.mxu0
  %v144 = vadd.f32 %v36, %v143
  %145 = vmatmul.f32.gmra.mxu0 %v82
  %v146 = vpop.f32.mrf.mxu0
  %v147 = vadd.f32 %v36, %v146
  %148 = vmatmul.f32.gmra.mxu0 %v85
  %v149 = vpop.f32.mrf.mxu0
  %v150 = vadd.f32 %v36, %v149
  %151 = vdwg.mxu0
  %vm152 = vcmask 785408
  %153 = vst.msk [vmem:[%s3] sm:$0xff] %vm152, %v105
  %154 = vst.msk [vmem:[%s3 + $0x8] sm:$0xff] %vm152, %v108
  %155 = vst.msk [vmem:[%s3 + $0x10] sm:$0xff] %vm152, %v111
  %156 = vst.msk [vmem:[%s3 + $0x18] sm:$0xff] %vm152, %v114
  %157 = vst.msk [vmem:[%s3 + $0x20] sm:$0xff] %vm152, %v117
  %158 = vst.msk [vmem:[%s3 + $0x28] sm:$0xff] %vm152, %v120
  %159 = vst.msk [vmem:[%s3 + $0x30] sm:$0xff] %vm152, %v123
  %160 = vst.msk [vmem:[%s3 + $0x38] sm:$0xff] %vm152, %v126
  %161 = vst.msk [vmem:[%s3 + $0x40] sm:$0xff] %vm152, %v129
  %162 = vst.msk [vmem:[%s3 + $0x48] sm:$0xff] %vm152, %v132
  %163 = vst.msk [vmem:[%s3 + $0x50] sm:$0xff] %vm152, %v135
  %164 = vst.msk [vmem:[%s3 + $0x58] sm:$0xff] %vm152, %v138
  %165 = vst.msk [vmem:[%s3 + $0x60] sm:$0xff] %vm152, %v141
  %166 = vst.msk [vmem:[%s3 + $0x68] sm:$0xff] %vm152, %v144
  %167 = vst.msk [vmem:[%s3 + $0x70] sm:$0xff] %vm152, %v147
  %168 = vst.msk [vmem:[%s3 + $0x78] sm:$0xff] %vm152, %v150
  // Predicated region
  $region14: #{_lambda_.4} parent=0 // pred_check
    _
  $region15: #{_lambda_.4} parent=0 // pred_check_branch
    %170 = sbr.rel (0) target = $region17
  $region16: #{_lambda_.4} parent=0 // pred_region
    _
  $region17: #{_lambda_.4} parent=0 // pred_fallthru
    _
  // Predicated region
  $region18: #{_lambda_.4} parent=0 // pred_check
    _
  $region19: #{_lambda_.4} parent=0 // pred_check_branch
    %172 = sbr.rel (0) target = $region21
  $region20: #{_lambda_.4} parent=0 // pred_region
    _
  $region21: #{_lambda_.4} parent=0 // pred_fallthru
    _

// kernel: _lambda_.5
$region0: #{_lambda_.5}
  #allocation0 [shape = 'u32[]', space=smem, size = 0x4, offset = 0x4, fixed_abs, tag = 'smem constant byte address 0x4 - core index']
  #allocation1 [shape = 'u32[72,128]{1,0:T(1,128)}', space=vmem, size = 0x9000, scoped, tag = 'internal scratch']
  %s0 = inlined_call_operand.vmem [shape: f32[8,32], index: 0, kind: input, shape index: {}]
  %s1 = inlined_call_operand.vmem [shape: f32[32,96], index: 1, kind: input, shape index: {}]
  %s2 = inlined_call_operand.vmem [shape: f32[1,96], index: 2, kind: input, shape index: {}]
  %s3 = inlined_call_operand.vmem [shape: f32[8,96], index: 3, kind: output, shape index: {}]
  %s4 = sld [smem:[#allocation0]]
  $region22: #{_lambda_.5} parent=0
    _
  %s6 = ssub.s32 1, %s4
  %s7 = scalar_select 0, %s6, %s4
  // Predicated region
  $region2: #{_lambda_.5} parent=0 // pred_check
    _
  $region3: #{_lambda_.5} parent=0 // pred_check_branch
    %9 = sbr.rel (0) target = $region5
  $region4: #{_lambda_.5} parent=0 // pred_region
    _
  $region5: #{_lambda_.5} parent=0 // pred_fallthru
    _
  // Predicated region
  $region6: #{_lambda_.5} parent=0 // pred_check
    _
  $region7: #{_lambda_.5} parent=0 // pred_check_branch
    %11 = sbr.rel (0) target = $region9
  $region8: #{_lambda_.5} parent=0 // pred_region
    _
  $region9: #{_lambda_.5} parent=0 // pred_fallthru
    _
  // Predicated region
  $region10: #{_lambda_.5} parent=0 // pred_check
    _
  $region11: #{_lambda_.5} parent=0 // pred_check_branch
    %13 = sbr.rel (0) target = $region13
  $region12: #{_lambda_.5} parent=0 // pred_region
    _
  $region13: #{_lambda_.5} parent=0 // pred_fallthru
    _
  %v14 = vld [vmem:[%s0] sm:$0xff]
  %v15 = vld [vmem:[%s1] sm:$0xff]
  %v16 = vld [vmem:[%s1 + $0x8] sm:$0xff]
  %v17 = vld [vmem:[%s1 + $0x10] sm:$0xff]
  %v18 = vld [vmem:[%s1 + $0x18] sm:$0xff]
  %v19 = vld [vmem:[%s2] sm:$0x1]
  %v21 = vperm.slane %v19, 0
  %vm23 = vcmask 261120
  %v25 = vsel %vm23, %v14, 0
  %27 = vmatpush.msra.mxu0 0.0
  %28 = vmatpush.msra.mxu0 0.0
  %29 = vmatpush.msra.mxu0 0.0
  %30 = vmatpush.msra.mxu0 0.0
  %31 = vmatpush.msra.mxu0 0.0
  %32 = vmatpush.msra.mxu0 0.0
  %33 = vmatpush.msra.mxu0 0.0
  %34 = vmatpush.msra.mxu0 0.0
  %35 = vmatpush.msra.mxu0 0.0
  %36 = vmatpush.msra.mxu0 0.0
  %37 = vmatpush.msra.mxu0 0.0
  %38 = vmatpush.msra.mxu0 0.0
  %39 = vmatpush.msra.mxu0 %v18
  %40 = vmatpush.msra.mxu0 %v17
  %41 = vmatpush.msra.mxu0 %v16
  %42 = vmatpush.msra.mxu0 %v15
  %43 = vmatmul.f32.gmra.mxu0 %v25
  %v44 = vpop.f32.mrf.mxu0
  %v45 = vadd.f32 %v21, %v44
  %46 = vdwg.mxu0
  %vm47 = vcmask 785408
  %48 = vst.msk [vmem:[%s3] sm:$0xff] %vm47, %v45
  // Predicated region
  $region14: #{_lambda_.5} parent=0 // pred_check
    _
  $region15: #{_lambda_.5} parent=0 // pred_check_branch
    %50 = sbr.rel (0) target = $region17
  $region16: #{_lambda_.5} parent=0 // pred_region
    _
  $region17: #{_lambda_.5} parent=0 // pred_fallthru
    _
  // Predicated region
  $region18: #{_lambda_.5} parent=0 // pred_check
    _
  $region19: #{_lambda_.5} parent=0 // pred_check_branch
    %52 = sbr.rel (0) target = $region21
  $region20: #{_lambda_.5} parent=0 // pred_region
    _
  $region21: #{_lambda_.5} parent=0 // pred_fallthru
    _

// kernel: _lambda_.6
$region0: #{_lambda_.6}
  #allocation0 [shape = 'u32[]', space=smem, size = 0x4, offset = 0x4, fixed_abs, tag = 'smem constant byte address 0x4 - core index']
  #allocation1 [shape = 'u32[72,128]{1,0:T(1,128)}', space=vmem, size = 0x9000, scoped, tag = 'internal scratch']
  #allocation2 [shape = 'f32[4,1,1]{2,1,0:T(1,128)}', space=vmem, size = 0x800, scoped, tag = 'scratch operand']
  #allocation3 [shape = 'f32[4,1,1]{2,1,0:T(1,128)}', space=vmem, size = 0x800, scoped, tag = 'scratch operand']
  #allocation4 [shape = 'f32[4,1,8]{2,1,0:T(1,128)}', space=vmem, size = 0x800, scoped, tag = 'scratch operand']
  %s0 = inlined_call_operand.vmem [shape: f32[2,1,96], index: 0, kind: input, shape index: {}]
  %s1 = inlined_call_operand.vmem [shape: f32[2,64,96], index: 1, kind: input, shape index: {}]
  %s2 = inlined_call_operand.vmem [shape: f32[32,64], index: 2, kind: input, shape index: {}]
  %s3 = inlined_call_operand.vmem [shape: f32[1,64], index: 3, kind: input, shape index: {}]
  %s4 = inlined_call_operand.vmem [shape: f32[32,32], index: 4, kind: input, shape index: {}]
  %s5 = inlined_call_operand.vmem [shape: f32[1,32], index: 5, kind: input, shape index: {}]
  %s6 = inlined_call_operand.vmem [shape: f32[2,1,64], index: 6, kind: output, shape index: {0}]
  %s7 = inlined_call_operand.vmem [shape: f32[2,1,32], index: 7, kind: output, shape index: {1}]
  %8 = xla_tuple %s6, %s7
  %s9 = sld [smem:[#allocation0]]
  $region73: #{_lambda_.6} parent=0
    _
  %s11 = ssub.s32 1, %s9
  %s12 = scalar_select 0, %s11, %s9
  loop: start=0, step=1, limit=6
  $region2: #{_lambda_.6} parent=0 // loop_pre_header
    _
  $region3: #{_lambda_.6} parent=0 // loop_header
    %s14 = sphi 0, %s18
    %p15 = scmp.ge.s32.totalorder %s14, 6
    %s21 = sphi 0, %s33
    %s22 = sphi 0, %s29
    %s23 = sphi 0, %s21
    %s24 = sphi 0, %s22
    %s25 = sphi 0, %s23
    %s26 = sphi 0, %s24
    %s36 = sphi 0, %s38
    %s39 = sphi 0, %s36
    %s40 = sphi 0, %s39
    %s56 = sphi 0, %s40
    %s64 = sphi 0, %s66
    %s67 = sphi 0, %s64
    %s68 = sphi 0, %s67
    %s84 = sphi 0, %s68
    %s88 = sphi 0, %s88
    %s90 = sphi 0, %s88
    %s91 = sphi 0, %s90
    %s105 = sphi 0, %s91
    %s109 = sphi 0, %s109
    %s111 = sphi 0, %s109
    %s112 = sphi 0, %s111
    %s126 = sphi 0, %s112
    %s130 = sphi 0, %s130
    %s132 = sphi 0, %s130
    %s133 = sphi 0, %s132
    %s147 = sphi 0, %s133
    %s151 = sphi 0, %s151
    %s153 = sphi 0, %s151
    %s154 = sphi 0, %s153
    %s168 = sphi 0, %s154
    %s174 = sphi 0, %s176
    %s177 = sphi 0, %s174
    %s178 = sphi 0, %s177
    %s194 = sphi 0, %s178
    %s200 = sphi 0, %s202
    %s203 = sphi 0, %s200
    %s204 = sphi 0, %s203
    %s220 = sphi 0, %s204
  $region4: #{_lambda_.6} parent=0 // loop_header_branch
    %17 = sbr.rel (%p15) target = $region8
  $region5: #{_lambda_.6} parent=0 // loop_body
    %s19 = ssub.s32 %s14, 1
    %s20 = ssub.s32 %s14, 2
    %s27 = sadd.s32 1, %s22
    %p28 = scmp.ge.s32.totalorder %s27, 2
    %s29 = scalar_select %p28, 0, %s27
    %s30 = sadd.s32 1, %s21
    %s31 = scalar_select %p28, %s30, %s21
    %p32 = scmp.ge.s32.totalorder %s31, 2
    %s33 = scalar_select %p32, 0, %s31
    %s34 = ssub.s32 %s21, %s33
    %p35 = scmp.eq.s32.totalorder %s34, 0
    %s37 = sadd.s32 %s36, 1
    %s38 = scalar_select %p35, %s36, %s37
    %p41 = pneg %p35
    %p42 = scmp.eq.s32.totalorder %s14, 3
    %p43 = por %p41, %p42
    %p44 = scmp.ne.s32.totalorder %s36, %s39
    %p45 = scmp.eq.s32.totalorder %s14, 0
    %p46 = por %p44, %p45
    %p47 = scmp.ne.s32.totalorder %s36, %s39
    %p48 = scmp.eq.s32.totalorder %s19, 3
    %p49 = por %p47, %p48
    %p50 = scmp.ne.s32.totalorder %s39, %s40
    %p51 = scmp.eq.s32.totalorder %s19, 0
    %p52 = por %p50, %p51
    %p53 = scmp.ne.s32.totalorder %s39, %s40
    %p54 = scmp.eq.s32.totalorder %s20, 3
    %p55 = por %p53, %p54
    %p57 = scmp.ne.s32.totalorder %s40, %s56
    %p58 = scmp.eq.s32.totalorder %s20, 0
    %p59 = por %p57, %p58
    %s60 = ssub.s32 %s21, %s33
    %s61 = ssub.s32 %s22, %s29
    %s62 = sor.u32 %s60, %s61
    %p63 = scmp.eq.s32.totalorder %s62, 0
    %s65 = sadd.s32 %s64, 1
    %s66 = scalar_select %p63, %s64, %s65
    %p69 = pneg %p63
    %p70 = scmp.eq.s32.totalorder %s14, 3
    %p71 = por %p69, %p70
    %p72 = scmp.ne.s32.totalorder %s64, %s67
    %p73 = scmp.eq.s32.totalorder %s14, 0
    %p74 = por %p72, %p73
    %p75 = scmp.ne.s32.totalorder %s64, %s67
    %p76 = scmp.eq.s32.totalorder %s19, 3
    %p77 = por %p75, %p76
    %p78 = scmp.ne.s32.totalorder %s67, %s68
    %p79 = scmp.eq.s32.totalorder %s19, 0
    %p80 = por %p78, %p79
    %p81 = scmp.ne.s32.totalorder %s67, %s68
    %p82 = scmp.eq.s32.totalorder %s20, 3
    %p83 = por %p81, %p82
    %p85 = scmp.ne.s32.totalorder %s68, %s84
    %p86 = scmp.eq.s32.totalorder %s20, 0
    %p87 = por %p85, %p86
    %s89 = sadd.s32 %s88, 1
    %p92 = scmp.eq.s32.totalorder %s14, 3
    %p93 = scmp.ne.s32.totalorder %s88, %s90
    %p94 = scmp.eq.s32.totalorder %s14, 0
    %p95 = por %p93, %p94
    %p96 = scmp.ne.s32.totalorder %s88, %s90
    %p97 = scmp.eq.s32.totalorder %s19, 3
    %p98 = por %p96, %p97
    %p99 = scmp.ne.s32.totalorder %s90, %s91
    %p100 = scmp.eq.s32.totalorder %s19, 0
    %p101 = por %p99, %p100
    %p102 = scmp.ne.s32.totalorder %s90, %s91
    %p103 = scmp.eq.s32.totalorder %s20, 3
    %p104 = por %p102, %p103
    %p106 = scmp.ne.s32.totalorder %s91, %s105
    %p107 = scmp.eq.s32.totalorder %s20, 0
    %p108 = por %p106, %p107
    %s110 = sadd.s32 %s109, 1
    %p113 = scmp.eq.s32.totalorder %s14, 3
    %p114 = scmp.ne.s32.totalorder %s109, %s111
    %p115 = scmp.eq.s32.totalorder %s14, 0
    %p116 = por %p114, %p115
    %p117 = scmp.ne.s32.totalorder %s109, %s111
    %p118 = scmp.eq.s32.totalorder %s19, 3
    %p119 = por %p117, %p118
    %p120 = scmp.ne.s32.totalorder %s111, %s112
    %p121 = scmp.eq.s32.totalorder %s19, 0
    %p122 = por %p120, %p121
    %p123 = scmp.ne.s32.totalorder %s111, %s112
    %p124 = scmp.eq.s32.totalorder %s20, 3
    %p125 = por %p123, %p124
    %p127 = scmp.ne.s32.totalorder %s112, %s126
    %p128 = scmp.eq.s32.totalorder %s20, 0
    %p129 = por %p127, %p128
    %s131 = sadd.s32 %s130, 1
    %p134 = scmp.eq.s32.totalorder %s14, 3
    %p135 = scmp.ne.s32.totalorder %s130, %s132
    %p136 = scmp.eq.s32.totalorder %s14, 0
    %p137 = por %p135, %p136
    %p138 = scmp.ne.s32.totalorder %s130, %s132
    %p139 = scmp.eq.s32.totalorder %s19, 3
    %p140 = por %p138, %p139
    %p141 = scmp.ne.s32.totalorder %s132, %s133
    %p142 = scmp.eq.s32.totalorder %s19, 0
    %p143 = por %p141, %p142
    %p144 = scmp.ne.s32.totalorder %s132, %s133
    %p145 = scmp.eq.s32.totalorder %s20, 3
    %p146 = por %p144, %p145
    %p148 = scmp.ne.s32.totalorder %s133, %s147
    %p149 = scmp.eq.s32.totalorder %s20, 0
    %p150 = por %p148, %p149
    %s152 = sadd.s32 %s151, 1
    %p155 = scmp.eq.s32.totalorder %s14, 3
    %p156 = scmp.ne.s32.totalorder %s151, %s153
    %p157 = scmp.eq.s32.totalorder %s14, 0
    %p158 = por %p156, %p157
    %p159 = scmp.ne.s32.totalorder %s151, %s153
    %p160 = scmp.eq.s32.totalorder %s19, 3
    %p161 = por %p159, %p160
    %p162 = scmp.ne.s32.totalorder %s153, %s154
    %p163 = scmp.eq.s32.totalorder %s19, 0
    %p164 = por %p162, %p163
    %p165 = scmp.ne.s32.totalorder %s153, %s154
    %p166 = scmp.eq.s32.totalorder %s20, 3
    %p167 = por %p165, %p166
    %p169 = scmp.ne.s32.totalorder %s154, %s168
    %p170 = scmp.eq.s32.totalorder %s20, 0
    %p171 = por %p169, %p170
    %s172 = ssub.s32 %s21, %s33
    %p173 = scmp.eq.s32.totalorder %s172, 0
    %s175 = sadd.s32 %s174, 1
    %s176 = scalar_select %p173, %s174, %s175
    %p179 = pneg %p173
    %p180 = scmp.eq.s32.totalorder %s14, 3
    %p181 = por %p179, %p180
    %p182 = scmp.ne.s32.totalorder %s174, %s177
    %p183 = scmp.eq.s32.totalorder %s14, 0
    %p184 = por %p182, %p183
    %p185 = scmp.ne.s32.totalorder %s174, %s177
    %p186 = scmp.eq.s32.totalorder %s19, 3
    %p187 = por %p185, %p186
    %p188 = scmp.ne.s32.totalorder %s177, %s178
    %p189 = scmp.eq.s32.totalorder %s19, 0
    %p190 = por %p188, %p189
    %p191 = scmp.ne.s32.totalorder %s177, %s178
    %p192 = scmp.eq.s32.totalorder %s20, 3
    %p193 = por %p191, %p192
    %p195 = scmp.ne.s32.totalorder %s178, %s194
    %p196 = scmp.eq.s32.totalorder %s20, 0
    %p197 = por %p195, %p196
    %s198 = ssub.s32 %s21, %s33
    %p199 = scmp.eq.s32.totalorder %s198, 0
    %s201 = sadd.s32 %s200, 1
    %s202 = scalar_select %p199, %s200, %s201
    %p205 = pneg %p199
    %p206 = scmp.eq.s32.totalorder %s14, 3
    %p207 = por %p205, %p206
    %p208 = scmp.ne.s32.totalorder %s200, %s203
    %p209 = scmp.eq.s32.totalorder %s14, 0
    %p210 = por %p208, %p209
    %p211 = scmp.ne.s32.totalorder %s200, %s203
    %p212 = scmp.eq.s32.totalorder %s19, 3
    %p213 = por %p211, %p212
    %p214 = scmp.ne.s32.totalorder %s203, %s204
    %p215 = scmp.eq.s32.totalorder %s19, 0
    %p216 = por %p214, %p215
    %p217 = scmp.ne.s32.totalorder %s203, %s204
    %p218 = scmp.eq.s32.totalorder %s20, 3
    %p219 = por %p217, %p218
    %p221 = scmp.ne.s32.totalorder %s204, %s220
    %p222 = scmp.eq.s32.totalorder %s20, 0
    %p223 = por %p221, %p222
    %p224 = scmp.le.s32.totalorder 1, %s14
    %p225 = scmp.lt.s32.totalorder %s14, 5
    %p226 = pnand %p224, %p225
    %p227 = pneg %p226
    // Predicated region
    $region9: #{_lambda_.6} parent=5 // pred_check
      _
    $region10: #{_lambda_.6} parent=5 // pred_check_branch
      %229 = sbr.rel (%p226) target = $region12
    $region11: #{_lambda_.6} parent=5 // pred_region
      %s230 = ssub.s32 %s14, 1
      // Predicated region
      $region13: #{_lambda_.6} parent=11 // pred_check
        %p231 = pneg %p101
      $region14: #{_lambda_.6} parent=11 // pred_check_branch
        %233 = sbr.rel (%p231) target = $region16
      $region15: #{_lambda_.6} parent=11 // pred_region
        _
      $region16: #{_lambda_.6} parent=11 // pred_fallthru
        _
      // Predicated region
      $region17: #{_lambda_.6} parent=11 // pred_check
        %p234 = pneg %p122
      $region18: #{_lambda_.6} parent=11 // pred_check_branch
        %236 = sbr.rel (%p234) target = $region20
      $region19: #{_lambda_.6} parent=11 // pred_region
        _
      $region20: #{_lambda_.6} parent=11 // pred_fallthru
        _
      // Predicated region
      $region21: #{_lambda_.6} parent=11 // pred_check
        %p237 = pneg %p143
      $region22: #{_lambda_.6} parent=11 // pred_check_branch
        %239 = sbr.rel (%p237) target = $region24
      $region23: #{_lambda_.6} parent=11 // pred_region
        _
      $region24: #{_lambda_.6} parent=11 // pred_fallthru
        _
      // Predicated region
      $region25: #{_lambda_.6} parent=11 // pred_check
        %p240 = pneg %p164
      $region26: #{_lambda_.6} parent=11 // pred_check_branch
        %242 = sbr.rel (%p240) target = $region28
      $region27: #{_lambda_.6} parent=11 // pred_region
        _
      $region28: #{_lambda_.6} parent=11 // pred_fallthru
        _
    $region12: #{_lambda_.6} parent=5 // pred_fallthru
      _
    %p243 = scmp.lt.s32.totalorder %s14, 4
    // Predicated region
    $region29: #{_lambda_.6} parent=5 // pred_check
      %p244 = pneg %p243
    $region30: #{_lambda_.6} parent=5 // pred_check_branch
      %246 = sbr.rel (%p244) target = $region32
    $region31: #{_lambda_.6} parent=5 // pred_region
      // Predicated region
      $region33: #{_lambda_.6} parent=31 // pred_check
        %p247 = pneg %p46
      $region34: #{_lambda_.6} parent=31 // pred_check_branch
        %249 = sbr.rel (%p247) target = $region36
      $region35: #{_lambda_.6} parent=31 // pred_region
        %p250 = scmp.lt.s32.totalorder %s21, 1
        %s251 = scalar_select %p250, %s21, 1
        %s252 = scalar_lea.vmem %s0, %s251
      $region36: #{_lambda_.6} parent=31 // pred_fallthru
        _
      // Predicated region
      $region37: #{_lambda_.6} parent=31 // pred_check
        %p253 = pneg %p74
      $region38: #{_lambda_.6} parent=31 // pred_check_branch
        %255 = sbr.rel (%p253) target = $region40
      $region39: #{_lambda_.6} parent=31 // pred_region
        %s256 = smul.u32 4, %s22
        %p257 = scmp.lt.s32.totalorder %s21, 1
        %s258 = scalar_select %p257, %s21, 1
        %p259 = scmp.lt.s32.totalorder %s256, 7
        %s260 = scalar_select %p259, %s256, 7
        %s261 = smul.addr %s258, 8
        %s262 = sadd.s32 %s260, %s261
        %s263 = smul.addr %s262, 8
        %s264 = scalar_lea.vmem %s1, %s263
        %s265 = smul.u32 4, %s22
      $region40: #{_lambda_.6} parent=31 // pred_fallthru
        _
    $region32: #{_lambda_.6} parent=5 // pred_fallthru
      _
    %p266 = scmp.le.s32.totalorder 1, %s14
    %p267 = scmp.lt.s32.totalorder %s14, 5
    %p268 = pnand %p266, %p267
    %p269 = pneg %p268
    // Predicated region
    $region41: #{_lambda_.6} parent=5 // pred_check
      _
    $region42: #{_lambda_.6} parent=5 // pred_check_branch
      %271 = sbr.rel (%p268) target = $region44
    $region43: #{_lambda_.6} parent=5 // pred_region
      %s272 = ssub.s32 %s14, 1
      %p273 = scmp.lt.s32.totalorder %s23, 1
      %s274 = scalar_select %p273, %s23, 1
      %s275 = scalar_lea.vmem %s0, %s274
      %p276 = pneg %p52
      %p277 = pneg %p49
      %s278 = smul.u32 4, %s24
      %p279 = scmp.lt.s32.totalorder %s23, 1
      %s280 = scalar_select %p279, %s23, 1
      %p281 = scmp.lt.s32.totalorder %s278, 7
      %s282 = scalar_select %p281, %s278, 7
      %s283 = smul.addr %s280, 8
      %s284 = sadd.s32 %s282, %s283
      %s285 = smul.addr %s284, 8
      %s286 = scalar_lea.vmem %s1, %s285
      %p287 = pneg %p80
      %p288 = pneg %p77
      %p289 = pneg %p101
      %p290 = pneg %p98
      %p291 = pneg %p122
      %p292 = pneg %p119
      %p293 = pneg %p143
      %p294 = pneg %p140
      %p295 = pneg %p164
      %p296 = pneg %p161
      %p297 = pneg %p190
      %p298 = pneg %p187
      %p299 = scmp.lt.s32.totalorder %s23, 1
      %s300 = scalar_select %p299, %s23, 1
      %s301 = scalar_lea.vmem %s6, %s300
      %p302 = pneg %p216
      %p303 = pneg %p213
      %p304 = scmp.lt.s32.totalorder %s23, 1
      %s305 = scalar_select %p304, %s23, 1
      %s306 = scalar_lea.vmem %s7, %s305
      %p307 = scmp.lt.s32.totalorder %s23, 1
      %s308 = scalar_select %p307, %s23, 1
      %s309 = scalar_lea.vmem %s0, %s308
      %s310 = smul.u32 4, %s24
      %p311 = scmp.lt.s32.totalorder %s23, 1
      %s312 = scalar_select %p311, %s23, 1
      %p313 = scmp.lt.s32.totalorder %s310, 7
      %s314 = scalar_select %p313, %s310, 7
      %s315 = smul.addr %s312, 8
      %s316 = sadd.s32 %s314, %s315
      %s317 = smul.addr %s316, 8
      %s318 = scalar_lea.vmem %s1, %s317
      %s319 = smul.u32 4, %s24
      %p320 = scmp.lt.s32.totalorder %s23, 1
      %s321 = scalar_select %p320, %s23, 1
      %s322 = scalar_lea.vmem %s6, %s321
      %p323 = scmp.lt.s32.totalorder %s23, 1
      %s324 = scalar_select %p323, %s23, 1
      %s325 = scalar_lea.vmem %s7, %s324
      %p326 = scmp.eq.s32.totalorder %s24, 0
      // Predicated region
      $region45: #{_lambda_.6} parent=43 // pred_check
        %p327 = pneg %p326
      $region46: #{_lambda_.6} parent=43 // pred_check_branch
        %329 = sbr.rel (%p327) target = $region48
      $region47: #{_lambda_.6} parent=43 // pred_region
        %vm330 = vcmask 0
        %331 = vst.msk [vmem:[#allocation2] sm:$0x1] %vm330, -inf
        %332 = vst.msk [vmem:[#allocation2 + $0x1] sm:$0x1] %vm330, -inf
        %333 = vst.msk [vmem:[#allocation2 + $0x2] sm:$0x1] %vm330, -inf
        %334 = vst.msk [vmem:[#allocation2 + $0x3] sm:$0x1] %vm330, -inf
        %335 = vst.msk [vmem:[#allocation3] sm:$0x1] %vm330, 0.0
        %336 = vst.msk [vmem:[#allocation3 + $0x1] sm:$0x1] %vm330, 0.0
        %337 = vst.msk [vmem:[#allocation3 + $0x2] sm:$0x1] %vm330, 0.0
        %338 = vst.msk [vmem:[#allocation3 + $0x3] sm:$0x1] %vm330, 0.0
        %vm339 = vcmask 57344
        %340 = vst.msk [vmem:[#allocation4] sm:$0x1] %vm339, 0.0
        %341 = vst.msk [vmem:[#allocation4 + $0x1] sm:$0x1] %vm339, 0.0
        %342 = vst.msk [vmem:[#allocation4 + $0x2] sm:$0x1] %vm339, 0.0
        %343 = vst.msk [vmem:[#allocation4 + $0x3] sm:$0x1] %vm339, 0.0
      $region48: #{_lambda_.6} parent=43 // pred_fallthru
        _
      %v344 = vld [vmem:[%s309] sm:$0x1]
      %v345 = vld [vmem:[%s318] sm:$0xff]
      %v346 = vld [vmem:[%s318 + $0x8] sm:$0xff]
      %v347 = vld [vmem:[%s318 + $0x10] sm:$0xff]
      %v348 = vld [vmem:[%s318 + $0x18] sm:$0xff]
      %s349 = smul.u32 %s24, 32
      %v350 = vlaneseq
      %v351 = vand.u32 %v350, 127
      %v352 = vstv %s349
      %v353 = vadd.s32 %v352, %v351
      %vm354 = vcmp.lt.s32.totalorder %v353, 64
      %359 = vrot.lane.b32.xlu0 %v345, 96
      %v360 = vpop.permute.xlu0 %359
      %361 = vrot.lane.b32.xlu0 %v346, 96
      %v362 = vpop.permute.xlu0 %361
      %363 = vrot.lane.b32.xlu0 %v347, 96
      %v364 = vpop.permute.xlu0 %363
      %365 = vrot.lane.b32.xlu0 %v348, 96
      %v366 = vpop.permute.xlu0 %365
      %vm367 = vcmask 64512
      %v369 = vsel %vm367, %v344, 0
      %v371 = vsel %vm367, %v360, 0
      %v373 = vsel %vm367, %v362, 0
      %v375 = vsel %vm367, %v364, 0
      %v377 = vsel %vm367, %v366, 0
      %379 = vmatpush.xpose.msra.mxu0 0.0
      %380 = vmatpush.xpose.msra.mxu0 0.0
      %381 = vmatpush.xpose.msra.mxu0 0.0
      %382 = vmatpush.xpose.msra.mxu0 0.0
      %383 = vmatpush.xpose.msra.mxu0 0.0
      %384 = vmatpush.xpose.msra.mxu0 0.0
      %385 = vmatpush.xpose.msra.mxu0 0.0
      %386 = vmatpush.xpose.msra.mxu0 0.0
      %387 = vmatpush.xpose.msra.mxu0 0.0
      %388 = vmatpush.xpose.msra.mxu0 0.0
      %389 = vmatpush.xpose.msra.mxu0 0.0
      %390 = vmatpush.xpose.msra.mxu0 0.0
      %391 = vmatpush.xpose.msra.mxu0 %v377
      %392 = vmatpush.xpose.msra.mxu0 %v375
      %393 = vmatpush.xpose.msra.mxu0 %v373
      %394 = vmatpush.xpose.msra.mxu0 %v371
      %395 = vmatmul.f32.gmra.mxu0 %v369
      %v396 = vpop.f32.mrf.mxu0
      %v397 = vadd.f32 0.0, %v396
      %398 = vdwg.mxu0
      %v399 = vmul.f32 %v397, 0.35355338
      %v400 = vsel %vm354, %v399, -inf
      %v401 = vld [vmem:[#allocation2] sm:$0x1]
      %vm402 = vcmask 253952
      %v403 = vsel %vm402, %v400, -inf
      %404 = vmax.xlane.f32.xlu0 %v403
      %v405 = vpop.xlane.xlu0 %404
      %v406 = vmax.f32 %v401, %v405
      %v407 = vsub.f32 %v401, %v406
      %v408 = vmul.f32 %v407, 1.442695
      %v409 = vpow.pop %v408
      %411 = vset.pattern.permute.xlu0 0
      %412 = vperm.xlu0 %411, %v406
      %v413 = vpop.permute.xlu0 %412
      %v415 = vperm.slane %v413, 0
      %v416 = vsub.f32 %v400, %v415
      %v417 = vmul.f32 %v416, 1.442695
      %v418 = vpow.pop %v417
      %v419 = vld [vmem:[#allocation3] sm:$0x1]
      %v420 = vmul.f32 %v409, %v419
      %v421 = vsel %vm402, %v418, 0.0
      %422 = vadd.xlane.f32.xlu0 %v421
      %v423 = vpop.xlane.xlu0 %422
      %v424 = vadd.f32 %v420, %v423
      %vm425 = vcmask 0
      %426 = vst.msk [vmem:[#allocation3] sm:$0x1] %vm425, %v424
      %v427 = vld [vmem:[#allocation4] sm:$0x1]
      %429 = vset.pattern.permute.xlu0 0
      %430 = vperm.xlu0 %429, %v409
      %v431 = vpop.permute.xlu0 %430
      %v433 = vperm.slane %v431, 0
      %v434 = vmul.f32 %v433, %v427
      %435 = vrot.lane.b32.xlu0 %v345, 64
      %v436 = vpop.permute.xlu0 %435
      %437 = vrot.lane.b32.xlu0 %v346, 64
      %v438 = vpop.permute.xlu0 %437
      %439 = vrot.lane.b32.xlu0 %v347, 64
      %v440 = vpop.permute.xlu0 %439
      %441 = vrot.lane.b32.xlu0 %v348, 64
      %v442 = vpop.permute.xlu0 %441
      %vm447 = vcmask 261120
      %v449 = vsel %vm447, %v418, 0
      %451 = vmatpush.msra.mxu0 0.0
      %452 = vmatpush.msra.mxu0 0.0
      %453 = vmatpush.msra.mxu0 0.0
      %454 = vmatpush.msra.mxu0 0.0
      %455 = vmatpush.msra.mxu0 0.0
      %456 = vmatpush.msra.mxu0 0.0
      %457 = vmatpush.msra.mxu0 0.0
      %458 = vmatpush.msra.mxu0 0.0
      %459 = vmatpush.msra.mxu0 0.0
      %460 = vmatpush.msra.mxu0 0.0
      %461 = vmatpush.msra.mxu0 0.0
      %462 = vmatpush.msra.mxu0 0.0
      %463 = vmatpush.msra.mxu0 %v442
      %464 = vmatpush.msra.mxu0 %v440
      %465 = vmatpush.msra.mxu0 %v438
      %466 = vmatpush.msra.mxu0 %v436
      %467 = vmatmul.f32.gmra.mxu0 %v449
      %v468 = vpop.f32.mrf.mxu0
      %v469 = vadd.f32 0.0, %v468
      %470 = vdwg.mxu0
      %v471 = vadd.f32 %v434, %v469
      %vm472 = vcmask 57344
      %473 = vst.msk [vmem:[#allocation4] sm:$0x1] %vm472, %v471
      %474 = vst.msk [vmem:[#allocation2] sm:$0x1] %vm425, %v406
      %v475 = vperm.slane %v344, 0
      %476 = vrot.lane.b32.xlu0 %v475, 120
      %v477 = vpop.permute.xlu0 %476
      %478 = vrot.lane.b32.xlu0 %v345, 88
      %v479 = vpop.permute.xlu0 %478
      %480 = vrot.lane.b32.xlu0 %v346, 88
      %v481 = vpop.permute.xlu0 %480
      %482 = vrot.lane.b32.xlu0 %v347, 88
      %v483 = vpop.permute.xlu0 %482
      %484 = vrot.lane.b32.xlu0 %v348, 88
      %v485 = vpop.permute.xlu0 %484
      %v486 = vsel %vm367, %v477, 0
      %v488 = vsel %vm367, %v479, 0
      %v490 = vsel %vm367, %v481, 0
      %v492 = vsel %vm367, %v483, 0
      %v494 = vsel %vm367, %v485, 0
      %496 = vmatpush.xpose.msra.mxu0 0.0
      %497 = vmatpush.xpose.msra.mxu0 0.0
      %498 = vmatpush.xpose.msra.mxu0 0.0
      %499 = vmatpush.xpose.msra.mxu0 0.0
      %500 = vmatpush.xpose.msra.mxu0 0.0
      %501 = vmatpush.xpose.msra.mxu0 0.0
      %502 = vmatpush.xpose.msra.mxu0 0.0
      %503 = vmatpush.xpose.msra.mxu0 0.0
      %504 = vmatpush.xpose.msra.mxu0 0.0
      %505 = vmatpush.xpose.msra.mxu0 0.0
      %506 = vmatpush.xpose.msra.mxu0 0.0
      %507 = vmatpush.xpose.msra.mxu0 0.0
      %508 = vmatpush.xpose.msra.mxu0 %v494
      %509 = vmatpush.xpose.msra.mxu0 %v492
      %510 = vmatpush.xpose.msra.mxu0 %v490
      %511 = vmatpush.xpose.msra.mxu0 %v488
      %512 = vmatmul.f32.gmra.mxu0 %v486
      %v513 = vpop.f32.mrf.mxu0
      %v514 = vadd.f32 0.0, %v513
      %515 = vdwg.mxu0
      %v516 = vmul.f32 %v514, 0.35355338
      %v517 = vsel %vm354, %v516, -inf
      %s518 = scalar_lea.vmem [#allocation2], 1
      %v519 = vld [vmem:[%s518] sm:$0x1]
      %v520 = vsel %vm402, %v517, -inf
      %521 = vmax.xlane.f32.xlu0 %v520
      %v522 = vpop.xlane.xlu0 %521
      %v523 = vmax.f32 %v519, %v522
      %v524 = vsub.f32 %v519, %v523
      %v525 = vmul.f32 %v524, 1.442695
      %v526 = vpow.pop %v525
      %528 = vset.pattern.permute.xlu0 0
      %529 = vperm.xlu0 %528, %v523
      %v530 = vpop.permute.xlu0 %529
      %v532 = vperm.slane %v530, 0
      %v533 = vsub.f32 %v517, %v532
      %v534 = vmul.f32 %v533, 1.442695
      %v535 = vpow.pop %v534
      %s536 = scalar_lea.vmem [#allocation3], 1
      %v537 = vld [vmem:[%s536] sm:$0x1]
      %v538 = vmul.f32 %v526, %v537
      %v539 = vsel %vm402, %v535, 0.0
      %540 = vadd.xlane.f32.xlu0 %v539
      %v541 = vpop.xlane.xlu0 %540
      %v542 = vadd.f32 %v538, %v541
      %543 = vst.msk [vmem:[%s536] sm:$0x1] %vm425, %v542
      %s544 = scalar_lea.vmem [#allocation4], 1
      %v545 = vld [vmem:[%s544] sm:$0x1]
      %547 = vset.pattern.permute.xlu0 0
      %548 = vperm.xlu0 %547, %v526
      %v549 = vpop.permute.xlu0 %548
      %v551 = vperm.slane %v549, 0
      %v552 = vmul.f32 %v551, %v545
      %553 = vrot.lane.b32.xlu0 %v345, 56
      %v554 = vpop.permute.xlu0 %553
      %555 = vrot.lane.b32.xlu0 %v346, 56
      %v556 = vpop.permute.xlu0 %555
      %557 = vrot.lane.b32.xlu0 %v347, 56
      %v558 = vpop.permute.xlu0 %557
      %559 = vrot.lane.b32.xlu0 %v348, 56
      %v560 = vpop.permute.xlu0 %559
      %v566 = vsel %vm447, %v535, 0
      %568 = vmatpush.msra.mxu0 0.0
      %569 = vmatpush.msra.mxu0 0.0
      %570 = vmatpush.msra.mxu0 0.0
      %571 = vmatpush.msra.mxu0 0.0
      %572 = vmatpush.msra.mxu0 0.0
      %573 = vmatpush.msra.mxu0 0.0
      %574 = vmatpush.msra.mxu0 0.0
      %575 = vmatpush.msra.mxu0 0.0
      %576 = vmatpush.msra.mxu0 0.0
      %577 = vmatpush.msra.mxu0 0.0
      %578 = vmatpush.msra.mxu0 0.0
      %579 = vmatpush.msra.mxu0 0.0
      %580 = vmatpush.msra.mxu0 %v560
      %581 = vmatpush.msra.mxu0 %v558
      %582 = vmatpush.msra.mxu0 %v556
      %583 = vmatpush.msra.mxu0 %v554
      %584 = vmatmul.f32.gmra.mxu0 %v566
      %v585 = vpop.f32.mrf.mxu0
      %v586 = vadd.f32 0.0, %v585
      %587 = vdwg.mxu0
      %v588 = vadd.f32 %v552, %v586
      %589 = vst.msk [vmem:[%s544] sm:$0x1] %vm472, %v588
      %590 = vst.msk [vmem:[%s518] sm:$0x1] %vm425, %v523
      %591 = vrot.lane.b32.xlu0 %v475, 112
      %v592 = vpop.permute.xlu0 %591
      %593 = vrot.lane.b32.xlu0 %v345, 80
      %v594 = vpop.permute.xlu0 %593
      %595 = vrot.lane.b32.xlu0 %v346, 80
      %v596 = vpop.permute.xlu0 %595
      %597 = vrot.lane.b32.xlu0 %v347, 80
      %v598 = vpop.permute.xlu0 %597
      %599 = vrot.lane.b32.xlu0 %v348, 80
      %v600 = vpop.permute.xlu0 %599
      %v601 = vsel %vm367, %v592, 0
      %v603 = vsel %vm367, %v594, 0
      %v605 = vsel %vm367, %v596, 0
      %v607 = vsel %vm367, %v598, 0
      %v609 = vsel %vm367, %v600, 0
      %611 = vmatpush.xpose.msra.mxu0 0.0
      %612 = vmatpush.xpose.msra.mxu0 0.0
      %613 = vmatpush.xpose.msra.mxu0 0.0
      %614 = vmatpush.xpose.msra.mxu0 0.0
      %615 = vmatpush.xpose.msra.mxu0 0.0
      %616 = vmatpush.xpose.msra.mxu0 0.0
      %617 = vmatpush.xpose.msra.mxu0 0.0
      %618 = vmatpush.xpose.msra.mxu0 0.0
      %619 = vmatpush.xpose.msra.mxu0 0.0
      %620 = vmatpush.xpose.msra.mxu0 0.0
      %621 = vmatpush.xpose.msra.mxu0 0.0
      %622 = vmatpush.xpose.msra.mxu0 0.0
      %623 = vmatpush.xpose.msra.mxu0 %v609
      %624 = vmatpush.xpose.msra.mxu0 %v607
      %625 = vmatpush.xpose.msra.mxu0 %v605
      %626 = vmatpush.xpose.msra.mxu0 %v603
      %627 = vmatmul.f32.gmra.mxu0 %v601
      %v628 = vpop.f32.mrf.mxu0
      %v629 = vadd.f32 0.0, %v628
      %630 = vdwg.mxu0
      %v631 = vmul.f32 %v629, 0.35355338
      %v632 = vsel %vm354, %v631, -inf
      %s633 = scalar_lea.vmem [#allocation2], 2
      %v634 = vld [vmem:[%s633] sm:$0x1]
      %v635 = vsel %vm402, %v632, -inf
      %636 = vmax.xlane.f32.xlu0 %v635
      %v637 = vpop.xlane.xlu0 %636
      %v638 = vmax.f32 %v634, %v637
      %v639 = vsub.f32 %v634, %v638
      %v640 = vmul.f32 %v639, 1.442695
      %v641 = vpow.pop %v640
      %643 = vset.pattern.permute.xlu0 0
      %644 = vperm.xlu0 %643, %v638
      %v645 = vpop.permute.xlu0 %644
      %v647 = vperm.slane %v645, 0
      %v648 = vsub.f32 %v632, %v647
      %v649 = vmul.f32 %v648, 1.442695
      %v650 = vpow.pop %v649
      %s651 = scalar_lea.vmem [#allocation3], 2
      %v652 = vld [vmem:[%s651] sm:$0x1]
      %v653 = vmul.f32 %v641, %v652
      %v654 = vsel %vm402, %v650, 0.0
      %655 = vadd.xlane.f32.xlu0 %v654
      %v656 = vpop.xlane.xlu0 %655
      %v657 = vadd.f32 %v653, %v656
      %658 = vst.msk [vmem:[%s651] sm:$0x1] %vm425, %v657
      %s659 = scalar_lea.vmem [#allocation4], 2
      %v660 = vld [vmem:[%s659] sm:$0x1]
      %662 = vset.pattern.permute.xlu0 0
      %663 = vperm.xlu0 %662, %v641
      %v664 = vpop.permute.xlu0 %663
      %v666 = vperm.slane %v664, 0
      %v667 = vmul.f32 %v666, %v660
      %668 = vrot.lane.b32.xlu0 %v345, 48
      %v669 = vpop.permute.xlu0 %668
      %670 = vrot.lane.b32.xlu0 %v346, 48
      %v671 = vpop.permute.xlu0 %670
      %672 = vrot.lane.b32.xlu0 %v347, 48
      %v673 = vpop.permute.xlu0 %672
      %674 = vrot.lane.b32.xlu0 %v348, 48
      %v675 = vpop.permute.xlu0 %674
      %v681 = vsel %vm447, %v650, 0
      %683 = vmatpush.msra.mxu0 0.0
      %684 = vmatpush.msra.mxu0 0.0
      %685 = vmatpush.msra.mxu0 0.0
      %686 = vmatpush.msra.mxu0 0.0
      %687 = vmatpush.msra.mxu0 0.0
      %688 = vmatpush.msra.mxu0 0.0
      %689 = vmatpush.msra.mxu0 0.0
      %690 = vmatpush.msra.mxu0 0.0
      %691 = vmatpush.msra.mxu0 0.0
      %692 = vmatpush.msra.mxu0 0.0
      %693 = vmatpush.msra.mxu0 0.0
      %694 = vmatpush.msra.mxu0 0.0
      %695 = vmatpush.msra.mxu0 %v675
      %696 = vmatpush.msra.mxu0 %v673
      %697 = vmatpush.msra.mxu0 %v671
      %698 = vmatpush.msra.mxu0 %v669
      %699 = vmatmul.f32.gmra.mxu0 %v681
      %v700 = vpop.f32.mrf.mxu0
      %v701 = vadd.f32 0.0, %v700
      %702 = vdwg.mxu0
      %v703 = vadd.f32 %v667, %v701
      %704 = vst.msk [vmem:[%s659] sm:$0x1] %vm472, %v703
      %705 = vst.msk [vmem:[%s633] sm:$0x1] %vm425, %v638
      %706 = vrot.lane.b32.xlu0 %v475, 104
      %v707 = vpop.permute.xlu0 %706
      %708 = vrot.lane.b32.xlu0 %v345, 72
      %v709 = vpop.permute.xlu0 %708
      %710 = vrot.lane.b32.xlu0 %v346, 72
      %v711 = vpop.permute.xlu0 %710
      %712 = vrot.lane.b32.xlu0 %v347, 72
      %v713 = vpop.permute.xlu0 %712
      %714 = vrot.lane.b32.xlu0 %v348, 72
      %v715 = vpop.permute.xlu0 %714
      %v716 = vsel %vm367, %v707, 0
      %v718 = vsel %vm367, %v709, 0
      %v720 = vsel %vm367, %v711, 0
      %v722 = vsel %vm367, %v713, 0
      %v724 = vsel %vm367, %v715, 0
      %726 = vmatpush.xpose.msra.mxu0 0.0
      %727 = vmatpush.xpose.msra.mxu0 0.0
      %728 = vmatpush.xpose.msra.mxu0 0.0
      %729 = vmatpush.xpose.msra.mxu0 0.0
      %730 = vmatpush.xpose.msra.mxu0 0.0
      %731 = vmatpush.xpose.msra.mxu0 0.0
      %732 = vmatpush.xpose.msra.mxu0 0.0
      %733 = vmatpush.xpose.msra.mxu0 0.0
      %734 = vmatpush.xpose.msra.mxu0 0.0
      %735 = vmatpush.xpose.msra.mxu0 0.0
      %736 = vmatpush.xpose.msra.mxu0 0.0
      %737 = vmatpush.xpose.msra.mxu0 0.0
      %738 = vmatpush.xpose.msra.mxu0 %v724
      %739 = vmatpush.xpose.msra.mxu0 %v722
      %740 = vmatpush.xpose.msra.mxu0 %v720
      %741 = vmatpush.xpose.msra.mxu0 %v718
      %742 = vmatmul.f32.gmra.mxu0 %v716
      %v743 = vpop.f32.mrf.mxu0
      %v744 = vadd.f32 0.0, %v743
      %745 = vdwg.mxu0
      %v746 = vmul.f32 %v744, 0.35355338
      %v747 = vsel %vm354, %v746, -inf
      %s748 = scalar_lea.vmem [#allocation2], 3
      %v749 = vld [vmem:[%s748] sm:$0x1]
      %v750 = vsel %vm402, %v747, -inf
      %751 = vmax.xlane.f32.xlu0 %v750
      %v752 = vpop.xlane.xlu0 %751
      %v753 = vmax.f32 %v749, %v752
      %v754 = vsub.f32 %v749, %v753
      %v755 = vmul.f32 %v754, 1.442695
      %v756 = vpow.pop %v755
      %758 = vset.pattern.permute.xlu0 0
      %759 = vperm.xlu0 %758, %v753
      %v760 = vpop.permute.xlu0 %759
      %v762 = vperm.slane %v760, 0
      %v763 = vsub.f32 %v747, %v762
      %v764 = vmul.f32 %v763, 1.442695
      %v765 = vpow.pop %v764
      %s766 = scalar_lea.vmem [#allocation3], 3
      %v767 = vld [vmem:[%s766] sm:$0x1]
      %v768 = vmul.f32 %v756, %v767
      %v769 = vsel %vm402, %v765, 0.0
      %770 = vadd.xlane.f32.xlu0 %v769
      %v771 = vpop.xlane.xlu0 %770
      %v772 = vadd.f32 %v768, %v771
      %773 = vst.msk [vmem:[%s766] sm:$0x1] %vm425, %v772
      %s774 = scalar_lea.vmem [#allocation4], 3
      %v775 = vld [vmem:[%s774] sm:$0x1]
      %777 = vset.pattern.permute.xlu0 0
      %778 = vperm.xlu0 %777, %v756
      %v779 = vpop.permute.xlu0 %778
      %v781 = vperm.slane %v779, 0
      %v782 = vmul.f32 %v781, %v775
      %783 = vrot.lane.b32.xlu0 %v345, 40
      %v784 = vpop.permute.xlu0 %783
      %785 = vrot.lane.b32.xlu0 %v346, 40
      %v786 = vpop.permute.xlu0 %785
      %787 = vrot.lane.b32.xlu0 %v347, 40
      %v788 = vpop.permute.xlu0 %787
      %789 = vrot.lane.b32.xlu0 %v348, 40
      %v790 = vpop.permute.xlu0 %789
      %v796 = vsel %vm447, %v765, 0
      %798 = vmatpush.msra.mxu0 0.0
      %799 = vmatpush.msra.mxu0 0.0
      %800 = vmatpush.msra.mxu0 0.0
      %801 = vmatpush.msra.mxu0 0.0
      %802 = vmatpush.msra.mxu0 0.0
      %803 = vmatpush.msra.mxu0 0.0
      %804 = vmatpush.msra.mxu0 0.0
      %805 = vmatpush.msra.mxu0 0.0
      %806 = vmatpush.msra.mxu0 0.0
      %807 = vmatpush.msra.mxu0 0.0
      %808 = vmatpush.msra.mxu0 0.0
      %809 = vmatpush.msra.mxu0 0.0
      %810 = vmatpush.msra.mxu0 %v790
      %811 = vmatpush.msra.mxu0 %v788
      %812 = vmatpush.msra.mxu0 %v786
      %813 = vmatpush.msra.mxu0 %v784
      %814 = vmatmul.f32.gmra.mxu0 %v796
      %v815 = vpop.f32.mrf.mxu0
      %v816 = vadd.f32 0.0, %v815
      %817 = vdwg.mxu0
      %v818 = vadd.f32 %v782, %v816
      %819 = vst.msk [vmem:[%s774] sm:$0x1] %vm472, %v818
      %820 = vst.msk [vmem:[%s748] sm:$0x1] %vm425, %v753
      %p821 = scmp.eq.s32.totalorder %s24, 1
      // Predicated region
      $region49: #{_lambda_.6} parent=43 // pred_check
        %p822 = pneg %p821
      $region50: #{_lambda_.6} parent=43 // pred_check_branch
        %824 = sbr.rel (%p822) target = $region52
      $region51: #{_lambda_.6} parent=43 // pred_region
        %v825 = vld [vmem:[#allocation4] sm:$0x1]
        %v826 = vld [vmem:[#allocation3] sm:$0x1]
        %828 = vset.pattern.permute.xlu0 0
        %829 = vperm.xlu0 %828, %v826
        %v830 = vpop.permute.xlu0 %829
        %v832 = vperm.slane %v830, 0
        %v833 = vrcp.pop %v832
        %v834 = vmul.f32 %v832, %v833
        %v835 = vsub.f32 1.0, %v834
        %v836 = vmul.f32 %v833, %v835
        %v837 = vadd.f32 %v833, %v836
        %vm838 = vweird.f32 %v832
        %vm839 = vweird.f32 %v833
        %vm840 = vmor %vm838, %vm839
        %v841 = vsel %vm840, %v833, %v837
        %v842 = vand.u32 2147483647, %v832
        %vm843 = vcmp.eq.f32.partialorder %v842, 8.507059e+37
        %v844 = vand.u32 %v832, 2147483648
        %v845 = vor.u32 1.1754944e-38, %v844
        %v846 = vsel %vm843, %v845, %v841
        %v847 = vmul.f32 %v825, %v846
        %v848 = vld [vmem:[%s2] sm:$0xff]
        %v849 = vld [vmem:[%s4] sm:$0xff]
        %v850 = vld [vmem:[%s544] sm:$0x1]
        %v851 = vld [vmem:[%s536] sm:$0x1]
        %853 = vset.pattern.permute.xlu0 0
        %854 = vperm.xlu0 %853, %v851
        %v855 = vpop.permute.xlu0 %854
        %v857 = vperm.slane %v855, 0
        %v858 = vrcp.pop %v857
        %v859 = vmul.f32 %v857, %v858
        %v860 = vsub.f32 1.0, %v859
        %v861 = vmul.f32 %v858, %v860
        %v862 = vadd.f32 %v858, %v861
        %vm863 = vweird.f32 %v857
        %vm864 = vweird.f32 %v858
        %vm865 = vmor %vm863, %vm864
        %v866 = vsel %vm865, %v858, %v862
        %v867 = vand.u32 2147483647, %v857
        %vm868 = vcmp.eq.f32.partialorder %v867, 8.507059e+37
        %v869 = vand.u32 %v857, 2147483648
        %v870 = vor.u32 1.1754944e-38, %v869
        %v871 = vsel %vm868, %v870, %v866
        %v872 = vmul.f32 %v850, %v871
        %v873 = vld [vmem:[%s2 + $0x8] sm:$0xff]
        %v875 = vsel %vm367, %v872, 0
        %877 = vmatpush.msra.mxu0 0.0
        %878 = vmatpush.msra.mxu0 0.0
        %879 = vmatpush.msra.mxu0 0.0
        %880 = vmatpush.msra.mxu0 0.0
        %881 = vmatpush.msra.mxu0 0.0
        %882 = vmatpush.msra.mxu0 0.0
        %883 = vmatpush.msra.mxu0 0.0
        %884 = vmatpush.msra.mxu0 0.0
        %885 = vmatpush.msra.mxu0 0.0
        %886 = vmatpush.msra.mxu0 0.0
        %887 = vmatpush.msra.mxu0 0.0
        %888 = vmatpush.msra.mxu0 0.0
        %889 = vmatpush.msra.mxu0 0.0
        %890 = vmatpush.msra.mxu0 0.0
        %891 = vmatpush.msra.mxu0 0.0
        %892 = vmatpush.msra.mxu0 %v873
        %893 = vmatmul.f32.gmra.mxu0 %v875
        %v894 = vpop.f32.mrf.mxu0
        %v895 = vadd.f32 0.0, %v894
        %896 = vdwg.mxu0
        %v898 = vsel %vm367, %v847, 0
        %900 = vmatpush.msra.mxu0 0.0
        %901 = vmatpush.msra.mxu0 0.0
        %902 = vmatpush.msra.mxu0 0.0
        %903 = vmatpush.msra.mxu0 0.0
        %904 = vmatpush.msra.mxu0 0.0
        %905 = vmatpush.msra.mxu0 0.0
        %906 = vmatpush.msra.mxu0 0.0
        %907 = vmatpush.msra.mxu0 0.0
        %908 = vmatpush.msra.mxu0 0.0
        %909 = vmatpush.msra.mxu0 0.0
        %910 = vmatpush.msra.mxu0 0.0
        %911 = vmatpush.msra.mxu0 0.0
        %912 = vmatpush.msra.mxu0 0.0
        %913 = vmatpush.msra.mxu0 0.0
        %914 = vmatpush.msra.mxu0 0.0
        %915 = vmatpush.msra.mxu0 %v848
        %916 = vmatmul.f32.gmra.mxu0 %v898
        %v917 = vpop.f32.mrf.mxu0
        %v918 = vadd.f32 %v895, %v917
        %919 = vdwg.mxu0
        %v920 = vld [vmem:[%s4 + $0x8] sm:$0xff]
        %921 = vmatpush.msra.mxu0 0.0
        %922 = vmatpush.msra.mxu0 0.0
        %923 = vmatpush.msra.mxu0 0.0
        %924 = vmatpush.msra.mxu0 0.0
        %925 = vmatpush.msra.mxu0 0.0
        %926 = vmatpush.msra.mxu0 0.0
        %927 = vmatpush.msra.mxu0 0.0
        %928 = vmatpush.msra.mxu0 0.0
        %929 = vmatpush.msra.mxu0 0.0
        %930 = vmatpush.msra.mxu0 0.0
        %931 = vmatpush.msra.mxu0 0.0
        %932 = vmatpush.msra.mxu0 0.0
        %933 = vmatpush.msra.mxu0 0.0
        %934 = vmatpush.msra.mxu0 0.0
        %935 = vmatpush.msra.mxu0 0.0
        %936 = vmatpush.msra.mxu0 %v920
        %937 = vmatmul.f32.gmra.mxu0 %v875
        %v938 = vpop.f32.mrf.mxu0
        %v939 = vadd.f32 0.0, %v938
        %940 = vdwg.mxu0
        %941 = vmatpush.msra.mxu0 0.0
        %942 = vmatpush.msra.mxu0 0.0
        %943 = vmatpush.msra.mxu0 0.0
        %944 = vmatpush.msra.mxu0 0.0
        %945 = vmatpush.msra.mxu0 0.0
        %946 = vmatpush.msra.mxu0 0.0
        %947 = vmatpush.msra.mxu0 0.0
        %948 = vmatpush.msra.mxu0 0.0
        %949 = vmatpush.msra.mxu0 0.0
        %950 = vmatpush.msra.mxu0 0.0
        %951 = vmatpush.msra.mxu0 0.0
        %952 = vmatpush.msra.mxu0 0.0
        %953 = vmatpush.msra.mxu0 0.0
        %954 = vmatpush.msra.mxu0 0.0
        %955 = vmatpush.msra.mxu0 0.0
        %956 = vmatpush.msra.mxu0 %v849
        %957 = vmatmul.f32.gmra.mxu0 %v898
        %v958 = vpop.f32.mrf.mxu0
        %v959 = vadd.f32 %v939, %v958
        %960 = vdwg.mxu0
        %v961 = vld [vmem:[%s659] sm:$0x1]
        %v962 = vld [vmem:[%s651] sm:$0x1]
        %964 = vset.pattern.permute.xlu0 0
        %965 = vperm.xlu0 %964, %v962
        %v966 = vpop.permute.xlu0 %965
        %v968 = vperm.slane %v966, 0
        %v969 = vrcp.pop %v968
        %v970 = vmul.f32 %v968, %v969
        %v971 = vsub.f32 1.0, %v970
        %v972 = vmul.f32 %v969, %v971
        %v973 = vadd.f32 %v969, %v972
        %vm974 = vweird.f32 %v968
        %vm975 = vweird.f32 %v969
        %vm976 = vmor %vm974, %vm975
        %v977 = vsel %vm976, %v969, %v973
        %v978 = vand.u32 2147483647, %v968
        %vm979 = vcmp.eq.f32.partialorder %v978, 8.507059e+37
        %v980 = vand.u32 %v968, 2147483648
        %v981 = vor.u32 1.1754944e-38, %v980
        %v982 = vsel %vm979, %v981, %v977
        %v983 = vmul.f32 %v961, %v982
        %v984 = vld [vmem:[%s2 + $0x10] sm:$0xff]
        %v986 = vsel %vm367, %v983, 0
        %988 = vmatpush.msra.mxu0 0.0
        %989 = vmatpush.msra.mxu0 0.0
        %990 = vmatpush.msra.mxu0 0.0
        %991 = vmatpush.msra.mxu0 0.0
        %992 = vmatpush.msra.mxu0 0.0
        %993 = vmatpush.msra.mxu0 0.0
        %994 = vmatpush.msra.mxu0 0.0
        %995 = vmatpush.msra.mxu0 0.0
        %996 = vmatpush.msra.mxu0 0.0
        %997 = vmatpush.msra.mxu0 0.0
        %998 = vmatpush.msra.mxu0 0.0
        %999 = vmatpush.msra.mxu0 0.0
        %1000 = vmatpush.msra.mxu0 0.0
        %1001 = vmatpush.msra.mxu0 0.0
        %1002 = vmatpush.msra.mxu0 0.0
        %1003 = vmatpush.msra.mxu0 %v984
        %1004 = vmatmul.f32.gmra.mxu0 %v986
        %v1005 = vpop.f32.mrf.mxu0
        %v1006 = vadd.f32 0.0, %v1005
        %1007 = vdwg.mxu0
        %v1008 = vadd.f32 %v918, %v1006
        %v1009 = vld [vmem:[%s4 + $0x10] sm:$0xff]
        %1010 = vmatpush.msra.mxu0 0.0
        %1011 = vmatpush.msra.mxu0 0.0
        %1012 = vmatpush.msra.mxu0 0.0
        %1013 = vmatpush.msra.mxu0 0.0
        %1014 = vmatpush.msra.mxu0 0.0
        %1015 = vmatpush.msra.mxu0 0.0
        %1016 = vmatpush.msra.mxu0 0.0
        %1017 = vmatpush.msra.mxu0 0.0
        %1018 = vmatpush.msra.mxu0 0.0
        %1019 = vmatpush.msra.mxu0 0.0
        %1020 = vmatpush.msra.mxu0 0.0
        %1021 = vmatpush.msra.mxu0 0.0
        %1022 = vmatpush.msra.mxu0 0.0
        %1023 = vmatpush.msra.mxu0 0.0
        %1024 = vmatpush.msra.mxu0 0.0
        %1025 = vmatpush.msra.mxu0 %v1009
        %1026 = vmatmul.f32.gmra.mxu0 %v986
        %v1027 = vpop.f32.mrf.mxu0
        %v1028 = vadd.f32 0.0, %v1027
        %1029 = vdwg.mxu0
        %v1030 = vadd.f32 %v959, %v1028
        %v1031 = vld [vmem:[%s774] sm:$0x1]
        %v1032 = vld [vmem:[%s766] sm:$0x1]
        %1034 = vset.pattern.permute.xlu0 0
        %1035 = vperm.xlu0 %1034, %v1032
        %v1036 = vpop.permute.xlu0 %1035
        %v1038 = vperm.slane %v1036, 0
        %v1039 = vrcp.pop %v1038
        %v1040 = vmul.f32 %v1038, %v1039
        %v1041 = vsub.f32 1.0, %v1040
        %v1042 = vmul.f32 %v1039, %v1041
        %v1043 = vadd.f32 %v1039, %v1042
        %vm1044 = vweird.f32 %v1038
        %vm1045 = vweird.f32 %v1039
        %vm1046 = vmor %vm1044, %vm1045
        %v1047 = vsel %vm1046, %v1039, %v1043
        %v1048 = vand.u32 2147483647, %v1038
        %vm1049 = vcmp.eq.f32.partialorder %v1048, 8.507059e+37
        %v1050 = vand.u32 %v1038, 2147483648
        %v1051 = vor.u32 1.1754944e-38, %v1050
        %v1052 = vsel %vm1049, %v1051, %v1047
        %v1053 = vmul.f32 %v1031, %v1052
        %v1054 = vld [vmem:[%s2 + $0x18] sm:$0xff]
        %v1056 = vsel %vm367, %v1053, 0
        %1058 = vmatpush.msra.mxu0 0.0
        %1059 = vmatpush.msra.mxu0 0.0
        %1060 = vmatpush.msra.mxu0 0.0
        %1061 = vmatpush.msra.mxu0 0.0
        %1062 = vmatpush.msra.mxu0 0.0
        %1063 = vmatpush.msra.mxu0 0.0
        %1064 = vmatpush.msra.mxu0 0.0
        %1065 = vmatpush.msra.mxu0 0.0
        %1066 = vmatpush.msra.mxu0 0.0
        %1067 = vmatpush.msra.mxu0 0.0
        %1068 = vmatpush.msra.mxu0 0.0
        %1069 = vmatpush.msra.mxu0 0.0
        %1070 = vmatpush.msra.mxu0 0.0
        %1071 = vmatpush.msra.mxu0 0.0
        %1072 = vmatpush.msra.mxu0 0.0
        %1073 = vmatpush.msra.mxu0 %v1054
        %1074 = vmatmul.f32.gmra.mxu0 %v1056
        %v1075 = vpop.f32.mrf.mxu0
        %v1076 = vadd.f32 0.0, %v1075
        %1077 = vdwg.mxu0
        %v1078 = vadd.f32 %v1008, %v1076
        %v1079 = vld [vmem:[%s4 + $0x18] sm:$0xff]
        %1080 = vmatpush.msra.mxu0 0.0
        %1081 = vmatpush.msra.mxu0 0.0
        %1082 = vmatpush.msra.mxu0 0.0
        %1083 = vmatpush.msra.mxu0 0.0
        %1084 = vmatpush.msra.mxu0 0.0
        %1085 = vmatpush.msra.mxu0 0.0
        %1086 = vmatpush.msra.mxu0 0.0
        %1087 = vmatpush.msra.mxu0 0.0
        %1088 = vmatpush.msra.mxu0 0.0
        %1089 = vmatpush.msra.mxu0 0.0
        %1090 = vmatpush.msra.mxu0 0.0
        %1091 = vmatpush.msra.mxu0 0.0
        %1092 = vmatpush.msra.mxu0 0.0
        %1093 = vmatpush.msra.mxu0 0.0
        %1094 = vmatpush.msra.mxu0 0.0
        %1095 = vmatpush.msra.mxu0 %v1079
        %1096 = vmatmul.f32.gmra.mxu0 %v1056
        %v1097 = vpop.f32.mrf.mxu0
        %v1098 = vadd.f32 0.0, %v1097
        %1099 = vdwg.mxu0
        %v1100 = vadd.f32 %v1030, %v1098
        %v1101 = vld [vmem:[%s3] sm:$0x1]
        %v1102 = vadd.f32 %v1078, %v1101
        %vm1103 = vcmask 516096
        %1104 = vst.msk [vmem:[%s322] sm:$0x1] %vm1103, %v1102
        %v1105 = vld [vmem:[%s5] sm:$0x1]
        %v1106 = vadd.f32 %v1100, %v1105
        %1107 = vst.msk [vmem:[%s325] sm:$0x1] %vm402, %v1106
      $region52: #{_lambda_.6} parent=43 // pred_fallthru
        _
      %p1108 = scmp.lt.s32.totalorder %s23, 1
      %s1109 = scalar_select %p1108, %s23, 1
      %s1110 = scalar_lea.vmem %s6, %s1109
      %p1111 = scmp.lt.s32.totalorder %s23, 1
      %s1112 = scalar_select %p1111, %s23, 1
      %s1113 = scalar_lea.vmem %s7, %s1112
      // Predicated region
      $region53: #{_lambda_.6} parent=43 // pred_check
        %p1114 = pneg %p187
      $region54: #{_lambda_.6} parent=43 // pred_check_branch
        %1116 = sbr.rel (%p1114) target = $region56
      $region55: #{_lambda_.6} parent=43 // pred_region
        _
      $region56: #{_lambda_.6} parent=43 // pred_fallthru
        _
      // Predicated region
      $region57: #{_lambda_.6} parent=43 // pred_check
        %p1117 = pneg %p213
      $region58: #{_lambda_.6} parent=43 // pred_check_branch
        %1119 = sbr.rel (%p1117) target = $region60
      $region59: #{_lambda_.6} parent=43 // pred_region
        _
      $region60: #{_lambda_.6} parent=43 // pred_fallthru
        _
    $region44: #{_lambda_.6} parent=5 // pred_fallthru
      _
    %p1120 = scmp.le.s32.totalorder 2, %s14
    // Predicated region
    $region61: #{_lambda_.6} parent=5 // pred_check
      %p1121 = pneg %p1120
    $region62: #{_lambda_.6} parent=5 // pred_check_branch
      %1123 = sbr.rel (%p1121) target = $region64
    $region63: #{_lambda_.6} parent=5 // pred_region
      %s1124 = ssub.s32 %s14, 2
      // Predicated region
      $region65: #{_lambda_.6} parent=63 // pred_check
        %p1125 = pneg %p193
      $region66: #{_lambda_.6} parent=63 // pred_check_branch
        %1127 = sbr.rel (%p1125) target = $region68
      $region67: #{_lambda_.6} parent=63 // pred_region
        %p1128 = scmp.lt.s32.totalorder %s25, 1
        %s1129 = scalar_select %p1128, %s25, 1
        %s1130 = scalar_lea.vmem %s6, %s1129
      $region68: #{_lambda_.6} parent=63 // pred_fallthru
        _
      // Predicated region
      $region69: #{_lambda_.6} parent=63 // pred_check
        %p1131 = pneg %p219
      $region70: #{_lambda_.6} parent=63 // pred_check_branch
        %1133 = sbr.rel (%p1131) target = $region72
      $region71: #{_lambda_.6} parent=63 // pred_region
        %p1134 = scmp.lt.s32.totalorder %s25, 1
        %s1135 = scalar_select %p1134, %s25, 1
        %s1136 = scalar_lea.vmem %s7, %s1135
      $region72: #{_lambda_.6} parent=63 // pred_fallthru
        _
    $region64: #{_lambda_.6} parent=5 // pred_fallthru
      _
  $region6: #{_lambda_.6} parent=0 // loop_footer
    %s18 = sadd.s32 1, %s14
  $region7: #{_lambda_.6} parent=0 // loop_footer_branch
    %13 = sbr.rel target = $region3
  $region8: #{_lambda_.6} parent=0 // loop_exit
    _

// kernel: _lambda_.7
$region0: #{_lambda_.7}
  #allocation0 [shape = 'u32[]', space=smem, size = 0x4, offset = 0x4, fixed_abs, tag = 'smem constant byte address 0x4 - core index']
  #allocation1 [shape = 'u32[72,128]{1,0:T(1,128)}', space=vmem, size = 0x9000, scoped, tag = 'internal scratch']
  %s0 = inlined_call_operand.vmem [shape: f32[8,16,96], index: 0, kind: input, shape index: {}]
  %s1 = inlined_call_operand.vmem [shape: f32[4,16,16], index: 1, kind: input, shape index: {}]
  %s2 = inlined_call_operand.vmem [shape: f32[2,1,64], index: 2, kind: input, shape index: {}]
  %s3 = inlined_call_operand.vmem [shape: f32[32,32], index: 3, kind: input, shape index: {}]
  %s4 = inlined_call_operand.vmem [shape: f32[1,32], index: 4, kind: input, shape index: {}]
  %s5 = inlined_call_operand.vmem [shape: f32[128,32], index: 5, kind: output, shape index: {}]
  %s6 = sld [smem:[#allocation0]]
  $region53: #{_lambda_.7} parent=0
    _
  %s8 = ssub.s32 1, %s6
  %s9 = scalar_select 0, %s8, %s6
  loop: start=0, step=1, limit=6
  $region2: #{_lambda_.7} parent=0 // loop_pre_header
    _
  $region3: #{_lambda_.7} parent=0 // loop_header
    %s11 = sphi 0, %s15
    %p12 = scmp.ge.s32.totalorder %s11, 6
    %s18 = sphi 0, %s30
    %s19 = sphi 0, %s26
    %s20 = sphi 0, %s18
    %s21 = sphi 0, %s19
    %s22 = sphi 0, %s20
    %s23 = sphi 0, %s21
    %s37 = sphi 0, %s39
    %s40 = sphi 0, %s37
    %s41 = sphi 0, %s40
    %s57 = sphi 0, %s41
    %s61 = sphi 0, %s61
    %s63 = sphi 0, %s61
    %s64 = sphi 0, %s63
    %s78 = sphi 0, %s64
    %s84 = sphi 0, %s86
    %s87 = sphi 0, %s84
    %s88 = sphi 0, %s87
    %s104 = sphi 0, %s88
    %s108 = sphi 0, %s108
    %s110 = sphi 0, %s108
    %s111 = sphi 0, %s110
    %s125 = sphi 0, %s111
    %s129 = sphi 0, %s129
    %s131 = sphi 0, %s129
    %s132 = sphi 0, %s131
    %s146 = sphi 0, %s132
    %s156 = sphi 0, %s158
    %s159 = sphi 0, %s156
    %s160 = sphi 0, %s159
    %s176 = sphi 0, %s160
  $region4: #{_lambda_.7} parent=0 // loop_header_branch
    %14 = sbr.rel (%p12) target = $region8
  $region5: #{_lambda_.7} parent=0 // loop_body
    %s16 = ssub.s32 %s11, 1
    %s17 = ssub.s32 %s11, 2
    %s24 = sadd.s32 1, %s19
    %p25 = scmp.ge.s32.totalorder %s24, 2
    %s26 = scalar_select %p25, 0, %s24
    %s27 = sadd.s32 1, %s18
    %s28 = scalar_select %p25, %s27, %s18
    %p29 = scmp.ge.s32.totalorder %s28, 2
    %s30 = scalar_select %p29, 0, %s28
    %s31 = smul.u32 %s18, 2
    %s32 = sadd.s32 %s31, %s19
    %s33 = smul.u32 %s30, 2
    %s34 = sadd.s32 %s33, %s26
    %s35 = ssub.s32 %s32, %s34
    %p36 = scmp.eq.s32.totalorder %s35, 0
    %s38 = sadd.s32 %s37, 1
    %s39 = scalar_select %p36, %s37, %s38
    %p42 = pneg %p36
    %p43 = scmp.eq.s32.totalorder %s11, 3
    %p44 = por %p42, %p43
    %p45 = scmp.ne.s32.totalorder %s37, %s40
    %p46 = scmp.eq.s32.totalorder %s11, 0
    %p47 = por %p45, %p46
    %p48 = scmp.ne.s32.totalorder %s37, %s40
    %p49 = scmp.eq.s32.totalorder %s16, 3
    %p50 = por %p48, %p49
    %p51 = scmp.ne.s32.totalorder %s40, %s41
    %p52 = scmp.eq.s32.totalorder %s16, 0
    %p53 = por %p51, %p52
    %p54 = scmp.ne.s32.totalorder %s40, %s41
    %p55 = scmp.eq.s32.totalorder %s17, 3
    %p56 = por %p54, %p55
    %p58 = scmp.ne.s32.totalorder %s41, %s57
    %p59 = scmp.eq.s32.totalorder %s17, 0
    %p60 = por %p58, %p59
    %s62 = sadd.s32 %s61, 1
    %p65 = scmp.eq.s32.totalorder %s11, 3
    %p66 = scmp.ne.s32.totalorder %s61, %s63
    %p67 = scmp.eq.s32.totalorder %s11, 0
    %p68 = por %p66, %p67
    %p69 = scmp.ne.s32.totalorder %s61, %s63
    %p70 = scmp.eq.s32.totalorder %s16, 3
    %p71 = por %p69, %p70
    %p72 = scmp.ne.s32.totalorder %s63, %s64
    %p73 = scmp.eq.s32.totalorder %s16, 0
    %p74 = por %p72, %p73
    %p75 = scmp.ne.s32.totalorder %s63, %s64
    %p76 = scmp.eq.s32.totalorder %s17, 3
    %p77 = por %p75, %p76
    %p79 = scmp.ne.s32.totalorder %s64, %s78
    %p80 = scmp.eq.s32.totalorder %s17, 0
    %p81 = por %p79, %p80
    %s82 = ssub.s32 %s18, %s30
    %p83 = scmp.eq.s32.totalorder %s82, 0
    %s85 = sadd.s32 %s84, 1
    %s86 = scalar_select %p83, %s84, %s85
    %p89 = pneg %p83
    %p90 = scmp.eq.s32.totalorder %s11, 3
    %p91 = por %p89, %p90
    %p92 = scmp.ne.s32.totalorder %s84, %s87
    %p93 = scmp.eq.s32.totalorder %s11, 0
    %p94 = por %p92, %p93
    %p95 = scmp.ne.s32.totalorder %s84, %s87
    %p96 = scmp.eq.s32.totalorder %s16, 3
    %p97 = por %p95, %p96
    %p98 = scmp.ne.s32.totalorder %s87, %s88
    %p99 = scmp.eq.s32.totalorder %s16, 0
    %p100 = por %p98, %p99
    %p101 = scmp.ne.s32.totalorder %s87, %s88
    %p102 = scmp.eq.s32.totalorder %s17, 3
    %p103 = por %p101, %p102
    %p105 = scmp.ne.s32.totalorder %s88, %s104
    %p106 = scmp.eq.s32.totalorder %s17, 0
    %p107 = por %p105, %p106
    %s109 = sadd.s32 %s108, 1
    %p112 = scmp.eq.s32.totalorder %s11, 3
    %p113 = scmp.ne.s32.totalorder %s108, %s110
    %p114 = scmp.eq.s32.totalorder %s11, 0
    %p115 = por %p113, %p114
    %p116 = scmp.ne.s32.totalorder %s108, %s110
    %p117 = scmp.eq.s32.totalorder %s16, 3
    %p118 = por %p116, %p117
    %p119 = scmp.ne.s32.totalorder %s110, %s111
    %p120 = scmp.eq.s32.totalorder %s16, 0
    %p121 = por %p119, %p120
    %p122 = scmp.ne.s32.totalorder %s110, %s111
    %p123 = scmp.eq.s32.totalorder %s17, 3
    %p124 = por %p122, %p123
    %p126 = scmp.ne.s32.totalorder %s111, %s125
    %p127 = scmp.eq.s32.totalorder %s17, 0
    %p128 = por %p126, %p127
    %s130 = sadd.s32 %s129, 1
    %p133 = scmp.eq.s32.totalorder %s11, 3
    %p134 = scmp.ne.s32.totalorder %s129, %s131
    %p135 = scmp.eq.s32.totalorder %s11, 0
    %p136 = por %p134, %p135
    %p137 = scmp.ne.s32.totalorder %s129, %s131
    %p138 = scmp.eq.s32.totalorder %s16, 3
    %p139 = por %p137, %p138
    %p140 = scmp.ne.s32.totalorder %s131, %s132
    %p141 = scmp.eq.s32.totalorder %s16, 0
    %p142 = por %p140, %p141
    %p143 = scmp.ne.s32.totalorder %s131, %s132
    %p144 = scmp.eq.s32.totalorder %s17, 3
    %p145 = por %p143, %p144
    %p147 = scmp.ne.s32.totalorder %s132, %s146
    %p148 = scmp.eq.s32.totalorder %s17, 0
    %p149 = por %p147, %p148
    %s150 = smul.u32 %s18, 2
    %s151 = sadd.s32 %s150, %s19
    %s152 = smul.u32 %s30, 2
    %s153 = sadd.s32 %s152, %s26
    %s154 = ssub.s32 %s151, %s153
    %p155 = scmp.eq.s32.totalorder %s154, 0
    %s157 = sadd.s32 %s156, 1
    %s158 = scalar_select %p155, %s156, %s157
    %p161 = pneg %p155
    %p162 = scmp.eq.s32.totalorder %s11, 3
    %p163 = por %p161, %p162
    %p164 = scmp.ne.s32.totalorder %s156, %s159
    %p165 = scmp.eq.s32.totalorder %s11, 0
    %p166 = por %p164, %p165
    %p167 = scmp.ne.s32.totalorder %s156, %s159
    %p168 = scmp.eq.s32.totalorder %s16, 3
    %p169 = por %p167, %p168
    %p170 = scmp.ne.s32.totalorder %s159, %s160
    %p171 = scmp.eq.s32.totalorder %s16, 0
    %p172 = por %p170, %p171
    %p173 = scmp.ne.s32.totalorder %s159, %s160
    %p174 = scmp.eq.s32.totalorder %s17, 3
    %p175 = por %p173, %p174
    %p177 = scmp.ne.s32.totalorder %s160, %s176
    %p178 = scmp.eq.s32.totalorder %s17, 0
    %p179 = por %p177, %p178
    %p180 = scmp.le.s32.totalorder 1, %s11
    %p181 = scmp.lt.s32.totalorder %s11, 5
    %p182 = pnand %p180, %p181
    %p183 = pneg %p182
    // Predicated region
    $region9: #{_lambda_.7} parent=5 // pred_check
      _
    $region10: #{_lambda_.7} parent=5 // pred_check_branch
      %185 = sbr.rel (%p182) target = $region12
    $region11: #{_lambda_.7} parent=5 // pred_region
      %s186 = ssub.s32 %s11, 1
      // Predicated region
      $region13: #{_lambda_.7} parent=11 // pred_check
        %p187 = pneg %p74
      $region14: #{_lambda_.7} parent=11 // pred_check_branch
        %189 = sbr.rel (%p187) target = $region16
      $region15: #{_lambda_.7} parent=11 // pred_region
        _
      $region16: #{_lambda_.7} parent=11 // pred_fallthru
        _
      // Predicated region
      $region17: #{_lambda_.7} parent=11 // pred_check
        %p190 = pneg %p121
      $region18: #{_lambda_.7} parent=11 // pred_check_branch
        %192 = sbr.rel (%p190) target = $region20
      $region19: #{_lambda_.7} parent=11 // pred_region
        _
      $region20: #{_lambda_.7} parent=11 // pred_fallthru
        _
      // Predicated region
      $region21: #{_lambda_.7} parent=11 // pred_check
        %p193 = pneg %p142
      $region22: #{_lambda_.7} parent=11 // pred_check_branch
        %195 = sbr.rel (%p193) target = $region24
      $region23: #{_lambda_.7} parent=11 // pred_region
        _
      $region24: #{_lambda_.7} parent=11 // pred_fallthru
        _
    $region12: #{_lambda_.7} parent=5 // pred_fallthru
      _
    %p196 = scmp.lt.s32.totalorder %s11, 4
    // Predicated region
    $region25: #{_lambda_.7} parent=5 // pred_check
      %p197 = pneg %p196
    $region26: #{_lambda_.7} parent=5 // pred_check_branch
      %199 = sbr.rel (%p197) target = $region28
    $region27: #{_lambda_.7} parent=5 // pred_region
      // Predicated region
      $region29: #{_lambda_.7} parent=27 // pred_check
        %p200 = pneg %p47
      $region30: #{_lambda_.7} parent=27 // pred_check_branch
        %202 = sbr.rel (%p200) target = $region32
      $region31: #{_lambda_.7} parent=27 // pred_region
        %s203 = smul.u32 %s18, 2
        %s204 = sadd.s32 %s203, %s19
        %s205 = smul.u32 2, %s204
        %p206 = scmp.lt.s32.totalorder %s205, 7
        %s207 = scalar_select %p206, %s205, 7
        %s208 = smul.addr %s207, 2
        %s209 = smul.addr %s208, 8
        %s210 = scalar_lea.vmem %s0, %s209
        %s211 = smul.u32 %s18, 2
        %s212 = sadd.s32 %s211, %s19
        %s213 = smul.u32 2, %s212
      $region32: #{_lambda_.7} parent=27 // pred_fallthru
        _
      // Predicated region
      $region33: #{_lambda_.7} parent=27 // pred_check
        %p214 = pneg %p94
      $region34: #{_lambda_.7} parent=27 // pred_check_branch
        %216 = sbr.rel (%p214) target = $region36
      $region35: #{_lambda_.7} parent=27 // pred_region
        %p217 = scmp.lt.s32.totalorder %s18, 1
        %s218 = scalar_select %p217, %s18, 1
        %s219 = scalar_lea.vmem %s2, %s218
      $region36: #{_lambda_.7} parent=27 // pred_fallthru
        _
    $region28: #{_lambda_.7} parent=5 // pred_fallthru
      _
    %p220 = scmp.le.s32.totalorder 1, %s11
    %p221 = scmp.lt.s32.totalorder %s11, 5
    %p222 = pnand %p220, %p221
    %p223 = pneg %p222
    // Predicated region
    $region37: #{_lambda_.7} parent=5 // pred_check
      _
    $region38: #{_lambda_.7} parent=5 // pred_check_branch
      %225 = sbr.rel (%p222) target = $region40
    $region39: #{_lambda_.7} parent=5 // pred_region
      %s226 = ssub.s32 %s11, 1
      %s227 = smul.u32 %s20, 2
      %s228 = sadd.s32 %s227, %s21
      %s229 = smul.u32 2, %s228
      %p230 = scmp.lt.s32.totalorder %s229, 7
      %s231 = scalar_select %p230, %s229, 7
      %s232 = smul.addr %s231, 2
      %s233 = smul.addr %s232, 8
      %s234 = scalar_lea.vmem %s0, %s233
      %p235 = pneg %p53
      %p236 = pneg %p50
      %p237 = pneg %p74
      %p238 = pneg %p71
      %p239 = scmp.lt.s32.totalorder %s20, 1
      %s240 = scalar_select %p239, %s20, 1
      %s241 = scalar_lea.vmem %s2, %s240
      %p242 = pneg %p100
      %p243 = pneg %p97
      %p244 = pneg %p121
      %p245 = pneg %p118
      %p246 = pneg %p142
      %p247 = pneg %p139
      %p248 = pneg %p172
      %p249 = pneg %p169
      %s250 = smul.u32 %s20, 2
      %s251 = sadd.s32 %s250, %s21
      %s252 = smul.u32 4, %s251
      %p253 = scmp.lt.s32.totalorder %s252, 15
      %s254 = scalar_select %p253, %s252, 15
      %s255 = smul.addr %s254, 8
      %s256 = scalar_lea.vmem %s5, %s255
      %s257 = smul.u32 %s20, 2
      %s258 = sadd.s32 %s257, %s21
      %s259 = smul.u32 2, %s258
      %p260 = scmp.lt.s32.totalorder %s259, 7
      %s261 = scalar_select %p260, %s259, 7
      %s262 = smul.addr %s261, 2
      %s263 = smul.addr %s262, 8
      %s264 = scalar_lea.vmem %s0, %s263
      %s265 = smul.u32 %s20, 2
      %s266 = sadd.s32 %s265, %s21
      %s267 = smul.u32 2, %s266
      %p268 = scmp.lt.s32.totalorder %s20, 1
      %s269 = scalar_select %p268, %s20, 1
      %s270 = scalar_lea.vmem %s2, %s269
      %s271 = smul.u32 %s20, 2
      %s272 = sadd.s32 %s271, %s21
      %s273 = smul.u32 4, %s272
      %p274 = scmp.lt.s32.totalorder %s273, 15
      %s275 = scalar_select %p274, %s273, 15
      %s276 = smul.addr %s275, 8
      %s277 = scalar_lea.vmem %s5, %s276
      %s278 = smul.u32 %s20, 2
      %s279 = sadd.s32 %s278, %s21
      %s280 = smul.u32 4, %s279
      %v281 = vld [vmem:[%s264] sm:$0xff]
      %v282 = vld [vmem:[%s264 + $0x8] sm:$0xff]
      %v283 = vld [vmem:[%s264 + $0x10] sm:$0xff]
      %v284 = vld [vmem:[%s264 + $0x18] sm:$0xff]
      %v285 = vld [vmem:[%s270] sm:$0x1]
      %288 = vrot.lane.b32.xlu0 %v281, 96
      %v289 = vpop.permute.xlu0 %288
      %290 = vrot.lane.b32.xlu0 %v282, 96
      %v291 = vpop.permute.xlu0 %290
      %vm292 = vcmask 64512
      %v293 = vsel %vm292, %v281, 0
      %v295 = vsel %vm292, %v282, 0
      %v297 = vsel %vm292, %v289, 0
      %v299 = vsel %vm292, %v291, 0
      %301 = vmatpush.xpose.msra.mxu0 0.0
      %302 = vmatpush.xpose.msra.mxu0 0.0
      %303 = vmatpush.xpose.msra.mxu0 0.0
      %304 = vmatpush.xpose.msra.mxu0 0.0
      %305 = vmatpush.xpose.msra.mxu0 0.0
      %306 = vmatpush.xpose.msra.mxu0 0.0
      %307 = vmatpush.xpose.msra.mxu0 0.0
      %308 = vmatpush.xpose.msra.mxu0 0.0
      %309 = vmatpush.xpose.msra.mxu0 0.0
      %310 = vmatpush.xpose.msra.mxu0 0.0
      %311 = vmatpush.xpose.msra.mxu0 0.0
      %312 = vmatpush.xpose.msra.mxu0 0.0
      %313 = vmatpush.xpose.msra.mxu0 0.0
      %314 = vmatpush.xpose.msra.mxu0 0.0
      %315 = vmatpush.xpose.msra.mxu0 %v299
      %316 = vmatpush.xpose.msra.mxu0 %v297
      %317 = vmatmul.f32.gmra.mxu0 %v293
      %v318 = vpop.f32.mrf.mxu0
      %v319 = vadd.f32 0.0, %v318
      %320 = vmatmul.f32.gmra.mxu0 %v295
      %v321 = vpop.f32.mrf.mxu0
      %v322 = vadd.f32 0.0, %v321
      %323 = vdwg.mxu0
      %326 = vrot.lane.b32.xlu0 %v283, 96
      %v327 = vpop.permute.xlu0 %326
      %328 = vrot.lane.b32.xlu0 %v284, 96
      %v329 = vpop.permute.xlu0 %328
      %v330 = vsel %vm292, %v283, 0
      %v332 = vsel %vm292, %v284, 0
      %v334 = vsel %vm292, %v327, 0
      %v336 = vsel %vm292, %v329, 0
      %338 = vmatpush.xpose.msra.mxu0 0.0
      %339 = vmatpush.xpose.msra.mxu0 0.0
      %340 = vmatpush.xpose.msra.mxu0 0.0
      %341 = vmatpush.xpose.msra.mxu0 0.0
      %342 = vmatpush.xpose.msra.mxu0 0.0
      %343 = vmatpush.xpose.msra.mxu0 0.0
      %344 = vmatpush.xpose.msra.mxu0 0.0
      %345 = vmatpush.xpose.msra.mxu0 0.0
      %346 = vmatpush.xpose.msra.mxu0 0.0
      %347 = vmatpush.xpose.msra.mxu0 0.0
      %348 = vmatpush.xpose.msra.mxu0 0.0
      %349 = vmatpush.xpose.msra.mxu0 0.0
      %350 = vmatpush.xpose.msra.mxu0 0.0
      %351 = vmatpush.xpose.msra.mxu0 0.0
      %352 = vmatpush.xpose.msra.mxu0 %v336
      %353 = vmatpush.xpose.msra.mxu0 %v334
      %354 = vmatmul.f32.gmra.mxu0 %v330
      %v355 = vpop.f32.mrf.mxu0
      %v356 = vadd.f32 0.0, %v355
      %357 = vmatmul.f32.gmra.mxu0 %v332
      %v358 = vpop.f32.mrf.mxu0
      %v359 = vadd.f32 0.0, %v358
      %360 = vdwg.mxu0
      %v361 = vmul.f32 %v319, 0.35355338
      %v362 = vmul.f32 %v322, 0.35355338
      %v363 = vmul.f32 %v356, 0.35355338
      %v364 = vmul.f32 %v359, 0.35355338
      %v365 = vld [vmem:[%s1] sm:$0xff]
      %v366 = vld [vmem:[%s1 + $0x8] sm:$0xff]
      %v367 = vadd.f32 %v361, %v365
      %v368 = vadd.f32 %v362, %v366
      %v369 = vadd.f32 %v363, %v365
      %v370 = vadd.f32 %v364, %v366
      %vm371 = vcmask 130048
      %v372 = vsel %vm371, %v367, -inf
      %373 = vmax.xlane.f32.xlu0 %v372
      %v374 = vpop.xlane.xlu0 %373
      %v375 = vsel %vm371, %v368, -inf
      %376 = vmax.xlane.f32.xlu0 %v375
      %v377 = vpop.xlane.xlu0 %376
      %v378 = vsel %vm371, %v369, -inf
      %379 = vmax.xlane.f32.xlu0 %v378
      %v380 = vpop.xlane.xlu0 %379
      %v381 = vsel %vm371, %v370, -inf
      %382 = vmax.xlane.f32.xlu0 %v381
      %v383 = vpop.xlane.xlu0 %382
      %v384 = vsub.f32 %v367, %v374
      %v385 = vsub.f32 %v368, %v377
      %v386 = vsub.f32 %v369, %v380
      %v387 = vsub.f32 %v370, %v383
      %v388 = vmul.f32 %v384, 1.442695
      %v389 = vpow.pop %v388
      %v390 = vmul.f32 %v385, 1.442695
      %v391 = vpow.pop %v390
      %v392 = vmul.f32 %v386, 1.442695
      %v393 = vpow.pop %v392
      %v394 = vmul.f32 %v387, 1.442695
      %v395 = vpow.pop %v394
      %v396 = vsel %vm371, %v389, 0.0
      %397 = vadd.xlane.f32.xlu0 %v396
      %v398 = vpop.xlane.xlu0 %397
      %v399 = vsel %vm371, %v391, 0.0
      %400 = vadd.xlane.f32.xlu0 %v399
      %v401 = vpop.xlane.xlu0 %400
      %v402 = vsel %vm371, %v393, 0.0
      %403 = vadd.xlane.f32.xlu0 %v402
      %v404 = vpop.xlane.xlu0 %403
      %v405 = vsel %vm371, %v395, 0.0
      %406 = vadd.xlane.f32.xlu0 %v405
      %v407 = vpop.xlane.xlu0 %406
      %v408 = vrcp.pop %v398
      %v409 = vmul.f32 %v398, %v408
      %v410 = vsub.f32 1.0, %v409
      %v411 = vmul.f32 %v408, %v410
      %v412 = vadd.f32 %v408, %v411
      %vm413 = vweird.f32 %v398
      %vm414 = vweird.f32 %v408
      %vm415 = vmor %vm413, %vm414
      %v416 = vsel %vm415, %v408, %v412
      %v417 = vand.u32 2147483647, %v398
      %vm418 = vcmp.eq.f32.partialorder %v417, 8.507059e+37
      %v419 = vand.u32 %v398, 2147483648
      %v420 = vor.u32 1.1754944e-38, %v419
      %v421 = vsel %vm418, %v420, %v416
      %v422 = vmul.f32 %v389, %v421
      %v423 = vrcp.pop %v401
      %v424 = vmul.f32 %v401, %v423
      %v425 = vsub.f32 1.0, %v424
      %v426 = vmul.f32 %v423, %v425
      %v427 = vadd.f32 %v423, %v426
      %vm428 = vweird.f32 %v401
      %vm429 = vweird.f32 %v423
      %vm430 = vmor %vm428, %vm429
      %v431 = vsel %vm430, %v423, %v427
      %v432 = vand.u32 2147483647, %v401
      %vm433 = vcmp.eq.f32.partialorder %v432, 8.507059e+37
      %v434 = vand.u32 %v401, 2147483648
      %v435 = vor.u32 1.1754944e-38, %v434
      %v436 = vsel %vm433, %v435, %v431
      %v437 = vmul.f32 %v391, %v436
      %v438 = vrcp.pop %v404
      %v439 = vmul.f32 %v404, %v438
      %v440 = vsub.f32 1.0, %v439
      %v441 = vmul.f32 %v438, %v440
      %v442 = vadd.f32 %v438, %v441
      %vm443 = vweird.f32 %v404
      %vm444 = vweird.f32 %v438
      %vm445 = vmor %vm443, %vm444
      %v446 = vsel %vm445, %v438, %v442
      %v447 = vand.u32 2147483647, %v404
      %vm448 = vcmp.eq.f32.partialorder %v447, 8.507059e+37
      %v449 = vand.u32 %v404, 2147483648
      %v450 = vor.u32 1.1754944e-38, %v449
      %v451 = vsel %vm448, %v450, %v446
      %v452 = vmul.f32 %v393, %v451
      %v453 = vrcp.pop %v407
      %v454 = vmul.f32 %v407, %v453
      %v455 = vsub.f32 1.0, %v454
      %v456 = vmul.f32 %v453, %v455
      %v457 = vadd.f32 %v453, %v456
      %vm458 = vweird.f32 %v407
      %vm459 = vweird.f32 %v453
      %vm460 = vmor %vm458, %vm459
      %v461 = vsel %vm460, %v453, %v457
      %v462 = vand.u32 2147483647, %v407
      %vm463 = vcmp.eq.f32.partialorder %v462, 8.507059e+37
      %v464 = vand.u32 %v407, 2147483648
      %v465 = vor.u32 1.1754944e-38, %v464
      %v466 = vsel %vm463, %v465, %v461
      %v467 = vmul.f32 %v395, %v466
      %468 = vrot.lane.b32.xlu0 %v281, 64
      %v469 = vpop.permute.xlu0 %468
      %470 = vrot.lane.b32.xlu0 %v282, 64
      %v471 = vpop.permute.xlu0 %470
      %v475 = vsel %vm371, %v422, 0
      %v478 = vsel %vm371, %v437, 0
      %480 = vmatpush.msra.mxu0 0.0
      %481 = vmatpush.msra.mxu0 0.0
      %482 = vmatpush.msra.mxu0 0.0
      %483 = vmatpush.msra.mxu0 0.0
      %484 = vmatpush.msra.mxu0 0.0
      %485 = vmatpush.msra.mxu0 0.0
      %486 = vmatpush.msra.mxu0 0.0
      %487 = vmatpush.msra.mxu0 0.0
      %488 = vmatpush.msra.mxu0 0.0
      %489 = vmatpush.msra.mxu0 0.0
      %490 = vmatpush.msra.mxu0 0.0
      %491 = vmatpush.msra.mxu0 0.0
      %492 = vmatpush.msra.mxu0 0.0
      %493 = vmatpush.msra.mxu0 0.0
      %494 = vmatpush.msra.mxu0 %v471
      %495 = vmatpush.msra.mxu0 %v469
      %496 = vmatmul.f32.gmra.mxu0 %v475
      %v497 = vpop.f32.mrf.mxu0
      %v498 = vadd.f32 0.0, %v497
      %499 = vmatmul.f32.gmra.mxu0 %v478
      %v500 = vpop.f32.mrf.mxu0
      %v501 = vadd.f32 0.0, %v500
      %502 = vdwg.mxu0
      %503 = vrot.lane.b32.xlu0 %v283, 64
      %v504 = vpop.permute.xlu0 %503
      %505 = vrot.lane.b32.xlu0 %v284, 64
      %v506 = vpop.permute.xlu0 %505
      %v510 = vsel %vm371, %v452, 0
      %v513 = vsel %vm371, %v467, 0
      %515 = vmatpush.msra.mxu0 0.0
      %516 = vmatpush.msra.mxu0 0.0
      %517 = vmatpush.msra.mxu0 0.0
      %518 = vmatpush.msra.mxu0 0.0
      %519 = vmatpush.msra.mxu0 0.0
      %520 = vmatpush.msra.mxu0 0.0
      %521 = vmatpush.msra.mxu0 0.0
      %522 = vmatpush.msra.mxu0 0.0
      %523 = vmatpush.msra.mxu0 0.0
      %524 = vmatpush.msra.mxu0 0.0
      %525 = vmatpush.msra.mxu0 0.0
      %526 = vmatpush.msra.mxu0 0.0
      %527 = vmatpush.msra.mxu0 0.0
      %528 = vmatpush.msra.mxu0 0.0
      %529 = vmatpush.msra.mxu0 %v506
      %530 = vmatpush.msra.mxu0 %v504
      %531 = vmatmul.f32.gmra.mxu0 %v510
      %v532 = vpop.f32.mrf.mxu0
      %v533 = vadd.f32 0.0, %v532
      %534 = vmatmul.f32.gmra.mxu0 %v513
      %v535 = vpop.f32.mrf.mxu0
      %v536 = vadd.f32 0.0, %v535
      %537 = vdwg.mxu0
      %v539 = vperm.slane %v285, 0
      %v541 = vmul.f32 %v281, %v539
      %v542 = vmul.f32 %v282, %v539
      %v543 = vmul.f32 %v283, %v539
      %v544 = vmul.f32 %v284, %v539
      %v545 = vsel %vm292, %v541, 0.0
      %546 = vadd.xlane.f32.xlu0 %v545
      %v547 = vpop.xlane.xlu0 %546
      %v548 = vsel %vm292, %v542, 0.0
      %549 = vadd.xlane.f32.xlu0 %v548
      %v550 = vpop.xlane.xlu0 %549
      %v551 = vsel %vm292, %v543, 0.0
      %552 = vadd.xlane.f32.xlu0 %v551
      %v553 = vpop.xlane.xlu0 %552
      %v554 = vsel %vm292, %v544, 0.0
      %555 = vadd.xlane.f32.xlu0 %v554
      %v556 = vpop.xlane.xlu0 %555
      %v557 = vmul.f32 %v547, 0.35355338
      %v558 = vmul.f32 %v550, 0.35355338
      %v559 = vmul.f32 %v553, 0.35355338
      %v560 = vmul.f32 %v556, 0.35355338
      %v561 = vsub.f32 %v557, %v557
      %v562 = vsub.f32 %v558, %v558
      %v563 = vsub.f32 %v559, %v559
      %v564 = vsub.f32 %v560, %v560
      %v565 = vmul.f32 %v561, 1.442695
      %v566 = vpow.pop %v565
      %v567 = vmul.f32 %v562, 1.442695
      %v568 = vpow.pop %v567
      %v569 = vmul.f32 %v563, 1.442695
      %v570 = vpow.pop %v569
      %v571 = vmul.f32 %v564, 1.442695
      %v572 = vpow.pop %v571
      %v573 = vadd.f32 %v566, 0.0
      %v574 = vadd.f32 %v568, 0.0
      %v575 = vadd.f32 %v570, 0.0
      %v576 = vadd.f32 %v572, 0.0
      %v577 = vrcp.pop %v573
      %v578 = vmul.f32 %v573, %v577
      %v579 = vsub.f32 1.0, %v578
      %v580 = vmul.f32 %v577, %v579
      %v581 = vadd.f32 %v577, %v580
      %vm582 = vweird.f32 %v573
      %vm583 = vweird.f32 %v577
      %vm584 = vmor %vm582, %vm583
      %v585 = vsel %vm584, %v577, %v581
      %v586 = vand.u32 2147483647, %v573
      %vm587 = vcmp.eq.f32.partialorder %v586, 8.507059e+37
      %v588 = vand.u32 %v573, 2147483648
      %v589 = vor.u32 1.1754944e-38, %v588
      %v590 = vsel %vm587, %v589, %v585
      %v591 = vmul.f32 %v566, %v590
      %v592 = vrcp.pop %v574
      %v593 = vmul.f32 %v574, %v592
      %v594 = vsub.f32 1.0, %v593
      %v595 = vmul.f32 %v592, %v594
      %v596 = vadd.f32 %v592, %v595
      %vm597 = vweird.f32 %v574
      %vm598 = vweird.f32 %v592
      %vm599 = vmor %vm597, %vm598
      %v600 = vsel %vm599, %v592, %v596
      %v601 = vand.u32 2147483647, %v574
      %vm602 = vcmp.eq.f32.partialorder %v601, 8.507059e+37
      %v603 = vand.u32 %v574, 2147483648
      %v604 = vor.u32 1.1754944e-38, %v603
      %v605 = vsel %vm602, %v604, %v600
      %v606 = vmul.f32 %v568, %v605
      %v607 = vrcp.pop %v575
      %v608 = vmul.f32 %v575, %v607
      %v609 = vsub.f32 1.0, %v608
      %v610 = vmul.f32 %v607, %v609
      %v611 = vadd.f32 %v607, %v610
      %vm612 = vweird.f32 %v575
      %vm613 = vweird.f32 %v607
      %vm614 = vmor %vm612, %vm613
      %v615 = vsel %vm614, %v607, %v611
      %v616 = vand.u32 2147483647, %v575
      %vm617 = vcmp.eq.f32.partialorder %v616, 8.507059e+37
      %v618 = vand.u32 %v575, 2147483648
      %v619 = vor.u32 1.1754944e-38, %v618
      %v620 = vsel %vm617, %v619, %v615
      %v621 = vmul.f32 %v570, %v620
      %v622 = vrcp.pop %v576
      %v623 = vmul.f32 %v576, %v622
      %v624 = vsub.f32 1.0, %v623
      %v625 = vmul.f32 %v622, %v624
      %v626 = vadd.f32 %v622, %v625
      %vm627 = vweird.f32 %v576
      %vm628 = vweird.f32 %v622
      %vm629 = vmor %vm627, %vm628
      %v630 = vsel %vm629, %v622, %v626
      %v631 = vand.u32 2147483647, %v576
      %vm632 = vcmp.eq.f32.partialorder %v631, 8.507059e+37
      %v633 = vand.u32 %v576, 2147483648
      %v634 = vor.u32 1.1754944e-38, %v633
      %v635 = vsel %vm632, %v634, %v630
      %v636 = vmul.f32 %v572, %v635
      %637 = vrot.lane.b32.xlu0 %v539, 96
      %v638 = vpop.permute.xlu0 %637
      %vm639 = vcmask 7168
      %v641 = vsel %vm639, %v591, 0
      %v644 = vsel %vm639, %v606, 0
      %v647 = vsel %vm639, %v621, 0
      %v650 = vsel %vm639, %v636, 0
      %vm652 = vcmask 1040384
      %v653 = vsel %vm652, %v638, 0
      %655 = vmatpush.msra.mxu0 0.0
      %656 = vmatpush.msra.mxu0 0.0
      %657 = vmatpush.msra.mxu0 0.0
      %658 = vmatpush.msra.mxu0 0.0
      %659 = vmatpush.msra.mxu0 0.0
      %660 = vmatpush.msra.mxu0 0.0
      %661 = vmatpush.msra.mxu0 0.0
      %662 = vmatpush.msra.mxu0 0.0
      %663 = vmatpush.msra.mxu0 0.0
      %664 = vmatpush.msra.mxu0 0.0
      %665 = vmatpush.msra.mxu0 0.0
      %666 = vmatpush.msra.mxu0 0.0
      %667 = vmatpush.msra.mxu0 0.0
      %668 = vmatpush.msra.mxu0 0.0
      %669 = vmatpush.msra.mxu0 0.0
      %670 = vmatpush.msra.mxu0 %v653
      %671 = vmatmul.f32.gmra.mxu0 %v641
      %v672 = vpop.f32.mrf.mxu0
      %v673 = vadd.f32 0.0, %v672
      %674 = vmatmul.f32.gmra.mxu0 %v644
      %v675 = vpop.f32.mrf.mxu0
      %v676 = vadd.f32 0.0, %v675
      %677 = vmatmul.f32.gmra.mxu0 %v647
      %v678 = vpop.f32.mrf.mxu0
      %v679 = vadd.f32 0.0, %v678
      %680 = vmatmul.f32.gmra.mxu0 %v650
      %v681 = vpop.f32.mrf.mxu0
      %v682 = vadd.f32 0.0, %v681
      %683 = vdwg.mxu0
      %v684 = vadd.f32 %v498, %v673
      %v685 = vadd.f32 %v501, %v676
      %v686 = vadd.f32 %v533, %v679
      %v687 = vadd.f32 %v536, %v682
      %v688 = vld [vmem:[%s3] sm:$0xff]
      %689 = vrot.lane.b32.xlu0 %v281, 120
      %v690 = vpop.permute.xlu0 %689
      %691 = vrot.lane.b32.xlu0 %v282, 120
      %v692 = vpop.permute.xlu0 %691
      %693 = vrot.lane.b32.xlu0 %v281, 88
      %v694 = vpop.permute.xlu0 %693
      %695 = vrot.lane.b32.xlu0 %v282, 88
      %v696 = vpop.permute.xlu0 %695
      %v697 = vsel %vm292, %v690, 0
      %v699 = vsel %vm292, %v692, 0
      %v701 = vsel %vm292, %v694, 0
      %v703 = vsel %vm292, %v696, 0
      %705 = vmatpush.xpose.msra.mxu0 0.0
      %706 = vmatpush.xpose.msra.mxu0 0.0
      %707 = vmatpush.xpose.msra.mxu0 0.0
      %708 = vmatpush.xpose.msra.mxu0 0.0
      %709 = vmatpush.xpose.msra.mxu0 0.0
      %710 = vmatpush.xpose.msra.mxu0 0.0
      %711 = vmatpush.xpose.msra.mxu0 0.0
      %712 = vmatpush.xpose.msra.mxu0 0.0
      %713 = vmatpush.xpose.msra.mxu0 0.0
      %714 = vmatpush.xpose.msra.mxu0 0.0
      %715 = vmatpush.xpose.msra.mxu0 0.0
      %716 = vmatpush.xpose.msra.mxu0 0.0
      %717 = vmatpush.xpose.msra.mxu0 0.0
      %718 = vmatpush.xpose.msra.mxu0 0.0
      %719 = vmatpush.xpose.msra.mxu0 %v703
      %720 = vmatpush.xpose.msra.mxu0 %v701
      %721 = vmatmul.f32.gmra.mxu0 %v697
      %v722 = vpop.f32.mrf.mxu0
      %v723 = vadd.f32 0.0, %v722
      %724 = vmatmul.f32.gmra.mxu0 %v699
      %v725 = vpop.f32.mrf.mxu0
      %v726 = vadd.f32 0.0, %v725
      %727 = vdwg.mxu0
      %728 = vrot.lane.b32.xlu0 %v283, 120
      %v729 = vpop.permute.xlu0 %728
      %730 = vrot.lane.b32.xlu0 %v284, 120
      %v731 = vpop.permute.xlu0 %730
      %732 = vrot.lane.b32.xlu0 %v283, 88
      %v733 = vpop.permute.xlu0 %732
      %734 = vrot.lane.b32.xlu0 %v284, 88
      %v735 = vpop.permute.xlu0 %734
      %v736 = vsel %vm292, %v729, 0
      %v738 = vsel %vm292, %v731, 0
      %v740 = vsel %vm292, %v733, 0
      %v742 = vsel %vm292, %v735, 0
      %744 = vmatpush.xpose.msra.mxu0 0.0
      %745 = vmatpush.xpose.msra.mxu0 0.0
      %746 = vmatpush.xpose.msra.mxu0 0.0
      %747 = vmatpush.xpose.msra.mxu0 0.0
      %748 = vmatpush.xpose.msra.mxu0 0.0
      %749 = vmatpush.xpose.msra.mxu0 0.0
      %750 = vmatpush.xpose.msra.mxu0 0.0
      %751 = vmatpush.xpose.msra.mxu0 0.0
      %752 = vmatpush.xpose.msra.mxu0 0.0
      %753 = vmatpush.xpose.msra.mxu0 0.0
      %754 = vmatpush.xpose.msra.mxu0 0.0
      %755 = vmatpush.xpose.msra.mxu0 0.0
      %756 = vmatpush.xpose.msra.mxu0 0.0
      %757 = vmatpush.xpose.msra.mxu0 0.0
      %758 = vmatpush.xpose.msra.mxu0 %v742
      %759 = vmatpush.xpose.msra.mxu0 %v740
      %760 = vmatmul.f32.gmra.mxu0 %v736
      %v761 = vpop.f32.mrf.mxu0
      %v762 = vadd.f32 0.0, %v761
      %763 = vmatmul.f32.gmra.mxu0 %v738
      %v764 = vpop.f32.mrf.mxu0
      %v765 = vadd.f32 0.0, %v764
      %766 = vdwg.mxu0
      %v767 = vmul.f32 %v723, 0.35355338
      %v768 = vmul.f32 %v726, 0.35355338
      %v769 = vmul.f32 %v762, 0.35355338
      %v770 = vmul.f32 %v765, 0.35355338
      %s771 = scalar_lea.vmem %s1, 16
      %v772 = vld [vmem:[%s771] sm:$0xff]
      %v773 = vld [vmem:[%s771 + $0x8] sm:$0xff]
      %v774 = vadd.f32 %v767, %v772
      %v775 = vadd.f32 %v768, %v773
      %v776 = vadd.f32 %v769, %v772
      %v777 = vadd.f32 %v770, %v773
      %v778 = vsel %vm371, %v774, -inf
      %779 = vmax.xlane.f32.xlu0 %v778
      %v780 = vpop.xlane.xlu0 %779
      %v781 = vsel %vm371, %v775, -inf
      %782 = vmax.xlane.f32.xlu0 %v781
      %v783 = vpop.xlane.xlu0 %782
      %v784 = vsel %vm371, %v776, -inf
      %785 = vmax.xlane.f32.xlu0 %v784
      %v786 = vpop.xlane.xlu0 %785
      %v787 = vsel %vm371, %v777, -inf
      %788 = vmax.xlane.f32.xlu0 %v787
      %v789 = vpop.xlane.xlu0 %788
      %v790 = vsub.f32 %v774, %v780
      %v791 = vsub.f32 %v775, %v783
      %v792 = vsub.f32 %v776, %v786
      %v793 = vsub.f32 %v777, %v789
      %v794 = vmul.f32 %v790, 1.442695
      %v795 = vpow.pop %v794
      %v796 = vmul.f32 %v791, 1.442695
      %v797 = vpow.pop %v796
      %v798 = vmul.f32 %v792, 1.442695
      %v799 = vpow.pop %v798
      %v800 = vmul.f32 %v793, 1.442695
      %v801 = vpow.pop %v800
      %v802 = vsel %vm371, %v795, 0.0
      %803 = vadd.xlane.f32.xlu0 %v802
      %v804 = vpop.xlane.xlu0 %803
      %v805 = vsel %vm371, %v797, 0.0
      %806 = vadd.xlane.f32.xlu0 %v805
      %v807 = vpop.xlane.xlu0 %806
      %v808 = vsel %vm371, %v799, 0.0
      %809 = vadd.xlane.f32.xlu0 %v808
      %v810 = vpop.xlane.xlu0 %809
      %v811 = vsel %vm371, %v801, 0.0
      %812 = vadd.xlane.f32.xlu0 %v811
      %v813 = vpop.xlane.xlu0 %812
      %v814 = vrcp.pop %v804
      %v815 = vmul.f32 %v804, %v814
      %v816 = vsub.f32 1.0, %v815
      %v817 = vmul.f32 %v814, %v816
      %v818 = vadd.f32 %v814, %v817
      %vm819 = vweird.f32 %v804
      %vm820 = vweird.f32 %v814
      %vm821 = vmor %vm819, %vm820
      %v822 = vsel %vm821, %v814, %v818
      %v823 = vand.u32 2147483647, %v804
      %vm824 = vcmp.eq.f32.partialorder %v823, 8.507059e+37
      %v825 = vand.u32 %v804, 2147483648
      %v826 = vor.u32 1.1754944e-38, %v825
      %v827 = vsel %vm824, %v826, %v822
      %v828 = vmul.f32 %v795, %v827
      %v829 = vrcp.pop %v807
      %v830 = vmul.f32 %v807, %v829
      %v831 = vsub.f32 1.0, %v830
      %v832 = vmul.f32 %v829, %v831
      %v833 = vadd.f32 %v829, %v832
      %vm834 = vweird.f32 %v807
      %vm835 = vweird.f32 %v829
      %vm836 = vmor %vm834, %vm835
      %v837 = vsel %vm836, %v829, %v833
      %v838 = vand.u32 2147483647, %v807
      %vm839 = vcmp.eq.f32.partialorder %v838, 8.507059e+37
      %v840 = vand.u32 %v807, 2147483648
      %v841 = vor.u32 1.1754944e-38, %v840
      %v842 = vsel %vm839, %v841, %v837
      %v843 = vmul.f32 %v797, %v842
      %v844 = vrcp.pop %v810
      %v845 = vmul.f32 %v810, %v844
      %v846 = vsub.f32 1.0, %v845
      %v847 = vmul.f32 %v844, %v846
      %v848 = vadd.f32 %v844, %v847
      %vm849 = vweird.f32 %v810
      %vm850 = vweird.f32 %v844
      %vm851 = vmor %vm849, %vm850
      %v852 = vsel %vm851, %v844, %v848
      %v853 = vand.u32 2147483647, %v810
      %vm854 = vcmp.eq.f32.partialorder %v853, 8.507059e+37
      %v855 = vand.u32 %v810, 2147483648
      %v856 = vor.u32 1.1754944e-38, %v855
      %v857 = vsel %vm854, %v856, %v852
      %v858 = vmul.f32 %v799, %v857
      %v859 = vrcp.pop %v813
      %v860 = vmul.f32 %v813, %v859
      %v861 = vsub.f32 1.0, %v860
      %v862 = vmul.f32 %v859, %v861
      %v863 = vadd.f32 %v859, %v862
      %vm864 = vweird.f32 %v813
      %vm865 = vweird.f32 %v859
      %vm866 = vmor %vm864, %vm865
      %v867 = vsel %vm866, %v859, %v863
      %v868 = vand.u32 2147483647, %v813
      %vm869 = vcmp.eq.f32.partialorder %v868, 8.507059e+37
      %v870 = vand.u32 %v813, 2147483648
      %v871 = vor.u32 1.1754944e-38, %v870
      %v872 = vsel %vm869, %v871, %v867
      %v873 = vmul.f32 %v801, %v872
      %874 = vrot.lane.b32.xlu0 %v281, 56
      %v875 = vpop.permute.xlu0 %874
      %876 = vrot.lane.b32.xlu0 %v282, 56
      %v877 = vpop.permute.xlu0 %876
      %v881 = vsel %vm371, %v828, 0
      %v884 = vsel %vm371, %v843, 0
      %886 = vmatpush.msra.mxu0 0.0
      %887 = vmatpush.msra.mxu0 0.0
      %888 = vmatpush.msra.mxu0 0.0
      %889 = vmatpush.msra.mxu0 0.0
      %890 = vmatpush.msra.mxu0 0.0
      %891 = vmatpush.msra.mxu0 0.0
      %892 = vmatpush.msra.mxu0 0.0
      %893 = vmatpush.msra.mxu0 0.0
      %894 = vmatpush.msra.mxu0 0.0
      %895 = vmatpush.msra.mxu0 0.0
      %896 = vmatpush.msra.mxu0 0.0
      %897 = vmatpush.msra.mxu0 0.0
      %898 = vmatpush.msra.mxu0 0.0
      %899 = vmatpush.msra.mxu0 0.0
      %900 = vmatpush.msra.mxu0 %v877
      %901 = vmatpush.msra.mxu0 %v875
      %902 = vmatmul.f32.gmra.mxu0 %v881
      %v903 = vpop.f32.mrf.mxu0
      %v904 = vadd.f32 0.0, %v903
      %905 = vmatmul.f32.gmra.mxu0 %v884
      %v906 = vpop.f32.mrf.mxu0
      %v907 = vadd.f32 0.0, %v906
      %908 = vdwg.mxu0
      %909 = vrot.lane.b32.xlu0 %v283, 56
      %v910 = vpop.permute.xlu0 %909
      %911 = vrot.lane.b32.xlu0 %v284, 56
      %v912 = vpop.permute.xlu0 %911
      %v916 = vsel %vm371, %v858, 0
      %v919 = vsel %vm371, %v873, 0
      %921 = vmatpush.msra.mxu0 0.0
      %922 = vmatpush.msra.mxu0 0.0
      %923 = vmatpush.msra.mxu0 0.0
      %924 = vmatpush.msra.mxu0 0.0
      %925 = vmatpush.msra.mxu0 0.0
      %926 = vmatpush.msra.mxu0 0.0
      %927 = vmatpush.msra.mxu0 0.0
      %928 = vmatpush.msra.mxu0 0.0
      %929 = vmatpush.msra.mxu0 0.0
      %930 = vmatpush.msra.mxu0 0.0
      %931 = vmatpush.msra.mxu0 0.0
      %932 = vmatpush.msra.mxu0 0.0
      %933 = vmatpush.msra.mxu0 0.0
      %934 = vmatpush.msra.mxu0 0.0
      %935 = vmatpush.msra.mxu0 %v912
      %936 = vmatpush.msra.mxu0 %v910
      %937 = vmatmul.f32.gmra.mxu0 %v916
      %v938 = vpop.f32.mrf.mxu0
      %v939 = vadd.f32 0.0, %v938
      %940 = vmatmul.f32.gmra.mxu0 %v919
      %v941 = vpop.f32.mrf.mxu0
      %v942 = vadd.f32 0.0, %v941
      %943 = vdwg.mxu0
      %948 = vrot.lane.b32.xlu0 %v541, 120
      %v949 = vpop.permute.xlu0 %948
      %950 = vrot.lane.b32.xlu0 %v542, 120
      %v951 = vpop.permute.xlu0 %950
      %952 = vrot.lane.b32.xlu0 %v543, 120
      %v953 = vpop.permute.xlu0 %952
      %954 = vrot.lane.b32.xlu0 %v544, 120
      %v955 = vpop.permute.xlu0 %954
      %v960 = vsel %vm292, %v949, 0.0
      %961 = vadd.xlane.f32.xlu0 %v960
      %v962 = vpop.xlane.xlu0 %961
      %v963 = vsel %vm292, %v951, 0.0
      %964 = vadd.xlane.f32.xlu0 %v963
      %v965 = vpop.xlane.xlu0 %964
      %v966 = vsel %vm292, %v953, 0.0
      %967 = vadd.xlane.f32.xlu0 %v966
      %v968 = vpop.xlane.xlu0 %967
      %v969 = vsel %vm292, %v955, 0.0
      %970 = vadd.xlane.f32.xlu0 %v969
      %v971 = vpop.xlane.xlu0 %970
      %v972 = vmul.f32 %v962, 0.35355338
      %v973 = vmul.f32 %v965, 0.35355338
      %v974 = vmul.f32 %v968, 0.35355338
      %v975 = vmul.f32 %v971, 0.35355338
      %v976 = vsub.f32 %v972, %v972
      %v977 = vsub.f32 %v973, %v973
      %v978 = vsub.f32 %v974, %v974
      %v979 = vsub.f32 %v975, %v975
      %v980 = vmul.f32 %v976, 1.442695
      %v981 = vpow.pop %v980
      %v982 = vmul.f32 %v977, 1.442695
      %v983 = vpow.pop %v982
      %v984 = vmul.f32 %v978, 1.442695
      %v985 = vpow.pop %v984
      %v986 = vmul.f32 %v979, 1.442695
      %v987 = vpow.pop %v986
      %v988 = vadd.f32 %v981, 0.0
      %v989 = vadd.f32 %v983, 0.0
      %v990 = vadd.f32 %v985, 0.0
      %v991 = vadd.f32 %v987, 0.0
      %v992 = vrcp.pop %v988
      %v993 = vmul.f32 %v988, %v992
      %v994 = vsub.f32 1.0, %v993
      %v995 = vmul.f32 %v992, %v994
      %v996 = vadd.f32 %v992, %v995
      %vm997 = vweird.f32 %v988
      %vm998 = vweird.f32 %v992
      %vm999 = vmor %vm997, %vm998
      %v1000 = vsel %vm999, %v992, %v996
      %v1001 = vand.u32 2147483647, %v988
      %vm1002 = vcmp.eq.f32.partialorder %v1001, 8.507059e+37
      %v1003 = vand.u32 %v988, 2147483648
      %v1004 = vor.u32 1.1754944e-38, %v1003
      %v1005 = vsel %vm1002, %v1004, %v1000
      %v1006 = vmul.f32 %v981, %v1005
      %v1007 = vrcp.pop %v989
      %v1008 = vmul.f32 %v989, %v1007
      %v1009 = vsub.f32 1.0, %v1008
      %v1010 = vmul.f32 %v1007, %v1009
      %v1011 = vadd.f32 %v1007, %v1010
      %vm1012 = vweird.f32 %v989
      %vm1013 = vweird.f32 %v1007
      %vm1014 = vmor %vm1012, %vm1013
      %v1015 = vsel %vm1014, %v1007, %v1011
      %v1016 = vand.u32 2147483647, %v989
      %vm1017 = vcmp.eq.f32.partialorder %v1016, 8.507059e+37
      %v1018 = vand.u32 %v989, 2147483648
      %v1019 = vor.u32 1.1754944e-38, %v1018
      %v1020 = vsel %vm1017, %v1019, %v1015
      %v1021 = vmul.f32 %v983, %v1020
      %v1022 = vrcp.pop %v990
      %v1023 = vmul.f32 %v990, %v1022
      %v1024 = vsub.f32 1.0, %v1023
      %v1025 = vmul.f32 %v1022, %v1024
      %v1026 = vadd.f32 %v1022, %v1025
      %vm1027 = vweird.f32 %v990
      %vm1028 = vweird.f32 %v1022
      %vm1029 = vmor %vm1027, %vm1028
      %v1030 = vsel %vm1029, %v1022, %v1026
      %v1031 = vand.u32 2147483647, %v990
      %vm1032 = vcmp.eq.f32.partialorder %v1031, 8.507059e+37
      %v1033 = vand.u32 %v990, 2147483648
      %v1034 = vor.u32 1.1754944e-38, %v1033
      %v1035 = vsel %vm1032, %v1034, %v1030
      %v1036 = vmul.f32 %v985, %v1035
      %v1037 = vrcp.pop %v991
      %v1038 = vmul.f32 %v991, %v1037
      %v1039 = vsub.f32 1.0, %v1038
      %v1040 = vmul.f32 %v1037, %v1039
      %v1041 = vadd.f32 %v1037, %v1040
      %vm1042 = vweird.f32 %v991
      %vm1043 = vweird.f32 %v1037
      %vm1044 = vmor %vm1042, %vm1043
      %v1045 = vsel %vm1044, %v1037, %v1041
      %v1046 = vand.u32 2147483647, %v991
      %vm1047 = vcmp.eq.f32.partialorder %v1046, 8.507059e+37
      %v1048 = vand.u32 %v991, 2147483648
      %v1049 = vor.u32 1.1754944e-38, %v1048
      %v1050 = vsel %vm1047, %v1049, %v1045
      %v1051 = vmul.f32 %v987, %v1050
      %1052 = vrot.lane.b32.xlu0 %v539, 88
      %v1053 = vpop.permute.xlu0 %1052
      %v1055 = vsel %vm639, %v1006, 0
      %v1058 = vsel %vm639, %v1021, 0
      %v1061 = vsel %vm639, %v1036, 0
      %v1064 = vsel %vm639, %v1051, 0
      %v1066 = vsel %vm652, %v1053, 0
      %1068 = vmatpush.msra.mxu0 0.0
      %1069 = vmatpush.msra.mxu0 0.0
      %1070 = vmatpush.msra.mxu0 0.0
      %1071 = vmatpush.msra.mxu0 0.0
      %1072 = vmatpush.msra.mxu0 0.0
      %1073 = vmatpush.msra.mxu0 0.0
      %1074 = vmatpush.msra.mxu0 0.0
      %1075 = vmatpush.msra.mxu0 0.0
      %1076 = vmatpush.msra.mxu0 0.0
      %1077 = vmatpush.msra.mxu0 0.0
      %1078 = vmatpush.msra.mxu0 0.0
      %1079 = vmatpush.msra.mxu0 0.0
      %1080 = vmatpush.msra.mxu0 0.0
      %1081 = vmatpush.msra.mxu0 0.0
      %1082 = vmatpush.msra.mxu0 0.0
      %1083 = vmatpush.msra.mxu0 %v1066
      %1084 = vmatmul.f32.gmra.mxu0 %v1055
      %v1085 = vpop.f32.mrf.mxu0
      %v1086 = vadd.f32 0.0, %v1085
      %1087 = vmatmul.f32.gmra.mxu0 %v1058
      %v1088 = vpop.f32.mrf.mxu0
      %v1089 = vadd.f32 0.0, %v1088
      %1090 = vmatmul.f32.gmra.mxu0 %v1061
      %v1091 = vpop.f32.mrf.mxu0
      %v1092 = vadd.f32 0.0, %v1091
      %1093 = vmatmul.f32.gmra.mxu0 %v1064
      %v1094 = vpop.f32.mrf.mxu0
      %v1095 = vadd.f32 0.0, %v1094
      %1096 = vdwg.mxu0
      %v1097 = vadd.f32 %v904, %v1086
      %v1098 = vadd.f32 %v907, %v1089
      %v1099 = vadd.f32 %v939, %v1092
      %v1100 = vadd.f32 %v942, %v1095
      %v1101 = vld [vmem:[%s3 + $0x8] sm:$0xff]
      %v1103 = vsel %vm292, %v1097, 0
      %v1106 = vsel %vm292, %v1098, 0
      %v1109 = vsel %vm292, %v1099, 0
      %v1112 = vsel %vm292, %v1100, 0
      %1114 = vmatpush.msra.mxu0 0.0
      %1115 = vmatpush.msra.mxu0 0.0
      %1116 = vmatpush.msra.mxu0 0.0
      %1117 = vmatpush.msra.mxu0 0.0
      %1118 = vmatpush.msra.mxu0 0.0
      %1119 = vmatpush.msra.mxu0 0.0
      %1120 = vmatpush.msra.mxu0 0.0
      %1121 = vmatpush.msra.mxu0 0.0
      %1122 = vmatpush.msra.mxu0 0.0
      %1123 = vmatpush.msra.mxu0 0.0
      %1124 = vmatpush.msra.mxu0 0.0
      %1125 = vmatpush.msra.mxu0 0.0
      %1126 = vmatpush.msra.mxu0 0.0
      %1127 = vmatpush.msra.mxu0 0.0
      %1128 = vmatpush.msra.mxu0 0.0
      %1129 = vmatpush.msra.mxu0 %v1101
      %1130 = vmatmul.f32.gmra.mxu0 %v1103
      %v1131 = vpop.f32.mrf.mxu0
      %v1132 = vadd.f32 0.0, %v1131
      %1133 = vmatmul.f32.gmra.mxu0 %v1106
      %v1134 = vpop.f32.mrf.mxu0
      %v1135 = vadd.f32 0.0, %v1134
      %1136 = vmatmul.f32.gmra.mxu0 %v1109
      %v1137 = vpop.f32.mrf.mxu0
      %v1138 = vadd.f32 0.0, %v1137
      %1139 = vmatmul.f32.gmra.mxu0 %v1112
      %v1140 = vpop.f32.mrf.mxu0
      %v1141 = vadd.f32 0.0, %v1140
      %1142 = vdwg.mxu0
      %v1144 = vsel %vm292, %v684, 0
      %v1147 = vsel %vm292, %v685, 0
      %v1150 = vsel %vm292, %v686, 0
      %v1153 = vsel %vm292, %v687, 0
      %1155 = vmatpush.msra.mxu0 0.0
      %1156 = vmatpush.msra.mxu0 0.0
      %1157 = vmatpush.msra.mxu0 0.0
      %1158 = vmatpush.msra.mxu0 0.0
      %1159 = vmatpush.msra.mxu0 0.0
      %1160 = vmatpush.msra.mxu0 0.0
      %1161 = vmatpush.msra.mxu0 0.0
      %1162 = vmatpush.msra.mxu0 0.0
      %1163 = vmatpush.msra.mxu0 0.0
      %1164 = vmatpush.msra.mxu0 0.0
      %1165 = vmatpush.msra.mxu0 0.0
      %1166 = vmatpush.msra.mxu0 0.0
      %1167 = vmatpush.msra.mxu0 0.0
      %1168 = vmatpush.msra.mxu0 0.0
      %1169 = vmatpush.msra.mxu0 0.0
      %1170 = vmatpush.msra.mxu0 %v688
      %1171 = vmatmul.f32.gmra.mxu0 %v1144
      %v1172 = vpop.f32.mrf.mxu0
      %v1173 = vadd.f32 %v1132, %v1172
      %1174 = vmatmul.f32.gmra.mxu0 %v1147
      %v1175 = vpop.f32.mrf.mxu0
      %v1176 = vadd.f32 %v1135, %v1175
      %1177 = vmatmul.f32.gmra.mxu0 %v1150
      %v1178 = vpop.f32.mrf.mxu0
      %v1179 = vadd.f32 %v1138, %v1178
      %1180 = vmatmul.f32.gmra.mxu0 %v1153
      %v1181 = vpop.f32.mrf.mxu0
      %v1182 = vadd.f32 %v1141, %v1181
      %1183 = vdwg.mxu0
      %1184 = vrot.lane.b32.xlu0 %v281, 112
      %v1185 = vpop.permute.xlu0 %1184
      %1186 = vrot.lane.b32.xlu0 %v282, 112
      %v1187 = vpop.permute.xlu0 %1186
      %1188 = vrot.lane.b32.xlu0 %v281, 80
      %v1189 = vpop.permute.xlu0 %1188
      %1190 = vrot.lane.b32.xlu0 %v282, 80
      %v1191 = vpop.permute.xlu0 %1190
      %v1192 = vsel %vm292, %v1185, 0
      %v1194 = vsel %vm292, %v1187, 0
      %v1196 = vsel %vm292, %v1189, 0
      %v1198 = vsel %vm292, %v1191, 0
      %1200 = vmatpush.xpose.msra.mxu0 0.0
      %1201 = vmatpush.xpose.msra.mxu0 0.0
      %1202 = vmatpush.xpose.msra.mxu0 0.0
      %1203 = vmatpush.xpose.msra.mxu0 0.0
      %1204 = vmatpush.xpose.msra.mxu0 0.0
      %1205 = vmatpush.xpose.msra.mxu0 0.0
      %1206 = vmatpush.xpose.msra.mxu0 0.0
      %1207 = vmatpush.xpose.msra.mxu0 0.0
      %1208 = vmatpush.xpose.msra.mxu0 0.0
      %1209 = vmatpush.xpose.msra.mxu0 0.0
      %1210 = vmatpush.xpose.msra.mxu0 0.0
      %1211 = vmatpush.xpose.msra.mxu0 0.0
      %1212 = vmatpush.xpose.msra.mxu0 0.0
      %1213 = vmatpush.xpose.msra.mxu0 0.0
      %1214 = vmatpush.xpose.msra.mxu0 %v1198
      %1215 = vmatpush.xpose.msra.mxu0 %v1196
      %1216 = vmatmul.f32.gmra.mxu0 %v1192
      %v1217 = vpop.f32.mrf.mxu0
      %v1218 = vadd.f32 0.0, %v1217
      %1219 = vmatmul.f32.gmra.mxu0 %v1194
      %v1220 = vpop.f32.mrf.mxu0
      %v1221 = vadd.f32 0.0, %v1220
      %1222 = vdwg.mxu0
      %1223 = vrot.lane.b32.xlu0 %v283, 112
      %v1224 = vpop.permute.xlu0 %1223
      %1225 = vrot.lane.b32.xlu0 %v284, 112
      %v1226 = vpop.permute.xlu0 %1225
      %1227 = vrot.lane.b32.xlu0 %v283, 80
      %v1228 = vpop.permute.xlu0 %1227
      %1229 = vrot.lane.b32.xlu0 %v284, 80
      %v1230 = vpop.permute.xlu0 %1229
      %v1231 = vsel %vm292, %v1224, 0
      %v1233 = vsel %vm292, %v1226, 0
      %v1235 = vsel %vm292, %v1228, 0
      %v1237 = vsel %vm292, %v1230, 0
      %1239 = vmatpush.xpose.msra.mxu0 0.0
      %1240 = vmatpush.xpose.msra.mxu0 0.0
      %1241 = vmatpush.xpose.msra.mxu0 0.0
      %1242 = vmatpush.xpose.msra.mxu0 0.0
      %1243 = vmatpush.xpose.msra.mxu0 0.0
      %1244 = vmatpush.xpose.msra.mxu0 0.0
      %1245 = vmatpush.xpose.msra.mxu0 0.0
      %1246 = vmatpush.xpose.msra.mxu0 0.0
      %1247 = vmatpush.xpose.msra.mxu0 0.0
      %1248 = vmatpush.xpose.msra.mxu0 0.0
      %1249 = vmatpush.xpose.msra.mxu0 0.0
      %1250 = vmatpush.xpose.msra.mxu0 0.0
      %1251 = vmatpush.xpose.msra.mxu0 0.0
      %1252 = vmatpush.xpose.msra.mxu0 0.0
      %1253 = vmatpush.xpose.msra.mxu0 %v1237
      %1254 = vmatpush.xpose.msra.mxu0 %v1235
      %1255 = vmatmul.f32.gmra.mxu0 %v1231
      %v1256 = vpop.f32.mrf.mxu0
      %v1257 = vadd.f32 0.0, %v1256
      %1258 = vmatmul.f32.gmra.mxu0 %v1233
      %v1259 = vpop.f32.mrf.mxu0
      %v1260 = vadd.f32 0.0, %v1259
      %1261 = vdwg.mxu0
      %v1262 = vmul.f32 %v1218, 0.35355338
      %v1263 = vmul.f32 %v1221, 0.35355338
      %v1264 = vmul.f32 %v1257, 0.35355338
      %v1265 = vmul.f32 %v1260, 0.35355338
      %s1266 = scalar_lea.vmem %s1, 32
      %v1267 = vld [vmem:[%s1266] sm:$0xff]
      %v1268 = vld [vmem:[%s1266 + $0x8] sm:$0xff]
      %v1269 = vadd.f32 %v1262, %v1267
      %v1270 = vadd.f32 %v1263, %v1268
      %v1271 = vadd.f32 %v1264, %v1267
      %v1272 = vadd.f32 %v1265, %v1268
      %v1273 = vsel %vm371, %v1269, -inf
      %1274 = vmax.xlane.f32.xlu0 %v1273
      %v1275 = vpop.xlane.xlu0 %1274
      %v1276 = vsel %vm371, %v1270, -inf
      %1277 = vmax.xlane.f32.xlu0 %v1276
      %v1278 = vpop.xlane.xlu0 %1277
      %v1279 = vsel %vm371, %v1271, -inf
      %1280 = vmax.xlane.f32.xlu0 %v1279
      %v1281 = vpop.xlane.xlu0 %1280
      %v1282 = vsel %vm371, %v1272, -inf
      %1283 = vmax.xlane.f32.xlu0 %v1282
      %v1284 = vpop.xlane.xlu0 %1283
      %v1285 = vsub.f32 %v1269, %v1275
      %v1286 = vsub.f32 %v1270, %v1278
      %v1287 = vsub.f32 %v1271, %v1281
      %v1288 = vsub.f32 %v1272, %v1284
      %v1289 = vmul.f32 %v1285, 1.442695
      %v1290 = vpow.pop %v1289
      %v1291 = vmul.f32 %v1286, 1.442695
      %v1292 = vpow.pop %v1291
      %v1293 = vmul.f32 %v1287, 1.442695
      %v1294 = vpow.pop %v1293
      %v1295 = vmul.f32 %v1288, 1.442695
      %v1296 = vpow.pop %v1295
      %v1297 = vsel %vm371, %v1290, 0.0
      %1298 = vadd.xlane.f32.xlu0 %v1297
      %v1299 = vpop.xlane.xlu0 %1298
      %v1300 = vsel %vm371, %v1292, 0.0
      %1301 = vadd.xlane.f32.xlu0 %v1300
      %v1302 = vpop.xlane.xlu0 %1301
      %v1303 = vsel %vm371, %v1294, 0.0
      %1304 = vadd.xlane.f32.xlu0 %v1303
      %v1305 = vpop.xlane.xlu0 %1304
      %v1306 = vsel %vm371, %v1296, 0.0
      %1307 = vadd.xlane.f32.xlu0 %v1306
      %v1308 = vpop.xlane.xlu0 %1307
      %v1309 = vrcp.pop %v1299
      %v1310 = vmul.f32 %v1299, %v1309
      %v1311 = vsub.f32 1.0, %v1310
      %v1312 = vmul.f32 %v1309, %v1311
      %v1313 = vadd.f32 %v1309, %v1312
      %vm1314 = vweird.f32 %v1299
      %vm1315 = vweird.f32 %v1309
      %vm1316 = vmor %vm1314, %vm1315
      %v1317 = vsel %vm1316, %v1309, %v1313
      %v1318 = vand.u32 2147483647, %v1299
      %vm1319 = vcmp.eq.f32.partialorder %v1318, 8.507059e+37
      %v1320 = vand.u32 %v1299, 2147483648
      %v1321 = vor.u32 1.1754944e-38, %v1320
      %v1322 = vsel %vm1319, %v1321, %v1317
      %v1323 = vmul.f32 %v1290, %v1322
      %v1324 = vrcp.pop %v1302
      %v1325 = vmul.f32 %v1302, %v1324
      %v1326 = vsub.f32 1.0, %v1325
      %v1327 = vmul.f32 %v1324, %v1326
      %v1328 = vadd.f32 %v1324, %v1327
      %vm1329 = vweird.f32 %v1302
      %vm1330 = vweird.f32 %v1324
      %vm1331 = vmor %vm1329, %vm1330
      %v1332 = vsel %vm1331, %v1324, %v1328
      %v1333 = vand.u32 2147483647, %v1302
      %vm1334 = vcmp.eq.f32.partialorder %v1333, 8.507059e+37
      %v1335 = vand.u32 %v1302, 2147483648
      %v1336 = vor.u32 1.1754944e-38, %v1335
      %v1337 = vsel %vm1334, %v1336, %v1332
      %v1338 = vmul.f32 %v1292, %v1337
      %v1339 = vrcp.pop %v1305
      %v1340 = vmul.f32 %v1305, %v1339
      %v1341 = vsub.f32 1.0, %v1340
      %v1342 = vmul.f32 %v1339, %v1341
      %v1343 = vadd.f32 %v1339, %v1342
      %vm1344 = vweird.f32 %v1305
      %vm1345 = vweird.f32 %v1339
      %vm1346 = vmor %vm1344, %vm1345
      %v1347 = vsel %vm1346, %v1339, %v1343
      %v1348 = vand.u32 2147483647, %v1305
      %vm1349 = vcmp.eq.f32.partialorder %v1348, 8.507059e+37
      %v1350 = vand.u32 %v1305, 2147483648
      %v1351 = vor.u32 1.1754944e-38, %v1350
      %v1352 = vsel %vm1349, %v1351, %v1347
      %v1353 = vmul.f32 %v1294, %v1352
      %v1354 = vrcp.pop %v1308
      %v1355 = vmul.f32 %v1308, %v1354
      %v1356 = vsub.f32 1.0, %v1355
      %v1357 = vmul.f32 %v1354, %v1356
      %v1358 = vadd.f32 %v1354, %v1357
      %vm1359 = vweird.f32 %v1308
      %vm1360 = vweird.f32 %v1354
      %vm1361 = vmor %vm1359, %vm1360
      %v1362 = vsel %vm1361, %v1354, %v1358
      %v1363 = vand.u32 2147483647, %v1308
      %vm1364 = vcmp.eq.f32.partialorder %v1363, 8.507059e+37
      %v1365 = vand.u32 %v1308, 2147483648
      %v1366 = vor.u32 1.1754944e-38, %v1365
      %v1367 = vsel %vm1364, %v1366, %v1362
      %v1368 = vmul.f32 %v1296, %v1367
      %1369 = vrot.lane.b32.xlu0 %v281, 48
      %v1370 = vpop.permute.xlu0 %1369
      %1371 = vrot.lane.b32.xlu0 %v282, 48
      %v1372 = vpop.permute.xlu0 %1371
      %v1376 = vsel %vm371, %v1323, 0
      %v1379 = vsel %vm371, %v1338, 0
      %1381 = vmatpush.msra.mxu0 0.0
      %1382 = vmatpush.msra.mxu0 0.0
      %1383 = vmatpush.msra.mxu0 0.0
      %1384 = vmatpush.msra.mxu0 0.0
      %1385 = vmatpush.msra.mxu0 0.0
      %1386 = vmatpush.msra.mxu0 0.0
      %1387 = vmatpush.msra.mxu0 0.0
      %1388 = vmatpush.msra.mxu0 0.0
      %1389 = vmatpush.msra.mxu0 0.0
      %1390 = vmatpush.msra.mxu0 0.0
      %1391 = vmatpush.msra.mxu0 0.0
      %1392 = vmatpush.msra.mxu0 0.0
      %1393 = vmatpush.msra.mxu0 0.0
      %1394 = vmatpush.msra.mxu0 0.0
      %1395 = vmatpush.msra.mxu0 %v1372
      %1396 = vmatpush.msra.mxu0 %v1370
      %1397 = vmatmul.f32.gmra.mxu0 %v1376
      %v1398 = vpop.f32.mrf.mxu0
      %v1399 = vadd.f32 0.0, %v1398
      %1400 = vmatmul.f32.gmra.mxu0 %v1379
      %v1401 = vpop.f32.mrf.mxu0
      %v1402 = vadd.f32 0.0, %v1401
      %1403 = vdwg.mxu0
      %1404 = vrot.lane.b32.xlu0 %v283, 48
      %v1405 = vpop.permute.xlu0 %1404
      %1406 = vrot.lane.b32.xlu0 %v284, 48
      %v1407 = vpop.permute.xlu0 %1406
      %v1411 = vsel %vm371, %v1353, 0
      %v1414 = vsel %vm371, %v1368, 0
      %1416 = vmatpush.msra.mxu0 0.0
      %1417 = vmatpush.msra.mxu0 0.0
      %1418 = vmatpush.msra.mxu0 0.0
      %1419 = vmatpush.msra.mxu0 0.0
      %1420 = vmatpush.msra.mxu0 0.0
      %1421 = vmatpush.msra.mxu0 0.0
      %1422 = vmatpush.msra.mxu0 0.0
      %1423 = vmatpush.msra.mxu0 0.0
      %1424 = vmatpush.msra.mxu0 0.0
      %1425 = vmatpush.msra.mxu0 0.0
      %1426 = vmatpush.msra.mxu0 0.0
      %1427 = vmatpush.msra.mxu0 0.0
      %1428 = vmatpush.msra.mxu0 0.0
      %1429 = vmatpush.msra.mxu0 0.0
      %1430 = vmatpush.msra.mxu0 %v1407
      %1431 = vmatpush.msra.mxu0 %v1405
      %1432 = vmatmul.f32.gmra.mxu0 %v1411
      %v1433 = vpop.f32.mrf.mxu0
      %v1434 = vadd.f32 0.0, %v1433
      %1435 = vmatmul.f32.gmra.mxu0 %v1414
      %v1436 = vpop.f32.mrf.mxu0
      %v1437 = vadd.f32 0.0, %v1436
      %1438 = vdwg.mxu0
      %1439 = vrot.lane.b32.xlu0 %v541, 112
      %v1440 = vpop.permute.xlu0 %1439
      %1441 = vrot.lane.b32.xlu0 %v542, 112
      %v1442 = vpop.permute.xlu0 %1441
      %1443 = vrot.lane.b32.xlu0 %v543, 112
      %v1444 = vpop.permute.xlu0 %1443
      %1445 = vrot.lane.b32.xlu0 %v544, 112
      %v1446 = vpop.permute.xlu0 %1445
      %v1451 = vsel %vm292, %v1440, 0.0
      %1452 = vadd.xlane.f32.xlu0 %v1451
      %v1453 = vpop.xlane.xlu0 %1452
      %v1454 = vsel %vm292, %v1442, 0.0
      %1455 = vadd.xlane.f32.xlu0 %v1454
      %v1456 = vpop.xlane.xlu0 %1455
      %v1457 = vsel %vm292, %v1444, 0.0
      %1458 = vadd.xlane.f32.xlu0 %v1457
      %v1459 = vpop.xlane.xlu0 %1458
      %v1460 = vsel %vm292, %v1446, 0.0
      %1461 = vadd.xlane.f32.xlu0 %v1460
      %v1462 = vpop.xlane.xlu0 %1461
      %v1463 = vmul.f32 %v1453, 0.35355338
      %v1464 = vmul.f32 %v1456, 0.35355338
      %v1465 = vmul.f32 %v1459, 0.35355338
      %v1466 = vmul.f32 %v1462, 0.35355338
      %v1467 = vsub.f32 %v1463, %v1463
      %v1468 = vsub.f32 %v1464, %v1464
      %v1469 = vsub.f32 %v1465, %v1465
      %v1470 = vsub.f32 %v1466, %v1466
      %v1471 = vmul.f32 %v1467, 1.442695
      %v1472 = vpow.pop %v1471
      %v1473 = vmul.f32 %v1468, 1.442695
      %v1474 = vpow.pop %v1473
      %v1475 = vmul.f32 %v1469, 1.442695
      %v1476 = vpow.pop %v1475
      %v1477 = vmul.f32 %v1470, 1.442695
      %v1478 = vpow.pop %v1477
      %v1479 = vadd.f32 %v1472, 0.0
      %v1480 = vadd.f32 %v1474, 0.0
      %v1481 = vadd.f32 %v1476, 0.0
      %v1482 = vadd.f32 %v1478, 0.0
      %v1483 = vrcp.pop %v1479
      %v1484 = vmul.f32 %v1479, %v1483
      %v1485 = vsub.f32 1.0, %v1484
      %v1486 = vmul.f32 %v1483, %v1485
      %v1487 = vadd.f32 %v1483, %v1486
      %vm1488 = vweird.f32 %v1479
      %vm1489 = vweird.f32 %v1483
      %vm1490 = vmor %vm1488, %vm1489
      %v1491 = vsel %vm1490, %v1483, %v1487
      %v1492 = vand.u32 2147483647, %v1479
      %vm1493 = vcmp.eq.f32.partialorder %v1492, 8.507059e+37
      %v1494 = vand.u32 %v1479, 2147483648
      %v1495 = vor.u32 1.1754944e-38, %v1494
      %v1496 = vsel %vm1493, %v1495, %v1491
      %v1497 = vmul.f32 %v1472, %v1496
      %v1498 = vrcp.pop %v1480
      %v1499 = vmul.f32 %v1480, %v1498
      %v1500 = vsub.f32 1.0, %v1499
      %v1501 = vmul.f32 %v1498, %v1500
      %v1502 = vadd.f32 %v1498, %v1501
      %vm1503 = vweird.f32 %v1480
      %vm1504 = vweird.f32 %v1498
      %vm1505 = vmor %vm1503, %vm1504
      %v1506 = vsel %vm1505, %v1498, %v1502
      %v1507 = vand.u32 2147483647, %v1480
      %vm1508 = vcmp.eq.f32.partialorder %v1507, 8.507059e+37
      %v1509 = vand.u32 %v1480, 2147483648
      %v1510 = vor.u32 1.1754944e-38, %v1509
      %v1511 = vsel %vm1508, %v1510, %v1506
      %v1512 = vmul.f32 %v1474, %v1511
      %v1513 = vrcp.pop %v1481
      %v1514 = vmul.f32 %v1481, %v1513
      %v1515 = vsub.f32 1.0, %v1514
      %v1516 = vmul.f32 %v1513, %v1515
      %v1517 = vadd.f32 %v1513, %v1516
      %vm1518 = vweird.f32 %v1481
      %vm1519 = vweird.f32 %v1513
      %vm1520 = vmor %vm1518, %vm1519
      %v1521 = vsel %vm1520, %v1513, %v1517
      %v1522 = vand.u32 2147483647, %v1481
      %vm1523 = vcmp.eq.f32.partialorder %v1522, 8.507059e+37
      %v1524 = vand.u32 %v1481, 2147483648
      %v1525 = vor.u32 1.1754944e-38, %v1524
      %v1526 = vsel %vm1523, %v1525, %v1521
      %v1527 = vmul.f32 %v1476, %v1526
      %v1528 = vrcp.pop %v1482
      %v1529 = vmul.f32 %v1482, %v1528
      %v1530 = vsub.f32 1.0, %v1529
      %v1531 = vmul.f32 %v1528, %v1530
      %v1532 = vadd.f32 %v1528, %v1531
      %vm1533 = vweird.f32 %v1482
      %vm1534 = vweird.f32 %v1528
      %vm1535 = vmor %vm1533, %vm1534
      %v1536 = vsel %vm1535, %v1528, %v1532
      %v1537 = vand.u32 2147483647, %v1482
      %vm1538 = vcmp.eq.f32.partialorder %v1537, 8.507059e+37
      %v1539 = vand.u32 %v1482, 2147483648
      %v1540 = vor.u32 1.1754944e-38, %v1539
      %v1541 = vsel %vm1538, %v1540, %v1536
      %v1542 = vmul.f32 %v1478, %v1541
      %1543 = vrot.lane.b32.xlu0 %v539, 80
      %v1544 = vpop.permute.xlu0 %1543
      %v1546 = vsel %vm639, %v1497, 0
      %v1549 = vsel %vm639, %v1512, 0
      %v1552 = vsel %vm639, %v1527, 0
      %v1555 = vsel %vm639, %v1542, 0
      %v1557 = vsel %vm652, %v1544, 0
      %1559 = vmatpush.msra.mxu0 0.0
      %1560 = vmatpush.msra.mxu0 0.0
      %1561 = vmatpush.msra.mxu0 0.0
      %1562 = vmatpush.msra.mxu0 0.0
      %1563 = vmatpush.msra.mxu0 0.0
      %1564 = vmatpush.msra.mxu0 0.0
      %1565 = vmatpush.msra.mxu0 0.0
      %1566 = vmatpush.msra.mxu0 0.0
      %1567 = vmatpush.msra.mxu0 0.0
      %1568 = vmatpush.msra.mxu0 0.0
      %1569 = vmatpush.msra.mxu0 0.0
      %1570 = vmatpush.msra.mxu0 0.0
      %1571 = vmatpush.msra.mxu0 0.0
      %1572 = vmatpush.msra.mxu0 0.0
      %1573 = vmatpush.msra.mxu0 0.0
      %1574 = vmatpush.msra.mxu0 %v1557
      %1575 = vmatmul.f32.gmra.mxu0 %v1546
      %v1576 = vpop.f32.mrf.mxu0
      %v1577 = vadd.f32 0.0, %v1576
      %1578 = vmatmul.f32.gmra.mxu0 %v1549
      %v1579 = vpop.f32.mrf.mxu0
      %v1580 = vadd.f32 0.0, %v1579
      %1581 = vmatmul.f32.gmra.mxu0 %v1552
      %v1582 = vpop.f32.mrf.mxu0
      %v1583 = vadd.f32 0.0, %v1582
      %1584 = vmatmul.f32.gmra.mxu0 %v1555
      %v1585 = vpop.f32.mrf.mxu0
      %v1586 = vadd.f32 0.0, %v1585
      %1587 = vdwg.mxu0
      %v1588 = vadd.f32 %v1399, %v1577
      %v1589 = vadd.f32 %v1402, %v1580
      %v1590 = vadd.f32 %v1434, %v1583
      %v1591 = vadd.f32 %v1437, %v1586
      %v1592 = vld [vmem:[%s3 + $0x10] sm:$0xff]
      %v1594 = vsel %vm292, %v1588, 0
      %v1597 = vsel %vm292, %v1589, 0
      %v1600 = vsel %vm292, %v1590, 0
      %v1603 = vsel %vm292, %v1591, 0
      %1605 = vmatpush.msra.mxu0 0.0
      %1606 = vmatpush.msra.mxu0 0.0
      %1607 = vmatpush.msra.mxu0 0.0
      %1608 = vmatpush.msra.mxu0 0.0
      %1609 = vmatpush.msra.mxu0 0.0
      %1610 = vmatpush.msra.mxu0 0.0
      %1611 = vmatpush.msra.mxu0 0.0
      %1612 = vmatpush.msra.mxu0 0.0
      %1613 = vmatpush.msra.mxu0 0.0
      %1614 = vmatpush.msra.mxu0 0.0
      %1615 = vmatpush.msra.mxu0 0.0
      %1616 = vmatpush.msra.mxu0 0.0
      %1617 = vmatpush.msra.mxu0 0.0
      %1618 = vmatpush.msra.mxu0 0.0
      %1619 = vmatpush.msra.mxu0 0.0
      %1620 = vmatpush.msra.mxu0 %v1592
      %1621 = vmatmul.f32.gmra.mxu0 %v1594
      %v1622 = vpop.f32.mrf.mxu0
      %v1623 = vadd.f32 0.0, %v1622
      %1624 = vmatmul.f32.gmra.mxu0 %v1597
      %v1625 = vpop.f32.mrf.mxu0
      %v1626 = vadd.f32 0.0, %v1625
      %1627 = vmatmul.f32.gmra.mxu0 %v1600
      %v1628 = vpop.f32.mrf.mxu0
      %v1629 = vadd.f32 0.0, %v1628
      %1630 = vmatmul.f32.gmra.mxu0 %v1603
      %v1631 = vpop.f32.mrf.mxu0
      %v1632 = vadd.f32 0.0, %v1631
      %1633 = vdwg.mxu0
      %v1634 = vadd.f32 %v1173, %v1623
      %v1635 = vadd.f32 %v1176, %v1626
      %v1636 = vadd.f32 %v1179, %v1629
      %v1637 = vadd.f32 %v1182, %v1632
      %1638 = vrot.lane.b32.xlu0 %v281, 104
      %v1639 = vpop.permute.xlu0 %1638
      %1640 = vrot.lane.b32.xlu0 %v282, 104
      %v1641 = vpop.permute.xlu0 %1640
      %1642 = vrot.lane.b32.xlu0 %v281, 72
      %v1643 = vpop.permute.xlu0 %1642
      %1644 = vrot.lane.b32.xlu0 %v282, 72
      %v1645 = vpop.permute.xlu0 %1644
      %v1646 = vsel %vm292, %v1639, 0
      %v1648 = vsel %vm292, %v1641, 0
      %v1650 = vsel %vm292, %v1643, 0
      %v1652 = vsel %vm292, %v1645, 0
      %1654 = vmatpush.xpose.msra.mxu0 0.0
      %1655 = vmatpush.xpose.msra.mxu0 0.0
      %1656 = vmatpush.xpose.msra.mxu0 0.0
      %1657 = vmatpush.xpose.msra.mxu0 0.0
      %1658 = vmatpush.xpose.msra.mxu0 0.0
      %1659 = vmatpush.xpose.msra.mxu0 0.0
      %1660 = vmatpush.xpose.msra.mxu0 0.0
      %1661 = vmatpush.xpose.msra.mxu0 0.0
      %1662 = vmatpush.xpose.msra.mxu0 0.0
      %1663 = vmatpush.xpose.msra.mxu0 0.0
      %1664 = vmatpush.xpose.msra.mxu0 0.0
      %1665 = vmatpush.xpose.msra.mxu0 0.0
      %1666 = vmatpush.xpose.msra.mxu0 0.0
      %1667 = vmatpush.xpose.msra.mxu0 0.0
      %1668 = vmatpush.xpose.msra.mxu0 %v1652
      %1669 = vmatpush.xpose.msra.mxu0 %v1650
      %1670 = vmatmul.f32.gmra.mxu0 %v1646
      %v1671 = vpop.f32.mrf.mxu0
      %v1672 = vadd.f32 0.0, %v1671
      %1673 = vmatmul.f32.gmra.mxu0 %v1648
      %v1674 = vpop.f32.mrf.mxu0
      %v1675 = vadd.f32 0.0, %v1674
      %1676 = vdwg.mxu0
      %1677 = vrot.lane.b32.xlu0 %v283, 104
      %v1678 = vpop.permute.xlu0 %1677
      %1679 = vrot.lane.b32.xlu0 %v284, 104
      %v1680 = vpop.permute.xlu0 %1679
      %1681 = vrot.lane.b32.xlu0 %v283, 72
      %v1682 = vpop.permute.xlu0 %1681
      %1683 = vrot.lane.b32.xlu0 %v284, 72
      %v1684 = vpop.permute.xlu0 %1683
      %v1685 = vsel %vm292, %v1678, 0
      %v1687 = vsel %vm292, %v1680, 0
      %v1689 = vsel %vm292, %v1682, 0
      %v1691 = vsel %vm292, %v1684, 0
      %1693 = vmatpush.xpose.msra.mxu0 0.0
      %1694 = vmatpush.xpose.msra.mxu0 0.0
      %1695 = vmatpush.xpose.msra.mxu0 0.0
      %1696 = vmatpush.xpose.msra.mxu0 0.0
      %1697 = vmatpush.xpose.msra.mxu0 0.0
      %1698 = vmatpush.xpose.msra.mxu0 0.0
      %1699 = vmatpush.xpose.msra.mxu0 0.0
      %1700 = vmatpush.xpose.msra.mxu0 0.0
      %1701 = vmatpush.xpose.msra.mxu0 0.0
      %1702 = vmatpush.xpose.msra.mxu0 0.0
      %1703 = vmatpush.xpose.msra.mxu0 0.0
      %1704 = vmatpush.xpose.msra.mxu0 0.0
      %1705 = vmatpush.xpose.msra.mxu0 0.0
      %1706 = vmatpush.xpose.msra.mxu0 0.0
      %1707 = vmatpush.xpose.msra.mxu0 %v1691
      %1708 = vmatpush.xpose.msra.mxu0 %v1689
      %1709 = vmatmul.f32.gmra.mxu0 %v1685
      %v1710 = vpop.f32.mrf.mxu0
      %v1711 = vadd.f32 0.0, %v1710
      %1712 = vmatmul.f32.gmra.mxu0 %v1687
      %v1713 = vpop.f32.mrf.mxu0
      %v1714 = vadd.f32 0.0, %v1713
      %1715 = vdwg.mxu0
      %v1716 = vmul.f32 %v1672, 0.35355338
      %v1717 = vmul.f32 %v1675, 0.35355338
      %v1718 = vmul.f32 %v1711, 0.35355338
      %v1719 = vmul.f32 %v1714, 0.35355338
      %s1720 = scalar_lea.vmem %s1, 48
      %v1721 = vld [vmem:[%s1720] sm:$0xff]
      %v1722 = vld [vmem:[%s1720 + $0x8] sm:$0xff]
      %v1723 = vadd.f32 %v1716, %v1721
      %v1724 = vadd.f32 %v1717, %v1722
      %v1725 = vadd.f32 %v1718, %v1721
      %v1726 = vadd.f32 %v1719, %v1722
      %v1727 = vsel %vm371, %v1723, -inf
      %1728 = vmax.xlane.f32.xlu0 %v1727
      %v1729 = vpop.xlane.xlu0 %1728
      %v1730 = vsel %vm371, %v1724, -inf
      %1731 = vmax.xlane.f32.xlu0 %v1730
      %v1732 = vpop.xlane.xlu0 %1731
      %v1733 = vsel %vm371, %v1725, -inf
      %1734 = vmax.xlane.f32.xlu0 %v1733
      %v1735 = vpop.xlane.xlu0 %1734
      %v1736 = vsel %vm371, %v1726, -inf
      %1737 = vmax.xlane.f32.xlu0 %v1736
      %v1738 = vpop.xlane.xlu0 %1737
      %v1739 = vsub.f32 %v1723, %v1729
      %v1740 = vsub.f32 %v1724, %v1732
      %v1741 = vsub.f32 %v1725, %v1735
      %v1742 = vsub.f32 %v1726, %v1738
      %v1743 = vmul.f32 %v1739, 1.442695
      %v1744 = vpow.pop %v1743
      %v1745 = vmul.f32 %v1740, 1.442695
      %v1746 = vpow.pop %v1745
      %v1747 = vmul.f32 %v1741, 1.442695
      %v1748 = vpow.pop %v1747
      %v1749 = vmul.f32 %v1742, 1.442695
      %v1750 = vpow.pop %v1749
      %v1751 = vsel %vm371, %v1744, 0.0
      %1752 = vadd.xlane.f32.xlu0 %v1751
      %v1753 = vpop.xlane.xlu0 %1752
      %v1754 = vsel %vm371, %v1746, 0.0
      %1755 = vadd.xlane.f32.xlu0 %v1754
      %v1756 = vpop.xlane.xlu0 %1755
      %v1757 = vsel %vm371, %v1748, 0.0
      %1758 = vadd.xlane.f32.xlu0 %v1757
      %v1759 = vpop.xlane.xlu0 %1758
      %v1760 = vsel %vm371, %v1750, 0.0
      %1761 = vadd.xlane.f32.xlu0 %v1760
      %v1762 = vpop.xlane.xlu0 %1761
      %v1763 = vrcp.pop %v1753
      %v1764 = vmul.f32 %v1753, %v1763
      %v1765 = vsub.f32 1.0, %v1764
      %v1766 = vmul.f32 %v1763, %v1765
      %v1767 = vadd.f32 %v1763, %v1766
      %vm1768 = vweird.f32 %v1753
      %vm1769 = vweird.f32 %v1763
      %vm1770 = vmor %vm1768, %vm1769
      %v1771 = vsel %vm1770, %v1763, %v1767
      %v1772 = vand.u32 2147483647, %v1753
      %vm1773 = vcmp.eq.f32.partialorder %v1772, 8.507059e+37
      %v1774 = vand.u32 %v1753, 2147483648
      %v1775 = vor.u32 1.1754944e-38, %v1774
      %v1776 = vsel %vm1773, %v1775, %v1771
      %v1777 = vmul.f32 %v1744, %v1776
      %v1778 = vrcp.pop %v1756
      %v1779 = vmul.f32 %v1756, %v1778
      %v1780 = vsub.f32 1.0, %v1779
      %v1781 = vmul.f32 %v1778, %v1780
      %v1782 = vadd.f32 %v1778, %v1781
      %vm1783 = vweird.f32 %v1756
      %vm1784 = vweird.f32 %v1778
      %vm1785 = vmor %vm1783, %vm1784
      %v1786 = vsel %vm1785, %v1778, %v1782
      %v1787 = vand.u32 2147483647, %v1756
      %vm1788 = vcmp.eq.f32.partialorder %v1787, 8.507059e+37
      %v1789 = vand.u32 %v1756, 2147483648
      %v1790 = vor.u32 1.1754944e-38, %v1789
      %v1791 = vsel %vm1788, %v1790, %v1786
      %v1792 = vmul.f32 %v1746, %v1791
      %v1793 = vrcp.pop %v1759
      %v1794 = vmul.f32 %v1759, %v1793
      %v1795 = vsub.f32 1.0, %v1794
      %v1796 = vmul.f32 %v1793, %v1795
      %v1797 = vadd.f32 %v1793, %v1796
      %vm1798 = vweird.f32 %v1759
      %vm1799 = vweird.f32 %v1793
      %vm1800 = vmor %vm1798, %vm1799
      %v1801 = vsel %vm1800, %v1793, %v1797
      %v1802 = vand.u32 2147483647, %v1759
      %vm1803 = vcmp.eq.f32.partialorder %v1802, 8.507059e+37
      %v1804 = vand.u32 %v1759, 2147483648
      %v1805 = vor.u32 1.1754944e-38, %v1804
      %v1806 = vsel %vm1803, %v1805, %v1801
      %v1807 = vmul.f32 %v1748, %v1806
      %v1808 = vrcp.pop %v1762
      %v1809 = vmul.f32 %v1762, %v1808
      %v1810 = vsub.f32 1.0, %v1809
      %v1811 = vmul.f32 %v1808, %v1810
      %v1812 = vadd.f32 %v1808, %v1811
      %vm1813 = vweird.f32 %v1762
      %vm1814 = vweird.f32 %v1808
      %vm1815 = vmor %vm1813, %vm1814
      %v1816 = vsel %vm1815, %v1808, %v1812
      %v1817 = vand.u32 2147483647, %v1762
      %vm1818 = vcmp.eq.f32.partialorder %v1817, 8.507059e+37
      %v1819 = vand.u32 %v1762, 2147483648
      %v1820 = vor.u32 1.1754944e-38, %v1819
      %v1821 = vsel %vm1818, %v1820, %v1816
      %v1822 = vmul.f32 %v1750, %v1821
      %1823 = vrot.lane.b32.xlu0 %v281, 40
      %v1824 = vpop.permute.xlu0 %1823
      %1825 = vrot.lane.b32.xlu0 %v282, 40
      %v1826 = vpop.permute.xlu0 %1825
      %v1830 = vsel %vm371, %v1777, 0
      %v1833 = vsel %vm371, %v1792, 0
      %1835 = vmatpush.msra.mxu0 0.0
      %1836 = vmatpush.msra.mxu0 0.0
      %1837 = vmatpush.msra.mxu0 0.0
      %1838 = vmatpush.msra.mxu0 0.0
      %1839 = vmatpush.msra.mxu0 0.0
      %1840 = vmatpush.msra.mxu0 0.0
      %1841 = vmatpush.msra.mxu0 0.0
      %1842 = vmatpush.msra.mxu0 0.0
      %1843 = vmatpush.msra.mxu0 0.0
      %1844 = vmatpush.msra.mxu0 0.0
      %1845 = vmatpush.msra.mxu0 0.0
      %1846 = vmatpush.msra.mxu0 0.0
      %1847 = vmatpush.msra.mxu0 0.0
      %1848 = vmatpush.msra.mxu0 0.0
      %1849 = vmatpush.msra.mxu0 %v1826
      %1850 = vmatpush.msra.mxu0 %v1824
      %1851 = vmatmul.f32.gmra.mxu0 %v1830
      %v1852 = vpop.f32.mrf.mxu0
      %v1853 = vadd.f32 0.0, %v1852
      %1854 = vmatmul.f32.gmra.mxu0 %v1833
      %v1855 = vpop.f32.mrf.mxu0
      %v1856 = vadd.f32 0.0, %v1855
      %1857 = vdwg.mxu0
      %1858 = vrot.lane.b32.xlu0 %v283, 40
      %v1859 = vpop.permute.xlu0 %1858
      %1860 = vrot.lane.b32.xlu0 %v284, 40
      %v1861 = vpop.permute.xlu0 %1860
      %v1865 = vsel %vm371, %v1807, 0
      %v1868 = vsel %vm371, %v1822, 0
      %1870 = vmatpush.msra.mxu0 0.0
      %1871 = vmatpush.msra.mxu0 0.0
      %1872 = vmatpush.msra.mxu0 0.0
      %1873 = vmatpush.msra.mxu0 0.0
      %1874 = vmatpush.msra.mxu0 0.0
      %1875 = vmatpush.msra.mxu0 0.0
      %1876 = vmatpush.msra.mxu0 0.0
      %1877 = vmatpush.msra.mxu0 0.0
      %1878 = vmatpush.msra.mxu0 0.0
      %1879 = vmatpush.msra.mxu0 0.0
      %1880 = vmatpush.msra.mxu0 0.0
      %1881 = vmatpush.msra.mxu0 0.0
      %1882 = vmatpush.msra.mxu0 0.0
      %1883 = vmatpush.msra.mxu0 0.0
      %1884 = vmatpush.msra.mxu0 %v1861
      %1885 = vmatpush.msra.mxu0 %v1859
      %1886 = vmatmul.f32.gmra.mxu0 %v1865
      %v1887 = vpop.f32.mrf.mxu0
      %v1888 = vadd.f32 0.0, %v1887
      %1889 = vmatmul.f32.gmra.mxu0 %v1868
      %v1890 = vpop.f32.mrf.mxu0
      %v1891 = vadd.f32 0.0, %v1890
      %1892 = vdwg.mxu0
      %1893 = vrot.lane.b32.xlu0 %v541, 104
      %v1894 = vpop.permute.xlu0 %1893
      %1895 = vrot.lane.b32.xlu0 %v542, 104
      %v1896 = vpop.permute.xlu0 %1895
      %1897 = vrot.lane.b32.xlu0 %v543, 104
      %v1898 = vpop.permute.xlu0 %1897
      %1899 = vrot.lane.b32.xlu0 %v544, 104
      %v1900 = vpop.permute.xlu0 %1899
      %v1905 = vsel %vm292, %v1894, 0.0
      %1906 = vadd.xlane.f32.xlu0 %v1905
      %v1907 = vpop.xlane.xlu0 %1906
      %v1908 = vsel %vm292, %v1896, 0.0
      %1909 = vadd.xlane.f32.xlu0 %v1908
      %v1910 = vpop.xlane.xlu0 %1909
      %v1911 = vsel %vm292, %v1898, 0.0
      %1912 = vadd.xlane.f32.xlu0 %v1911
      %v1913 = vpop.xlane.xlu0 %1912
      %v1914 = vsel %vm292, %v1900, 0.0
      %1915 = vadd.xlane.f32.xlu0 %v1914
      %v1916 = vpop.xlane.xlu0 %1915
      %v1917 = vmul.f32 %v1907, 0.35355338
      %v1918 = vmul.f32 %v1910, 0.35355338
      %v1919 = vmul.f32 %v1913, 0.35355338
      %v1920 = vmul.f32 %v1916, 0.35355338
      %v1921 = vsub.f32 %v1917, %v1917
      %v1922 = vsub.f32 %v1918, %v1918
      %v1923 = vsub.f32 %v1919, %v1919
      %v1924 = vsub.f32 %v1920, %v1920
      %v1925 = vmul.f32 %v1921, 1.442695
      %v1926 = vpow.pop %v1925
      %v1927 = vmul.f32 %v1922, 1.442695
      %v1928 = vpow.pop %v1927
      %v1929 = vmul.f32 %v1923, 1.442695
      %v1930 = vpow.pop %v1929
      %v1931 = vmul.f32 %v1924, 1.442695
      %v1932 = vpow.pop %v1931
      %v1933 = vadd.f32 %v1926, 0.0
      %v1934 = vadd.f32 %v1928, 0.0
      %v1935 = vadd.f32 %v1930, 0.0
      %v1936 = vadd.f32 %v1932, 0.0
      %v1937 = vrcp.pop %v1933
      %v1938 = vmul.f32 %v1933, %v1937
      %v1939 = vsub.f32 1.0, %v1938
      %v1940 = vmul.f32 %v1937, %v1939
      %v1941 = vadd.f32 %v1937, %v1940
      %vm1942 = vweird.f32 %v1933
      %vm1943 = vweird.f32 %v1937
      %vm1944 = vmor %vm1942, %vm1943
      %v1945 = vsel %vm1944, %v1937, %v1941
      %v1946 = vand.u32 2147483647, %v1933
      %vm1947 = vcmp.eq.f32.partialorder %v1946, 8.507059e+37
      %v1948 = vand.u32 %v1933, 2147483648
      %v1949 = vor.u32 1.1754944e-38, %v1948
      %v1950 = vsel %vm1947, %v1949, %v1945
      %v1951 = vmul.f32 %v1926, %v1950
      %v1952 = vrcp.pop %v1934
      %v1953 = vmul.f32 %v1934, %v1952
      %v1954 = vsub.f32 1.0, %v1953
      %v1955 = vmul.f32 %v1952, %v1954
      %v1956 = vadd.f32 %v1952, %v1955
      %vm1957 = vweird.f32 %v1934
      %vm1958 = vweird.f32 %v1952
      %vm1959 = vmor %vm1957, %vm1958
      %v1960 = vsel %vm1959, %v1952, %v1956
      %v1961 = vand.u32 2147483647, %v1934
      %vm1962 = vcmp.eq.f32.partialorder %v1961, 8.507059e+37
      %v1963 = vand.u32 %v1934, 2147483648
      %v1964 = vor.u32 1.1754944e-38, %v1963
      %v1965 = vsel %vm1962, %v1964, %v1960
      %v1966 = vmul.f32 %v1928, %v1965
      %v1967 = vrcp.pop %v1935
      %v1968 = vmul.f32 %v1935, %v1967
      %v1969 = vsub.f32 1.0, %v1968
      %v1970 = vmul.f32 %v1967, %v1969
      %v1971 = vadd.f32 %v1967, %v1970
      %vm1972 = vweird.f32 %v1935
      %vm1973 = vweird.f32 %v1967
      %vm1974 = vmor %vm1972, %vm1973
      %v1975 = vsel %vm1974, %v1967, %v1971
      %v1976 = vand.u32 2147483647, %v1935
      %vm1977 = vcmp.eq.f32.partialorder %v1976, 8.507059e+37
      %v1978 = vand.u32 %v1935, 2147483648
      %v1979 = vor.u32 1.1754944e-38, %v1978
      %v1980 = vsel %vm1977, %v1979, %v1975
      %v1981 = vmul.f32 %v1930, %v1980
      %v1982 = vrcp.pop %v1936
      %v1983 = vmul.f32 %v1936, %v1982
      %v1984 = vsub.f32 1.0, %v1983
      %v1985 = vmul.f32 %v1982, %v1984
      %v1986 = vadd.f32 %v1982, %v1985
      %vm1987 = vweird.f32 %v1936
      %vm1988 = vweird.f32 %v1982
      %vm1989 = vmor %vm1987, %vm1988
      %v1990 = vsel %vm1989, %v1982, %v1986
      %v1991 = vand.u32 2147483647, %v1936
      %vm1992 = vcmp.eq.f32.partialorder %v1991, 8.507059e+37
      %v1993 = vand.u32 %v1936, 2147483648
      %v1994 = vor.u32 1.1754944e-38, %v1993
      %v1995 = vsel %vm1992, %v1994, %v1990
      %v1996 = vmul.f32 %v1932, %v1995
      %1997 = vrot.lane.b32.xlu0 %v539, 72
      %v1998 = vpop.permute.xlu0 %1997
      %v2000 = vsel %vm639, %v1951, 0
      %v2003 = vsel %vm639, %v1966, 0
      %v2006 = vsel %vm639, %v1981, 0
      %v2009 = vsel %vm639, %v1996, 0
      %v2011 = vsel %vm652, %v1998, 0
      %2013 = vmatpush.msra.mxu0 0.0
      %2014 = vmatpush.msra.mxu0 0.0
      %2015 = vmatpush.msra.mxu0 0.0
      %2016 = vmatpush.msra.mxu0 0.0
      %2017 = vmatpush.msra.mxu0 0.0
      %2018 = vmatpush.msra.mxu0 0.0
      %2019 = vmatpush.msra.mxu0 0.0
      %2020 = vmatpush.msra.mxu0 0.0
      %2021 = vmatpush.msra.mxu0 0.0
      %2022 = vmatpush.msra.mxu0 0.0
      %2023 = vmatpush.msra.mxu0 0.0
      %2024 = vmatpush.msra.mxu0 0.0
      %2025 = vmatpush.msra.mxu0 0.0
      %2026 = vmatpush.msra.mxu0 0.0
      %2027 = vmatpush.msra.mxu0 0.0
      %2028 = vmatpush.msra.mxu0 %v2011
      %2029 = vmatmul.f32.gmra.mxu0 %v2000
      %v2030 = vpop.f32.mrf.mxu0
      %v2031 = vadd.f32 0.0, %v2030
      %2032 = vmatmul.f32.gmra.mxu0 %v2003
      %v2033 = vpop.f32.mrf.mxu0
      %v2034 = vadd.f32 0.0, %v2033
      %2035 = vmatmul.f32.gmra.mxu0 %v2006
      %v2036 = vpop.f32.mrf.mxu0
      %v2037 = vadd.f32 0.0, %v2036
      %2038 = vmatmul.f32.gmra.mxu0 %v2009
      %v2039 = vpop.f32.mrf.mxu0
      %v2040 = vadd.f32 0.0, %v2039
      %2041 = vdwg.mxu0
      %v2042 = vadd.f32 %v1853, %v2031
      %v2043 = vadd.f32 %v1856, %v2034
      %v2044 = vadd.f32 %v1888, %v2037
      %v2045 = vadd.f32 %v1891, %v2040
      %v2046 = vld [vmem:[%s3 + $0x18] sm:$0xff]
      %v2048 = vsel %vm292, %v2042, 0
      %v2051 = vsel %vm292, %v2043, 0
      %v2054 = vsel %vm292, %v2044, 0
      %v2057 = vsel %vm292, %v2045, 0
      %2059 = vmatpush.msra.mxu0 0.0
      %2060 = vmatpush.msra.mxu0 0.0
      %2061 = vmatpush.msra.mxu0 0.0
      %2062 = vmatpush.msra.mxu0 0.0
      %2063 = vmatpush.msra.mxu0 0.0
      %2064 = vmatpush.msra.mxu0 0.0
      %2065 = vmatpush.msra.mxu0 0.0
      %2066 = vmatpush.msra.mxu0 0.0
      %2067 = vmatpush.msra.mxu0 0.0
      %2068 = vmatpush.msra.mxu0 0.0
      %2069 = vmatpush.msra.mxu0 0.0
      %2070 = vmatpush.msra.mxu0 0.0
      %2071 = vmatpush.msra.mxu0 0.0
      %2072 = vmatpush.msra.mxu0 0.0
      %2073 = vmatpush.msra.mxu0 0.0
      %2074 = vmatpush.msra.mxu0 %v2046
      %2075 = vmatmul.f32.gmra.mxu0 %v2048
      %v2076 = vpop.f32.mrf.mxu0
      %v2077 = vadd.f32 0.0, %v2076
      %2078 = vmatmul.f32.gmra.mxu0 %v2051
      %v2079 = vpop.f32.mrf.mxu0
      %v2080 = vadd.f32 0.0, %v2079
      %2081 = vmatmul.f32.gmra.mxu0 %v2054
      %v2082 = vpop.f32.mrf.mxu0
      %v2083 = vadd.f32 0.0, %v2082
      %2084 = vmatmul.f32.gmra.mxu0 %v2057
      %v2085 = vpop.f32.mrf.mxu0
      %v2086 = vadd.f32 0.0, %v2085
      %2087 = vdwg.mxu0
      %v2088 = vadd.f32 %v1634, %v2077
      %v2089 = vadd.f32 %v1635, %v2080
      %v2090 = vadd.f32 %v1636, %v2083
      %v2091 = vadd.f32 %v1637, %v2086
      %v2092 = vld [vmem:[%s4] sm:$0x1]
      %v2094 = vperm.slane %v2092, 0
      %v2096 = vadd.f32 %v2088, %v2094
      %v2097 = vadd.f32 %v2089, %v2094
      %v2098 = vadd.f32 %v2090, %v2094
      %v2099 = vadd.f32 %v2091, %v2094
      %vm2100 = vcmask 261120
      %2101 = vst.msk [vmem:[%s277] sm:$0xff] %vm2100, %v2096
      %2102 = vst.msk [vmem:[%s277 + $0x8] sm:$0xff] %vm2100, %v2097
      %2103 = vst.msk [vmem:[%s277 + $0x10] sm:$0xff] %vm2100, %v2098
      %2104 = vst.msk [vmem:[%s277 + $0x18] sm:$0xff] %vm2100, %v2099
      %s2105 = smul.u32 %s20, 2
      %s2106 = sadd.s32 %s2105, %s21
      %s2107 = smul.u32 4, %s2106
      %p2108 = scmp.lt.s32.totalorder %s2107, 15
      %s2109 = scalar_select %p2108, %s2107, 15
      %s2110 = smul.addr %s2109, 8
      %s2111 = scalar_lea.vmem %s5, %s2110
      // Predicated region
      $region41: #{_lambda_.7} parent=39 // pred_check
        %p2112 = pneg %p169
      $region42: #{_lambda_.7} parent=39 // pred_check_branch
        %2114 = sbr.rel (%p2112) target = $region44
      $region43: #{_lambda_.7} parent=39 // pred_region
        %s2115 = smul.u32 %s20, 2
        %s2116 = sadd.s32 %s2115, %s21
        %s2117 = smul.u32 4, %s2116
      $region44: #{_lambda_.7} parent=39 // pred_fallthru
        _
    $region40: #{_lambda_.7} parent=5 // pred_fallthru
      _
    %p2118 = scmp.le.s32.totalorder 2, %s11
    // Predicated region
    $region45: #{_lambda_.7} parent=5 // pred_check
      %p2119 = pneg %p2118
    $region46: #{_lambda_.7} parent=5 // pred_check_branch
      %2121 = sbr.rel (%p2119) target = $region48
    $region47: #{_lambda_.7} parent=5 // pred_region
      %s2122 = ssub.s32 %s11, 2
      // Predicated region
      $region49: #{_lambda_.7} parent=47 // pred_check
        %p2123 = pneg %p175
      $region50: #{_lambda_.7} parent=47 // pred_check_branch
        %2125 = sbr.rel (%p2123) target = $region52
      $region51: #{_lambda_.7} parent=47 // pred_region
        %s2126 = smul.u32 %s22, 2
        %s2127 = sadd.s32 %s2126, %s23
        %s2128 = smul.u32 4, %s2127
        %p2129 = scmp.lt.s32.totalorder %s2128, 15
        %s2130 = scalar_select %p2129, %s2128, 15
        %s2131 = smul.addr %s2130, 8
        %s2132 = scalar_lea.vmem %s5, %s2131
      $region52: #{_lambda_.7} parent=47 // pred_fallthru
        _
    $region48: #{_lambda_.7} parent=5 // pred_fallthru
      _
  $region6: #{_lambda_.7} parent=0 // loop_footer
    %s15 = sadd.s32 1, %s11
  $region7: #{_lambda_.7} parent=0 // loop_footer_branch
    %10 = sbr.rel target = $region3
  $region8: #{_lambda_.7} parent=0 // loop_exit
    _

</llo_original>
